<compile_context>
chip_gen: v7x
topology: tpu7x:2x2x1
jax: 0.10.0
libtpu: 0.0.40
codegen_flags: <defaults>
</compile_context>

<pallas_src>
import jax
import jax.numpy as jnp
from jax.experimental import pallas as pl
from jax.experimental.pallas import tpu as pltpu

INP_DIM = 16       # inp_dim
HEAD_DIM = 32      # c
MHA_HEADS = 4      # num_heads of MHAWithPairBias
GATT_HEADS = 8     # gatt_head of GeometryConstraitUpdate
C_OPM = 8          # c_opm
LN_EPS = 1e-5


# --------------------------------------------------------------------------- #
# VMEM budgeting (perf review: derive from hardware, keep headroom)
# --------------------------------------------------------------------------- #
def _vmem_limit_bytes():
    """Scoped VMEM limit: ~3/4 of the physical per-core VMEM, >=8 MiB headroom.

    v7x (64 MiB)  -> 48 MiB ; v5e/v6e (128 MiB) -> 96 MiB.
    """
    try:
        cap = pltpu.get_tpu_info().vmem_capacity_bytes
    except Exception:
        cap = 128 * 1024 * 1024
    return int(min(cap * 3 // 4, cap - (8 << 20)))


def _pick_q_tile(q_len, k_len, with_weights, budget, batch,
                 num_heads, head_dim, d):
    """Largest Q tile (multiple of 8) whose per-step footprint fits `budget`.

    Accounts for double-buffered BlockSpec blocks AND in-kernel temporaries
    (f32 logits/exp/softmax, bf16 per-head projections, resident weights).
    Returns (tile, padded_q_len).
    """
    q_pad = ((q_len + 7) // 8) * 8
    cands = [t for t in range(8, min(q_pad, 256) + 1, 8) if q_pad % t == 0]

    def step_bytes(tq):
        blk = 2 * tq * d * 4                 # q block + out block (f32)
        blk += 2 * k_len * d * 4             # k + v blocks (f32)
        blk += tq * k_len * 2                # mask block (bf16)
        blk += num_heads * tq * k_len * 2    # pair-bias block (bf16)
        if with_weights:
            blk += num_heads * tq * k_len * 2  # weights output block (bf16)
        tot = 2 * blk                        # double-buffered pipeline blocks
        tot += 3 * tq * k_len * 4            # logits / exp / softmax f32 temps
        if with_weights:
            tot += tq * k_len * 4
        tot += 3 * (tq + k_len) * head_dim * 2        # bf16 per-head projections
        tot += 4 * num_heads * d * head_dim * 2 + 4 * d * 4   # resident weights
        return tot

    fitting = [t for t in cands if step_bytes(t) <= budget]
    if not fitting:
        # TODO(synk): flash-style K-tiled online softmax (third "arbitrary" grid
        # axis, m/l/acc scratch) to bound the footprint by (TQ, TK) for very
        # long K; with the bf16 streams it is not needed at these sizes.
        fitting = [8]
    if batch == 1 and q_pad >= 16:
        # Keep >= 2 q-tiles so a v7x chip can shard the grid across both cores.
        small = [t for t in fitting if t <= q_pad // 2]
        if small:
            fitting = small
    return max(fitting), q_pad


# --------------------------------------------------------------------------- #
# MHAWithPairBias kernel
# --------------------------------------------------------------------------- #
def _make_mha_kernel(write_weights: bool, num_heads: int):
    def kernel(q_ref, k_ref, v_ref, mask_ref, bias_ref,
               wq_ref, wk_ref, wv_ref, wf_ref, bf_ref, gamma_ref, beta_ref,
               *out_refs):
        out_ref = out_refs[0]
        w_ref = out_refs[1] if write_weights else None

        q = q_ref[0].astype(jnp.bfloat16)            # (TQ, D)
        k = k_ref[0].astype(jnp.bfloat16)            # (K, D)
        v = v_ref[0].astype(jnp.bfloat16)            # (K, D)

        # Exact PyTorch mask expression, rebuilt on the VPU from the bf16 0/1
        # stream (mask values are exactly representable in bf16).
        mask_add = mask_ref[0].astype(jnp.float32) * 1e9 - 1.0      # (TQ, K)

        scale = num_heads ** (-0.5)
        acc = None
        # TODO(synk): k/v head projections could be kept in VMEM scratch across
        # q-tiles (recompute only when the batch index changes); negligible here.
        for h in range(num_heads):                   # statically unrolled
            qh = (jnp.dot(q, wq_ref[h], preferred_element_type=jnp.float32)
                  * scale).astype(jnp.bfloat16)                      # (TQ, C)
            kh = jnp.dot(k, wk_ref[h],
                         preferred_element_type=jnp.float32).astype(jnp.bfloat16)
            vh = jnp.dot(v, wv_ref[h],
                         preferred_element_type=jnp.float32).astype(jnp.bfloat16)

            logits = jax.lax.dot_general(
                qh, kh, (((1,), (1,)), ((), ())),
                preferred_element_type=jnp.float32)                  # (TQ, K)
            logits = logits + mask_add + bias_ref[0, h].astype(jnp.float32)

            m = jnp.max(logits, axis=-1, keepdims=True)
            e = jnp.exp(logits - m)
            denom = jnp.sum(e, axis=-1, keepdims=True)
            w = e * pl.reciprocal(denom, approx=True)                # (TQ, K)
            if write_weights:
                w_ref[0, h] = w.astype(w_ref.dtype)                  # bf16 store

            ctx = jnp.dot(w.astype(jnp.bfloat16), vh,
                          preferred_element_type=jnp.float32)        # (TQ, C)
            contrib = jnp.dot(ctx.astype(jnp.bfloat16), wf_ref[h],
                              preferred_element_type=jnp.float32)    # (TQ, D)
            acc = contrib if acc is None else acc + contrib

        out = acc + bf_ref[...]
        mean = jnp.mean(out, axis=-1, keepdims=True)
        var = jnp.mean((out - mean) ** 2, axis=-1, keepdims=True)
        normed = (out - mean) * jax.lax.rsqrt(var + LN_EPS)
        out_ref[0] = normed * gamma_ref[...] + beta_ref[...]

    return kernel


def mha_with_pair_bias(q, k, v, mask, pair, params, return_weight=False):
    """Pallas implementation of MHAWithPairBias.forward (mask and bias given)."""
    wq, wk, wv, wbt, wf, bf, gamma, beta = params
    B, Q, D = q.shape
    K = k.shape[1]
    H, C = MHA_HEADS, HEAD_DIM

    # Pair bias computed once, lane-dense, streamed in bf16 (largest HBM stream).
    bias = jnp.einsum('bqkd,hd->bhqk', pair, wbt).astype(jnp.bfloat16)
    mask_b = mask.astype(jnp.bfloat16)               # 0/1, exact in bf16

    limit = _vmem_limit_bytes()
    tq, q_pad = _pick_q_tile(Q, K, return_weight, limit - (8 << 20),
                             B, H, C, D)
    if q_pad != Q:                                   # masked/padded tail q-tile
        pad = q_pad - Q
        q = jnp.pad(q, ((0, 0), (0, pad), (0, 0)))
        mask_b = jnp.pad(mask_b, ((0, 0), (0, pad), (0, 0)))
        bias = jnp.pad(bias, ((0, 0), (0, 0), (0, pad), (0, 0)))
    n_q = q_pad // tq

    # Per-head weight layouts: leading-axis head index is free inside the kernel
    # (no 32-lane column slices, no lane concat).  Streamed in bf16.
    wq_h = wq.reshape(D, H, C).transpose(1, 0, 2).astype(jnp.bfloat16)
    wk_h = wk.reshape(D, H, C).transpose(1, 0, 2).astype(jnp.bfloat16)
    wv_h = wv.reshape(D, H, C).transpose(1, 0, 2).astype(jnp.bfloat16)
    wf_h = wf.reshape(H, C, D).astype(jnp.bfloat16)

    out_shape = [jax.ShapeDtypeStruct((B, q_pad, D), jnp.float32)]
    out_specs = [pl.BlockSpec((1, tq, D), lambda b, qi: (b, qi, 0))]
    if return_weight:
        out_shape.append(jax.ShapeDtypeStruct((B, H, q_pad, K), jnp.bfloat16))
        out_specs.append(
            pl.BlockSpec((1, H, tq, K), lambda b, qi: (b, 0, qi, 0)))

    results = pl.pallas_call(
        _make_mha_kernel(return_weight, H),
        out_shape=tuple(out_shape),
        grid_spec=pltpu.PrefetchScalarGridSpec(
            num_scalar_prefetch=0,
            grid=(B, n_q),
            in_specs=[
                pl.BlockSpec((1, tq, D), lambda b, qi: (b, qi, 0)),        # q
                pl.BlockSpec((1, K, D), lambda b, qi: (b, 0, 0)),          # k
                pl.BlockSpec((1, K, D), lambda b, qi: (b, 0, 0)),          # v
                pl.BlockSpec((1, tq, K), lambda b, qi: (b, qi, 0)),        # mask bf16
                pl.BlockSpec((1, H, tq, K), lambda b, qi: (b, 0, qi, 0)),  # bias bf16
                pl.BlockSpec((H, D, C), lambda b, qi: (0, 0, 0)),          # Wq
                pl.BlockSpec((H, D, C), lambda b, qi: (0, 0, 0)),          # Wk
                pl.BlockSpec((H, D, C), lambda b, qi: (0, 0, 0)),          # Wv
                pl.BlockSpec((H, C, D), lambda b, qi: (0, 0, 0)),          # W_final
                pl.BlockSpec((1, D), lambda b, qi: (0, 0)),                # b_final
                pl.BlockSpec((1, D), lambda b, qi: (0, 0)),                # ln gamma
                pl.BlockSpec((1, D), lambda b, qi: (0, 0)),                # ln beta
            ],
            out_specs=tuple(out_specs)),
        compiler_params=pltpu.CompilerParams(
            dimension_semantics=("parallel", "parallel"),
            vmem_limit_bytes=limit),
    )(q, k, v, mask_b, bias, wq_h, wk_h, wv_h, wf_h,
      bf.reshape(1, D), gamma.reshape(1, D), beta.reshape(1, D))

    if return_weight:
        out, w = results
        return out[:, :Q], w[:, :, :Q]
    out = results[0] if isinstance(results, (tuple, list)) else results
    return out[:, :Q], None


# --------------------------------------------------------------------------- #
# GeometryConstraitUpdate kernel
# --------------------------------------------------------------------------- #
def _make_gcu_kernel(write_weights: bool, num_heads: int):
    def kernel(z_ref, mkey_ref, mrow_ref, dbias_ref,
               wq_ref, wk_ref, wv_ref, wg_ref, bg_ref, wf_ref, bf_ref,
               gamma_ref, beta_ref, *out_refs):
        out_ref = out_refs[0]
        w_ref = out_refs[1] if write_weights else None

        z = z_ref[0, 0]                                             # (S, D) f32
        mean = jnp.mean(z, axis=-1, keepdims=True)
        var = jnp.mean((z - mean) ** 2, axis=-1, keepdims=True)
        zln = (z - mean) * jax.lax.rsqrt(var + LN_EPS) * gamma_ref[...] + beta_ref[...]
        zb = zln.astype(jnp.bfloat16)

        # GCU masking form: 1e9 * (mask - 1): 0 for keep, -1e9 for drop.
        mask_add = mkey_ref[0, 0].astype(jnp.float32) * 1e9 - 1e9   # (1, S)
        mrow = mrow_ref[0, 0].astype(jnp.float32)                   # (S, 1)

        scale = num_heads ** (-0.5)
        acc = None
        # NOTE: linear_b adds a per-query constant across all keys; softmax is
        # shift-invariant along the key axis so it cancels exactly -> omitted.
        for h in range(num_heads):                   # statically unrolled
            qh = (jnp.dot(zb, wq_ref[h], preferred_element_type=jnp.float32)
                  * scale).astype(jnp.bfloat16)                      # (S, C)
            kh = jnp.dot(zb, wk_ref[h],
                         preferred_element_type=jnp.float32).astype(jnp.bfloat16)
            vh = jnp.dot(zb, wv_ref[h],
                         preferred_element_type=jnp.float32).astype(jnp.bfloat16)

            logits = jax.lax.dot_general(
                qh, kh, (((1,), (1,)), ((), ())),
                preferred_element_type=jnp.float32)                  # (S, S)
            logits = logits + dbias_ref[0, h].astype(jnp.float32) + mask_add

            m = jnp.max(logits, axis=-1, keepdims=True)
            e = jnp.exp(logits - m)
            denom = jnp.sum(e, axis=-1, keepdims=True)
            w = e * pl.reciprocal(denom, approx=True)                # (S, S)
            if write_weights:
                w_ref[0, 0, h] = w.astype(w_ref.dtype)

            ctx = jnp.dot(w.astype(jnp.bfloat16), vh,
                          preferred_element_type=jnp.float32)        # (S, C)
            glin = jnp.dot(zb, wg_ref[h],
                           preferred_element_type=jnp.float32) + bg_ref[h]
            gate = 1.0 / (1.0 + jnp.exp(-glin))                      # sigmoid
            gated = (gate * ctx).astype(jnp.bfloat16)
            contrib = jnp.dot(gated, wf_ref[h],
                              preferred_element_type=jnp.float32)    # (S, D)
            acc = contrib if acc is None else acc + contrib

        out_ref[0, 0] = (acc + bf_ref[...]) * mrow

    return kernel


def gcu_forward(z, d_mat, mask, params, return_weight=False):
    """Pallas implementation of GeometryConstraitUpdate.forward."""
    g_ln, b_ln, wq, wk, wv, _wb, wd, wg, bg, wf, bf = params
    B, I, S, D = z.shape
    H, C = GATT_HEADS, HEAD_DIM
    limit = _vmem_limit_bytes()

    # Distance bias precomputed lane-dense (shared over i), streamed in bf16.
    dbias = jnp.einsum('bqk,h->bhqk', d_mat, wd).astype(jnp.bfloat16)  # (B,H,S,S)
    mkey = mask.astype(jnp.bfloat16).reshape(B, I, 1, S)
    mrow = mask.astype(jnp.bfloat16).reshape(B, I, S, 1)

    wq_h = wq.reshape(D, H, C).transpose(1, 0, 2).astype(jnp.bfloat16)
    wk_h = wk.reshape(D, H, C).transpose(1, 0, 2).astype(jnp.bfloat16)
    wv_h = wv.reshape(D, H, C).transpose(1, 0, 2).astype(jnp.bfloat16)
    wg_h = wg.reshape(D, H, C).transpose(1, 0, 2).astype(jnp.bfloat16)
    bg_h = bg.reshape(H, 1, C)
    wf_h = wf.reshape(H, C, D).astype(jnp.bfloat16)

    out_shape = [jax.ShapeDtypeStruct((B, I, S, D), jnp.float32)]
    out_specs = [pl.BlockSpec((1, 1, S, D), lambda b, i: (b, i, 0, 0))]
    if return_weight:
        out_shape.append(jax.ShapeDtypeStruct((B, I, H, S, S), jnp.bfloat16))
        out_specs.append(
            pl.BlockSpec((1, 1, H, S, S), lambda b, i: (b, i, 0, 0, 0)))

    results = pl.pallas_call(
        _make_gcu_kernel(return_weight, H),
        out_shape=tuple(out_shape),
        grid_spec=pltpu.PrefetchScalarGridSpec(
            num_scalar_prefetch=0,
            grid=(B, I),
            in_specs=[
                pl.BlockSpec((1, 1, S, D), lambda b, i: (b, i, 0, 0)),     # z row
                pl.BlockSpec((1, 1, 1, S), lambda b, i: (b, i, 0, 0)),     # key mask
                pl.BlockSpec((1, 1, S, 1), lambda b, i: (b, i, 0, 0)),     # row mask
                pl.BlockSpec((1, H, S, S), lambda b, i: (b, 0, 0, 0)),     # dist bias
                pl.BlockSpec((H, D, C), lambda b, i: (0, 0, 0)),           # Wq
                pl.BlockSpec((H, D, C), lambda b, i: (0, 0, 0)),           # Wk
                pl.BlockSpec((H, D, C), lambda b, i: (0, 0, 0)),           # Wv
                pl.BlockSpec((H, D, C), lambda b, i: (0, 0, 0)),           # Wg
                pl.BlockSpec((H, 1, C), lambda b, i: (0, 0, 0)),           # bg
                pl.BlockSpec((H, C, D), lambda b, i: (0, 0, 0)),           # W_final
                pl.BlockSpec((1, D), lambda b, i: (0, 0)),                 # b_final
                pl.BlockSpec((1, D), lambda b, i: (0, 0)),                 # ln gamma
                pl.BlockSpec((1, D), lambda b, i: (0, 0)),                 # ln beta
            ],
            out_specs=tuple(out_specs)),
        compiler_params=pltpu.CompilerParams(
            dimension_semantics=("parallel", "parallel"),
            vmem_limit_bytes=limit),
    )(z, mkey, mrow, dbias, wq_h, wk_h, wv_h, wg_h, bg_h, wf_h,
      bf.reshape(1, D), g_ln.reshape(1, D), b_ln.reshape(1, D))

    if return_weight:
        return results[0], results[1]
    out = results[0] if isinstance(results, (tuple, list)) else results
    return out, None


# --------------------------------------------------------------------------- #
# Plain-XLA building blocks shared by the Pallas forward and the reference
# --------------------------------------------------------------------------- #
def _layer_norm(x, gamma, beta, eps=LN_EPS):
    mean = x.mean(axis=-1, keepdims=True)
    var = ((x - mean) ** 2).mean(axis=-1, keepdims=True)
    return (x - mean) / jnp.sqrt(var + eps) * gamma + beta


def transition(x, w1, w2):
    # TODO(synk): trivially fusable into a tiny Pallas kernel; left as XLA ops.
    return jnp.maximum(x @ w1, 0.0) @ w2


def opm_forward(h_l, h_p, params):
    # TODO(synk): OuterProductModule left as plain XLA ops (tiny at these sizes).
    gl, bl, gp, bp, wl, wp, wfin, bfin = params
    a = _layer_norm(h_l, gl, bl) @ wl                       # (B, L, c_opm)
    b = _layer_norm(h_p, gp, bp) @ wp                       # (B, P, c_opm)
    m = jnp.einsum('blc,bpc->blp', a, b) / a.shape[-1]
    return m[..., None] * wfin + bfin                       # (B, L, P, D)


# --------------------------------------------------------------------------- #
# Trioformer forward (Pallas attention kernels + XLA glue)
# --------------------------------------------------------------------------- #
def trioformer_forward(h_l, h_p, z_ij, d_ik, d_jk, mask_l, mask_p, params,
                       return_weight=True):
    mask_z = mask_l[:, :, None] * mask_p[:, None, :]                 # (B, L, P)

    hl_up, w_p2l = mha_with_pair_bias(h_l, h_p, h_p, mask_z, z_ij,
                                      params['mha_l'], return_weight)
    hp_up, w_l2p = mha_with_pair_bias(h_p, h_l, h_l,
                                      jnp.swapaxes(mask_z, 1, 2),
                                      jnp.swapaxes(z_ij, 1, 2),
                                      params['mha_p'], return_weight)
    h_l = h_l + hl_up
    h_p = h_p + hp_up
    h_l = h_l + transition(h_l, *params['trans_l'])
    h_p = h_p + transition(h_p, *params['trans_p'])
    z_ij = z_ij + opm_forward(h_l, h_p, params['opm'])

    zu_l, w_geo_l = gcu_forward(jnp.swapaxes(z_ij, 1, 2), d_ik,
                                jnp.swapaxes(mask_z, 1, 2),
                                params['gapu_l'], return_weight)
    zu_p, w_geo_p = gcu_forward(z_ij, d_jk, mask_z,
                                params['gapu_p'], return_weight)
    z_ij = z_ij + jnp.swapaxes(zu_l, 1, 2) + zu_p

    if return_weight:
        weights = {'att_weight_p2l': w_p2l, 'att_weight_l2p': w_l2p,
                   'att_weight_geo_l': w_geo_l, 'att_weight_geo_p': w_geo_p}
        return h_l, h_p, z_ij, weights
    return h_l, h_p, z_ij, None


# --------------------------------------------------------------------------- #
# Pure-JAX references mirroring the PyTorch modules
# --------------------------------------------------------------------------- #
def mha_reference(q, k, v, mask, pair, params):
    wq, wk, wv, wbt, wf, bf, gamma, beta = params
    B, Q, D = q.shape
    H, C = MHA_HEADS, HEAD_DIM
    qh = (q @ wq).reshape(B, Q, H, C)
    kh = (k @ wk).reshape(B, -1, H, C)
    vh = (v @ wv).reshape(B, -1, H, C)
    logits = jnp.einsum('bqhc,bkhc->bhqk', qh, kh) * H ** (-0.5)
    logits = logits + (mask[:, None] * 1e9 - 1.0)      # exact PyTorch expression
    logits = logits + jnp.einsum('bqkd,hd->bhqk', pair, wbt)
    w = jax.nn.softmax(logits, axis=-1)
    ctx = jnp.einsum('bhqk,bkhc->bqhc', w, vh).reshape(B, Q, H * C)
    out = _layer_norm(ctx @ wf + bf, gamma, beta)
    return out, w


def gcu_reference(z, d_mat, mask, params):
    g_ln, b_ln, wq, wk, wv, wb, wd, wg, bg, wf, bf = params
    B, I, S, D = z.shape
    H, C = GATT_HEADS, HEAD_DIM
    zl = _layer_norm(z, g_ln, b_ln)
    qh = (zl @ wq).reshape(B, I, S, H, C) * H ** (-0.5)
    kh = (zl @ wk).reshape(B, I, S, H, C)
    vh = (zl @ wv).reshape(B, I, S, H, C)
    b = jnp.transpose(zl @ wb, (0, 1, 3, 2))[..., None]          # (B,I,H,S,1)
    d = jnp.einsum('bqk,h->bhqk', d_mat, wd)[:, None]            # (B,1,H,S,S)
    logits = jnp.einsum('biqhc,bikhc->bihqk', qh, kh) + b + d
    logits = logits + 1e9 * (mask[:, :, None, None, :] - 1.0)
    w = jax.nn.softmax(logits, axis=-1)
    wa = jnp.einsum('bihqk,bikhc->biqhc', w, vh)
    gate = jax.nn.sigmoid((zl @ wg + bg).reshape(B, I, S, H, C))
    out = (gate * wa).reshape(B, I, S, H * C) @ wf + bf
    return out * mask[..., None], w


def trioformer_reference(h_l, h_p, z_ij, d_ik, d_jk, mask_l, mask_p, params):
    mask_z = mask_l[:, :, None] * mask_p[:, None, :]
    hl_up, w_p2l = mha_reference(h_l, h_p, h_p, mask_z, z_ij, params['mha_l'])
    hp_up, w_l2p = mha_reference(h_p, h_l, h_l, jnp.swapaxes(mask_z, 1, 2),
                                 jnp.swapaxes(z_ij, 1, 2), params['mha_p'])
    h_l = h_l + hl_up
    h_p = h_p + hp_up
    h_l = h_l + transition(h_l, *params['trans_l'])
    h_p = h_p + transition(h_p, *params['trans_p'])
    z_ij = z_ij + opm_forward(h_l, h_p, params['opm'])
    zu_l, w_geo_l = gcu_reference(jnp.swapaxes(z_ij, 1, 2), d_ik,
                                  jnp.swapaxes(mask_z, 1, 2), params['gapu_l'])
    zu_p, w_geo_p = gcu_reference(z_ij, d_jk, mask_z, params['gapu_p'])
    z_ij = z_ij + jnp.swapaxes(zu_l, 1, 2) + zu_p
    weights = {'att_weight_p2l': w_p2l, 'att_weight_l2p': w_l2p,
               'att_weight_geo_l': w_geo_l, 'att_weight_geo_p': w_geo_p}
    return h_l, h_p, z_ij, weights


# --------------------------------------------------------------------------- #
# Parameter init (weights stored (in_dim, out_dim) so x @ W == PyTorch x @ W.T)
# --------------------------------------------------------------------------- #
def init_trioformer_params(key):
    D, C = INP_DIM, HEAD_DIM
    keys = iter(jax.random.split(key, 48))

    def lin(shape):
        return 0.1 * jax.random.normal(next(keys), shape, jnp.float32)

    def mha_params():
        return (lin((D, MHA_HEADS * C)), lin((D, MHA_HEADS * C)),
                lin((D, MHA_HEADS * C)), lin((MHA_HEADS, D)),
                lin((MHA_HEADS * C, D)), lin((D,)),
                jnp.ones((D,), jnp.float32), jnp.zeros((D,), jnp.float32))

    def gcu_params():
        return (jnp.ones((D,), jnp.float32), jnp.zeros((D,), jnp.float32),
                lin((D, GATT_HEADS * C)), lin((D, GATT_HEADS * C)),
                lin((D, GATT_HEADS * C)),
                lin((D, GATT_HEADS)), lin((GATT_HEADS,)),
                lin((D, GATT_HEADS * C)), lin((GATT_HEADS * C,)),
                lin((GATT_HEADS * C, D)), lin((D,)))

    return {
        'mha_l': mha_params(),
        'mha_p': mha_params(),
        'trans_l': (lin((D, 2 * D)), lin((2 * D, D))),
        'trans_p': (lin((D, 2 * D)), lin((2 * D, D))),
        'opm': (jnp.ones((D,), jnp.float32), jnp.zeros((D,), jnp.float32),
                jnp.ones((D,), jnp.float32), jnp.zeros((D,), jnp.float32),
                lin((D, C_OPM)), lin((D, C_OPM)), lin((D,)), lin((D,))),
        'gapu_l': gcu_params(),
        'gapu_p': gcu_params(),
    }


# --------------------------------------------------------------------------- #
if __name__ == "__main__":
    key = jax.random.PRNGKey(0)
    k1, k2, k3, k4, k5, k6, k7, kp = jax.random.split(key, 8)
    B, L, P = 2, 8, 8
    h_l = jax.random.normal(k1, (B, L, INP_DIM), jnp.float32)
    h_p = jax.random.normal(k2, (B, P, INP_DIM), jnp.float32)
    z_ij = jax.random.normal(k3, (B, L, P, INP_DIM), jnp.float32)
    d_ik = jnp.abs(jax.random.normal(k4, (B, L, L), jnp.float32))
    d_jk = jnp.abs(jax.random.normal(k5, (B, P, P), jnp.float32))
    mask_l = jax.random.bernoulli(k6, 0.85, (B, L)).astype(jnp.float32)
    mask_p = jax.random.bernoulli(k7, 0.85, (B, P)).astype(jnp.float32)
    params = init_trioformer_params(kp)

    hl_o, hp_o, z_o, w_o = trioformer_forward(h_l, h_p, z_ij, d_ik, d_jk,
                                              mask_l, mask_p, params,
                                              return_weight=True)
    hl_o, hp_o, z_o = jax.block_until_ready((hl_o, hp_o, z_o))

    hl_r, hp_r, z_r, w_r = trioformer_reference(h_l, h_p, z_ij, d_ik, d_jk,
                                                mask_l, mask_p, params)

    def maxdiff(a, b):
        return float(jnp.max(jnp.abs(a.astype(jnp.float32) -
                                     b.astype(jnp.float32))))

    assert hl_o.shape == (B, L, INP_DIM)
    assert hp_o.shape == (B, P, INP_DIM)
    assert z_o.shape == (B, L, P, INP_DIM)
    assert w_o['att_weight_p2l'].shape == (B, MHA_HEADS, L, P)
    assert w_o['att_weight_l2p'].shape == (B, MHA_HEADS, P, L)
    assert w_o['att_weight_geo_l'].shape == (B, P, GATT_HEADS, L, L)
    assert w_o['att_weight_geo_p'].shape == (B, L, GATT_HEADS, P, P)
    assert maxdiff(hl_o, hl_r) < 5e-2
    assert maxdiff(hp_o, hp_r) < 5e-2
    assert maxdiff(z_o, z_r) < 5e-2
    for name in w_o:
        assert maxdiff(w_o[name], w_r[name]) < 5e-2

    # No-weights variant: exercises the kernels without the (B,H,Q,K) writeback.
    hl_n, hp_n, z_n, w_n = trioformer_forward(h_l, h_p, z_ij, d_ik, d_jk,
                                              mask_l, mask_p, params,
                                              return_weight=False)
    z_n = jax.block_until_ready(z_n)
    assert w_n is None
    assert maxdiff(z_n, z_r) < 5e-2
    assert maxdiff(hl_n, hl_r) < 5e-2

    print("KERNEL_OK")
</pallas_src>

<mosaic_0001>
module attributes {stable_mosaic.version = 11 : i64} {
  func.func @kernel(%arg0: i32, %arg1: i32, %arg2: memref<1x8x16xf32, #tpu.memory_space<vmem>>, %arg3: memref<1x8x16xf32, #tpu.memory_space<vmem>>, %arg4: memref<1x8x16xf32, #tpu.memory_space<vmem>>, %arg5: memref<1x8x8xbf16, #tpu.memory_space<vmem>>, %arg6: memref<1x4x8x8xbf16, #tpu.memory_space<vmem>>, %arg7: memref<4x16x32xbf16, #tpu.memory_space<vmem>>, %arg8: memref<4x16x32xbf16, #tpu.memory_space<vmem>>, %arg9: memref<4x16x32xbf16, #tpu.memory_space<vmem>>, %arg10: memref<4x32x16xbf16, #tpu.memory_space<vmem>>, %arg11: memref<1x16xf32, #tpu.memory_space<vmem>>, %arg12: memref<1x16xf32, #tpu.memory_space<vmem>>, %arg13: memref<1x16xf32, #tpu.memory_space<vmem>>, %arg14: memref<1x8x16xf32, #tpu.memory_space<vmem>>, %arg15: memref<1x4x8x8xbf16, #tpu.memory_space<vmem>>) attributes {dimension_semantics = [#tpu.dimension_semantics<parallel>, #tpu.dimension_semantics<parallel>], iteration_bounds = array<i64: 2, 1>, scalar_prefetch = 0 : i64, scratch_operands = 0 : i64, tpu.core_type = #tpu.core_type<tc>, window_params = [{transform_indices = @transform_0, window_bounds = array<i64: 1, 8, 16>}, {transform_indices = @transform_1, window_bounds = array<i64: 1, 8, 16>}, {transform_indices = @transform_2, window_bounds = array<i64: 1, 8, 16>}, {transform_indices = @transform_3, window_bounds = array<i64: 1, 8, 8>}, {transform_indices = @transform_4, window_bounds = array<i64: 1, 4, 8, 8>}, {pipeline_mode = #tpu.pipeline_mode<synchronous>, transform_indices = @transform_5, window_bounds = array<i64: 4, 16, 32>}, {pipeline_mode = #tpu.pipeline_mode<synchronous>, transform_indices = @transform_6, window_bounds = array<i64: 4, 16, 32>}, {pipeline_mode = #tpu.pipeline_mode<synchronous>, transform_indices = @transform_7, window_bounds = array<i64: 4, 16, 32>}, {pipeline_mode = #tpu.pipeline_mode<synchronous>, transform_indices = @transform_8, window_bounds = array<i64: 4, 32, 16>}, {pipeline_mode = #tpu.pipeline_mode<synchronous>, transform_indices = @transform_9, window_bounds = array<i64: 1, 16>}, {pipeline_mode = #tpu.pipeline_mode<synchronous>, transform_indices = @transform_10, window_bounds = array<i64: 1, 16>}, {pipeline_mode = #tpu.pipeline_mode<synchronous>, transform_indices = @transform_11, window_bounds = array<i64: 1, 16>}, {transform_indices = @transform_12, window_bounds = array<i64: 1, 8, 16>}, {transform_indices = @transform_13, window_bounds = array<i64: 1, 4, 8, 8>}]} {
    %c0 = arith.constant 0 : index
    %c0_0 = arith.constant 0 : index
    %c0_1 = arith.constant 0 : index
    %0 = vector.load %arg2[%c0, %c0_0, %c0_1] : memref<1x8x16xf32, #tpu.memory_space<vmem>>, vector<1x8x16xf32>
    %1 = vector.shape_cast %0 : vector<1x8x16xf32> to vector<8x16xf32>
    %2 = arith.truncf %1 : vector<8x16xf32> to vector<8x16xbf16>
    %c0_2 = arith.constant 0 : index
    %c0_3 = arith.constant 0 : index
    %c0_4 = arith.constant 0 : index
    %3 = vector.load %arg3[%c0_2, %c0_3, %c0_4] : memref<1x8x16xf32, #tpu.memory_space<vmem>>, vector<1x8x16xf32>
    %4 = vector.shape_cast %3 : vector<1x8x16xf32> to vector<8x16xf32>
    %5 = arith.truncf %4 : vector<8x16xf32> to vector<8x16xbf16>
    %c0_5 = arith.constant 0 : index
    %c0_6 = arith.constant 0 : index
    %c0_7 = arith.constant 0 : index
    %6 = vector.load %arg4[%c0_5, %c0_6, %c0_7] : memref<1x8x16xf32, #tpu.memory_space<vmem>>, vector<1x8x16xf32>
    %7 = vector.shape_cast %6 : vector<1x8x16xf32> to vector<8x16xf32>
    %8 = arith.truncf %7 : vector<8x16xf32> to vector<8x16xbf16>
    %c0_8 = arith.constant 0 : index
    %c0_9 = arith.constant 0 : index
    %c0_10 = arith.constant 0 : index
    %9 = vector.load %arg5[%c0_8, %c0_9, %c0_10] : memref<1x8x8xbf16, #tpu.memory_space<vmem>>, vector<1x8x8xbf16>
    %10 = vector.shape_cast %9 : vector<1x8x8xbf16> to vector<8x8xbf16>
    %11 = arith.extf %10 : vector<8x8xbf16> to vector<8x8xf32>
    %cst = arith.constant 1.000000e+09 : f32
    %12 = vector.broadcast %cst : f32 to vector<8x8xf32>
    %13 = arith.mulf %11, %12 : vector<8x8xf32>
    %cst_11 = arith.constant 1.000000e+00 : f32
    %14 = vector.broadcast %cst_11 : f32 to vector<8x8xf32>
    %15 = arith.subf %13, %14 : vector<8x8xf32>
    %c0_12 = arith.constant 0 : index
    %c0_13 = arith.constant 0 : index
    %c0_14 = arith.constant 0 : index
    %16 = vector.load %arg7[%c0_12, %c0_13, %c0_14] : memref<4x16x32xbf16, #tpu.memory_space<vmem>>, vector<1x16x32xbf16>
    %17 = vector.shape_cast %16 : vector<1x16x32xbf16> to vector<16x32xbf16>
    %cst_15 = arith.constant dense<0.000000e+00> : vector<8x32xf32>
    %18 = tpu.matmul %2, %17, %cst_15 {dimension_numbers = #tpu.dot_dimension_numbers<[1], [0], [0], [1], [0, 0, 1, 1], [], []>} : vector<8x16xbf16>, vector<16x32xbf16>, vector<8x32xf32> -> vector<8x32xf32>
    %cst_16 = arith.constant 5.000000e-01 : f32
    %19 = vector.broadcast %cst_16 : f32 to vector<8x32xf32>
    %20 = arith.mulf %18, %19 : vector<8x32xf32>
    %21 = arith.truncf %20 : vector<8x32xf32> to vector<8x32xbf16>
    %c0_17 = arith.constant 0 : index
    %c0_18 = arith.constant 0 : index
    %c0_19 = arith.constant 0 : index
    %22 = vector.load %arg8[%c0_17, %c0_18, %c0_19] : memref<4x16x32xbf16, #tpu.memory_space<vmem>>, vector<1x16x32xbf16>
    %23 = vector.shape_cast %22 : vector<1x16x32xbf16> to vector<16x32xbf16>
    %cst_20 = arith.constant dense<0.000000e+00> : vector<8x32xf32>
    %24 = tpu.matmul %5, %23, %cst_20 {dimension_numbers = #tpu.dot_dimension_numbers<[1], [0], [0], [1], [0, 0, 1, 1], [], []>} : vector<8x16xbf16>, vector<16x32xbf16>, vector<8x32xf32> -> vector<8x32xf32>
    %25 = arith.truncf %24 : vector<8x32xf32> to vector<8x32xbf16>
    %c0_21 = arith.constant 0 : index
    %c0_22 = arith.constant 0 : index
    %c0_23 = arith.constant 0 : index
    %26 = vector.load %arg9[%c0_21, %c0_22, %c0_23] : memref<4x16x32xbf16, #tpu.memory_space<vmem>>, vector<1x16x32xbf16>
    %27 = vector.shape_cast %26 : vector<1x16x32xbf16> to vector<16x32xbf16>
    %cst_24 = arith.constant dense<0.000000e+00> : vector<8x32xf32>
    %28 = tpu.matmul %8, %27, %cst_24 {dimension_numbers = #tpu.dot_dimension_numbers<[1], [0], [0], [1], [0, 0, 1, 1], [], []>} : vector<8x16xbf16>, vector<16x32xbf16>, vector<8x32xf32> -> vector<8x32xf32>
    %29 = arith.truncf %28 : vector<8x32xf32> to vector<8x32xbf16>
    %cst_25 = arith.constant dense<0.000000e+00> : vector<8x8xf32>
    %30 = tpu.matmul %21, %25, %cst_25 {dimension_numbers = #tpu.dot_dimension_numbers<[1], [1], [0], [0], [0, 0, 1, 0], [], []>} : vector<8x32xbf16>, vector<8x32xbf16>, vector<8x8xf32> -> vector<8x8xf32>
    %31 = arith.addf %30, %15 : vector<8x8xf32>
    %c0_26 = arith.constant 0 : index
    %c0_27 = arith.constant 0 : index
    %c0_28 = arith.constant 0 : index
    %c0_29 = arith.constant 0 : index
    %32 = vector.load %arg6[%c0_26, %c0_27, %c0_28, %c0_29] : memref<1x4x8x8xbf16, #tpu.memory_space<vmem>>, vector<1x1x8x8xbf16>
    %33 = vector.shape_cast %32 : vector<1x1x8x8xbf16> to vector<8x8xbf16>
    %34 = arith.extf %33 : vector<8x8xbf16> to vector<8x8xf32>
    %35 = arith.addf %31, %34 : vector<8x8xf32>
    %cst_30 = arith.constant dense<0xFF800000> : vector<8xf32>
    %36 = vector.multi_reduction <maximumf>, %35, %cst_30 [1] : vector<8x8xf32> to vector<8xf32>
    %37 = vector.shape_cast %36 : vector<8xf32> to vector<8x1xf32>
    %38 = vector.broadcast %37 : vector<8x1xf32> to vector<8x8xf32>
    %39 = arith.subf %35, %38 : vector<8x8xf32>
    %40 = math.exp %39 : vector<8x8xf32>
    %cst_31 = arith.constant dense<0.000000e+00> : vector<8xf32>
    %41 = vector.multi_reduction <add>, %40, %cst_31 [1] : vector<8x8xf32> to vector<8xf32>
    %42 = vector.shape_cast %41 : vector<8xf32> to vector<8x1xf32>
    %43 = tpu.reciprocal %42 {approx = true} : vector<8x1xf32> -> vector<8x1xf32>
    %44 = vector.broadcast %43 : vector<8x1xf32> to vector<8x8xf32>
    %45 = arith.mulf %40, %44 : vector<8x8xf32>
    %46 = arith.truncf %45 : vector<8x8xf32> to vector<8x8xbf16>
    %c0_32 = arith.constant 0 : index
    %c0_33 = arith.constant 0 : index
    %c0_34 = arith.constant 0 : index
    %c0_35 = arith.constant 0 : index
    %47 = vector.load %arg15[%c0_32, %c0_33, %c0_34, %c0_35] : memref<1x4x8x8xbf16, #tpu.memory_space<vmem>>, vector<1x1x8x8xbf16>
    %48 = vector.shape_cast %47 : vector<1x1x8x8xbf16> to vector<8x8xbf16>
    %49 = vector.shape_cast %46 : vector<8x8xbf16> to vector<1x1x8x8xbf16>
    tpu.vector_store %arg15[%c0_32, %c0_33, %c0_34, %c0_35], %49 {strides = array<i32>} : memref<1x4x8x8xbf16, #tpu.memory_space<vmem>>, vector<1x1x8x8xbf16>,
    %50 = arith.truncf %45 : vector<8x8xf32> to vector<8x8xbf16>
    %cst_36 = arith.constant dense<0.000000e+00> : vector<8x32xf32>
    %51 = tpu.matmul %50, %29, %cst_36 {dimension_numbers = #tpu.dot_dimension_numbers<[1], [0], [0], [1], [0, 0, 1, 1], [], []>} : vector<8x8xbf16>, vector<8x32xbf16>, vector<8x32xf32> -> vector<8x32xf32>
    %52 = arith.truncf %51 : vector<8x32xf32> to vector<8x32xbf16>
    %c0_37 = arith.constant 0 : index
    %c0_38 = arith.constant 0 : index
    %c0_39 = arith.constant 0 : index
    %53 = vector.load %arg10[%c0_37, %c0_38, %c0_39] : memref<4x32x16xbf16, #tpu.memory_space<vmem>>, vector<1x32x16xbf16>
    %54 = vector.shape_cast %53 : vector<1x32x16xbf16> to vector<32x16xbf16>
    %cst_40 = arith.constant dense<0.000000e+00> : vector<8x16xf32>
    %55 = tpu.matmul %52, %54, %cst_40 {dimension_numbers = #tpu.dot_dimension_numbers<[1], [0], [0], [1], [0, 0, 1, 1], [], []>} : vector<8x32xbf16>, vector<32x16xbf16>, vector<8x16xf32> -> vector<8x16xf32>
    %c1 = arith.constant 1 : index
    %c0_41 = arith.constant 0 : index
    %c0_42 = arith.constant 0 : index
    %56 = vector.load %arg7[%c1, %c0_41, %c0_42] : memref<4x16x32xbf16, #tpu.memory_space<vmem>>, vector<1x16x32xbf16>
    %57 = vector.shape_cast %56 : vector<1x16x32xbf16> to vector<16x32xbf16>
    %cst_43 = arith.constant dense<0.000000e+00> : vector<8x32xf32>
    %58 = tpu.matmul %2, %57, %cst_43 {dimension_numbers = #tpu.dot_dimension_numbers<[1], [0], [0], [1], [0, 0, 1, 1], [], []>} : vector<8x16xbf16>, vector<16x32xbf16>, vector<8x32xf32> -> vector<8x32xf32>
    %cst_44 = arith.constant 5.000000e-01 : f32
    %59 = vector.broadcast %cst_44 : f32 to vector<8x32xf32>
    %60 = arith.mulf %58, %59 : vector<8x32xf32>
    %61 = arith.truncf %60 : vector<8x32xf32> to vector<8x32xbf16>
    %c1_45 = arith.constant 1 : index
    %c0_46 = arith.constant 0 : index
    %c0_47 = arith.constant 0 : index
    %62 = vector.load %arg8[%c1_45, %c0_46, %c0_47] : memref<4x16x32xbf16, #tpu.memory_space<vmem>>, vector<1x16x32xbf16>
    %63 = vector.shape_cast %62 : vector<1x16x32xbf16> to vector<16x32xbf16>
    %cst_48 = arith.constant dense<0.000000e+00> : vector<8x32xf32>
    %64 = tpu.matmul %5, %63, %cst_48 {dimension_numbers = #tpu.dot_dimension_numbers<[1], [0], [0], [1], [0, 0, 1, 1], [], []>} : vector<8x16xbf16>, vector<16x32xbf16>, vector<8x32xf32> -> vector<8x32xf32>
    %65 = arith.truncf %64 : vector<8x32xf32> to vector<8x32xbf16>
    %c1_49 = arith.constant 1 : index
    %c0_50 = arith.constant 0 : index
    %c0_51 = arith.constant 0 : index
    %66 = vector.load %arg9[%c1_49, %c0_50, %c0_51] : memref<4x16x32xbf16, #tpu.memory_space<vmem>>, vector<1x16x32xbf16>
    %67 = vector.shape_cast %66 : vector<1x16x32xbf16> to vector<16x32xbf16>
    %cst_52 = arith.constant dense<0.000000e+00> : vector<8x32xf32>
    %68 = tpu.matmul %8, %67, %cst_52 {dimension_numbers = #tpu.dot_dimension_numbers<[1], [0], [0], [1], [0, 0, 1, 1], [], []>} : vector<8x16xbf16>, vector<16x32xbf16>, vector<8x32xf32> -> vector<8x32xf32>
    %69 = arith.truncf %68 : vector<8x32xf32> to vector<8x32xbf16>
    %cst_53 = arith.constant dense<0.000000e+00> : vector<8x8xf32>
    %70 = tpu.matmul %61, %65, %cst_53 {dimension_numbers = #tpu.dot_dimension_numbers<[1], [1], [0], [0], [0, 0, 1, 0], [], []>} : vector<8x32xbf16>, vector<8x32xbf16>, vector<8x8xf32> -> vector<8x8xf32>
    %71 = arith.addf %70, %15 : vector<8x8xf32>
    %c0_54 = arith.constant 0 : index
    %c1_55 = arith.constant 1 : index
    %c0_56 = arith.constant 0 : index
    %c0_57 = arith.constant 0 : index
    %72 = vector.load %arg6[%c0_54, %c1_55, %c0_56, %c0_57] : memref<1x4x8x8xbf16, #tpu.memory_space<vmem>>, vector<1x1x8x8xbf16>
    %73 = vector.shape_cast %72 : vector<1x1x8x8xbf16> to vector<8x8xbf16>
    %74 = arith.extf %73 : vector<8x8xbf16> to vector<8x8xf32>
    %75 = arith.addf %71, %74 : vector<8x8xf32>
    %cst_58 = arith.constant dense<0xFF800000> : vector<8xf32>
    %76 = vector.multi_reduction <maximumf>, %75, %cst_58 [1] : vector<8x8xf32> to vector<8xf32>
    %77 = vector.shape_cast %76 : vector<8xf32> to vector<8x1xf32>
    %78 = vector.broadcast %77 : vector<8x1xf32> to vector<8x8xf32>
    %79 = arith.subf %75, %78 : vector<8x8xf32>
    %80 = math.exp %79 : vector<8x8xf32>
    %cst_59 = arith.constant dense<0.000000e+00> : vector<8xf32>
    %81 = vector.multi_reduction <add>, %80, %cst_59 [1] : vector<8x8xf32> to vector<8xf32>
    %82 = vector.shape_cast %81 : vector<8xf32> to vector<8x1xf32>
    %83 = tpu.reciprocal %82 {approx = true} : vector<8x1xf32> -> vector<8x1xf32>
    %84 = vector.broadcast %83 : vector<8x1xf32> to vector<8x8xf32>
    %85 = arith.mulf %80, %84 : vector<8x8xf32>
    %86 = arith.truncf %85 : vector<8x8xf32> to vector<8x8xbf16>
    %c0_60 = arith.constant 0 : index
    %c1_61 = arith.constant 1 : index
    %c0_62 = arith.constant 0 : index
    %c0_63 = arith.constant 0 : index
    %87 = vector.load %arg15[%c0_60, %c1_61, %c0_62, %c0_63] : memref<1x4x8x8xbf16, #tpu.memory_space<vmem>>, vector<1x1x8x8xbf16>
    %88 = vector.shape_cast %87 : vector<1x1x8x8xbf16> to vector<8x8xbf16>
    %89 = vector.shape_cast %86 : vector<8x8xbf16> to vector<1x1x8x8xbf16>
    tpu.vector_store %arg15[%c0_60, %c1_61, %c0_62, %c0_63], %89 {strides = array<i32>} : memref<1x4x8x8xbf16, #tpu.memory_space<vmem>>, vector<1x1x8x8xbf16>,
    %90 = arith.truncf %85 : vector<8x8xf32> to vector<8x8xbf16>
    %cst_64 = arith.constant dense<0.000000e+00> : vector<8x32xf32>
    %91 = tpu.matmul %90, %69, %cst_64 {dimension_numbers = #tpu.dot_dimension_numbers<[1], [0], [0], [1], [0, 0, 1, 1], [], []>} : vector<8x8xbf16>, vector<8x32xbf16>, vector<8x32xf32> -> vector<8x32xf32>
    %92 = arith.truncf %91 : vector<8x32xf32> to vector<8x32xbf16>
    %c1_65 = arith.constant 1 : index
    %c0_66 = arith.constant 0 : index
    %c0_67 = arith.constant 0 : index
    %93 = vector.load %arg10[%c1_65, %c0_66, %c0_67] : memref<4x32x16xbf16, #tpu.memory_space<vmem>>, vector<1x32x16xbf16>
    %94 = vector.shape_cast %93 : vector<1x32x16xbf16> to vector<32x16xbf16>
    %cst_68 = arith.constant dense<0.000000e+00> : vector<8x16xf32>
    %95 = tpu.matmul %92, %94, %cst_68 {dimension_numbers = #tpu.dot_dimension_numbers<[1], [0], [0], [1], [0, 0, 1, 1], [], []>} : vector<8x32xbf16>, vector<32x16xbf16>, vector<8x16xf32> -> vector<8x16xf32>
    %96 = arith.addf %55, %95 : vector<8x16xf32>
    %c2 = arith.constant 2 : index
    %c0_69 = arith.constant 0 : index
    %c0_70 = arith.constant 0 : index
    %97 = vector.load %arg7[%c2, %c0_69, %c0_70] : memref<4x16x32xbf16, #tpu.memory_space<vmem>>, vector<1x16x32xbf16>
    %98 = vector.shape_cast %97 : vector<1x16x32xbf16> to vector<16x32xbf16>
    %cst_71 = arith.constant dense<0.000000e+00> : vector<8x32xf32>
    %99 = tpu.matmul %2, %98, %cst_71 {dimension_numbers = #tpu.dot_dimension_numbers<[1], [0], [0], [1], [0, 0, 1, 1], [], []>} : vector<8x16xbf16>, vector<16x32xbf16>, vector<8x32xf32> -> vector<8x32xf32>
    %cst_72 = arith.constant 5.000000e-01 : f32
    %100 = vector.broadcast %cst_72 : f32 to vector<8x32xf32>
    %101 = arith.mulf %99, %100 : vector<8x32xf32>
    %102 = arith.truncf %101 : vector<8x32xf32> to vector<8x32xbf16>
    %c2_73 = arith.constant 2 : index
    %c0_74 = arith.constant 0 : index
    %c0_75 = arith.constant 0 : index
    %103 = vector.load %arg8[%c2_73, %c0_74, %c0_75] : memref<4x16x32xbf16, #tpu.memory_space<vmem>>, vector<1x16x32xbf16>
    %104 = vector.shape_cast %103 : vector<1x16x32xbf16> to vector<16x32xbf16>
    %cst_76 = arith.constant dense<0.000000e+00> : vector<8x32xf32>
    %105 = tpu.matmul %5, %104, %cst_76 {dimension_numbers = #tpu.dot_dimension_numbers<[1], [0], [0], [1], [0, 0, 1, 1], [], []>} : vector<8x16xbf16>, vector<16x32xbf16>, vector<8x32xf32> -> vector<8x32xf32>
    %106 = arith.truncf %105 : vector<8x32xf32> to vector<8x32xbf16>
    %c2_77 = arith.constant 2 : index
    %c0_78 = arith.constant 0 : index
    %c0_79 = arith.constant 0 : index
    %107 = vector.load %arg9[%c2_77, %c0_78, %c0_79] : memref<4x16x32xbf16, #tpu.memory_space<vmem>>, vector<1x16x32xbf16>
    %108 = vector.shape_cast %107 : vector<1x16x32xbf16> to vector<16x32xbf16>
    %cst_80 = arith.constant dense<0.000000e+00> : vector<8x32xf32>
    %109 = tpu.matmul %8, %108, %cst_80 {dimension_numbers = #tpu.dot_dimension_numbers<[1], [0], [0], [1], [0, 0, 1, 1], [], []>} : vector<8x16xbf16>, vector<16x32xbf16>, vector<8x32xf32> -> vector<8x32xf32>
    %110 = arith.truncf %109 : vector<8x32xf32> to vector<8x32xbf16>
    %cst_81 = arith.constant dense<0.000000e+00> : vector<8x8xf32>
    %111 = tpu.matmul %102, %106, %cst_81 {dimension_numbers = #tpu.dot_dimension_numbers<[1], [1], [0], [0], [0, 0, 1, 0], [], []>} : vector<8x32xbf16>, vector<8x32xbf16>, vector<8x8xf32> -> vector<8x8xf32>
    %112 = arith.addf %111, %15 : vector<8x8xf32>
    %c0_82 = arith.constant 0 : index
    %c2_83 = arith.constant 2 : index
    %c0_84 = arith.constant 0 : index
    %c0_85 = arith.constant 0 : index
    %113 = vector.load %arg6[%c0_82, %c2_83, %c0_84, %c0_85] : memref<1x4x8x8xbf16, #tpu.memory_space<vmem>>, vector<1x1x8x8xbf16>
    %114 = vector.shape_cast %113 : vector<1x1x8x8xbf16> to vector<8x8xbf16>
    %115 = arith.extf %114 : vector<8x8xbf16> to vector<8x8xf32>
    %116 = arith.addf %112, %115 : vector<8x8xf32>
    %cst_86 = arith.constant dense<0xFF800000> : vector<8xf32>
    %117 = vector.multi_reduction <maximumf>, %116, %cst_86 [1] : vector<8x8xf32> to vector<8xf32>
    %118 = vector.shape_cast %117 : vector<8xf32> to vector<8x1xf32>
    %119 = vector.broadcast %118 : vector<8x1xf32> to vector<8x8xf32>
    %120 = arith.subf %116, %119 : vector<8x8xf32>
    %121 = math.exp %120 : vector<8x8xf32>
    %cst_87 = arith.constant dense<0.000000e+00> : vector<8xf32>
    %122 = vector.multi_reduction <add>, %121, %cst_87 [1] : vector<8x8xf32> to vector<8xf32>
    %123 = vector.shape_cast %122 : vector<8xf32> to vector<8x1xf32>
    %124 = tpu.reciprocal %123 {approx = true} : vector<8x1xf32> -> vector<8x1xf32>
    %125 = vector.broadcast %124 : vector<8x1xf32> to vector<8x8xf32>
    %126 = arith.mulf %121, %125 : vector<8x8xf32>
    %127 = arith.truncf %126 : vector<8x8xf32> to vector<8x8xbf16>
    %c0_88 = arith.constant 0 : index
    %c2_89 = arith.constant 2 : index
    %c0_90 = arith.constant 0 : index
    %c0_91 = arith.constant 0 : index
    %128 = vector.load %arg15[%c0_88, %c2_89, %c0_90, %c0_91] : memref<1x4x8x8xbf16, #tpu.memory_space<vmem>>, vector<1x1x8x8xbf16>
    %129 = vector.shape_cast %128 : vector<1x1x8x8xbf16> to vector<8x8xbf16>
    %130 = vector.shape_cast %127 : vector<8x8xbf16> to vector<1x1x8x8xbf16>
    tpu.vector_store %arg15[%c0_88, %c2_89, %c0_90, %c0_91], %130 {strides = array<i32>} : memref<1x4x8x8xbf16, #tpu.memory_space<vmem>>, vector<1x1x8x8xbf16>,
    %131 = arith.truncf %126 : vector<8x8xf32> to vector<8x8xbf16>
    %cst_92 = arith.constant dense<0.000000e+00> : vector<8x32xf32>
    %132 = tpu.matmul %131, %110, %cst_92 {dimension_numbers = #tpu.dot_dimension_numbers<[1], [0], [0], [1], [0, 0, 1, 1], [], []>} : vector<8x8xbf16>, vector<8x32xbf16>, vector<8x32xf32> -> vector<8x32xf32>
    %133 = arith.truncf %132 : vector<8x32xf32> to vector<8x32xbf16>
    %c2_93 = arith.constant 2 : index
    %c0_94 = arith.constant 0 : index
    %c0_95 = arith.constant 0 : index
    %134 = vector.load %arg10[%c2_93, %c0_94, %c0_95] : memref<4x32x16xbf16, #tpu.memory_space<vmem>>, vector<1x32x16xbf16>
    %135 = vector.shape_cast %134 : vector<1x32x16xbf16> to vector<32x16xbf16>
    %cst_96 = arith.constant dense<0.000000e+00> : vector<8x16xf32>
    %136 = tpu.matmul %133, %135, %cst_96 {dimension_numbers = #tpu.dot_dimension_numbers<[1], [0], [0], [1], [0, 0, 1, 1], [], []>} : vector<8x32xbf16>, vector<32x16xbf16>, vector<8x16xf32> -> vector<8x16xf32>
    %137 = arith.addf %96, %136 : vector<8x16xf32>
    %c3 = arith.constant 3 : index
    %c0_97 = arith.constant 0 : index
    %c0_98 = arith.constant 0 : index
    %138 = vector.load %arg7[%c3, %c0_97, %c0_98] : memref<4x16x32xbf16, #tpu.memory_space<vmem>>, vector<1x16x32xbf16>
    %139 = vector.shape_cast %138 : vector<1x16x32xbf16> to vector<16x32xbf16>
    %cst_99 = arith.constant dense<0.000000e+00> : vector<8x32xf32>
    %140 = tpu.matmul %2, %139, %cst_99 {dimension_numbers = #tpu.dot_dimension_numbers<[1], [0], [0], [1], [0, 0, 1, 1], [], []>} : vector<8x16xbf16>, vector<16x32xbf16>, vector<8x32xf32> -> vector<8x32xf32>
    %cst_100 = arith.constant 5.000000e-01 : f32
    %141 = vector.broadcast %cst_100 : f32 to vector<8x32xf32>
    %142 = arith.mulf %140, %141 : vector<8x32xf32>
    %143 = arith.truncf %142 : vector<8x32xf32> to vector<8x32xbf16>
    %c3_101 = arith.constant 3 : index
    %c0_102 = arith.constant 0 : index
    %c0_103 = arith.constant 0 : index
    %144 = vector.load %arg8[%c3_101, %c0_102, %c0_103] : memref<4x16x32xbf16, #tpu.memory_space<vmem>>, vector<1x16x32xbf16>
    %145 = vector.shape_cast %144 : vector<1x16x32xbf16> to vector<16x32xbf16>
    %cst_104 = arith.constant dense<0.000000e+00> : vector<8x32xf32>
    %146 = tpu.matmul %5, %145, %cst_104 {dimension_numbers = #tpu.dot_dimension_numbers<[1], [0], [0], [1], [0, 0, 1, 1], [], []>} : vector<8x16xbf16>, vector<16x32xbf16>, vector<8x32xf32> -> vector<8x32xf32>
    %147 = arith.truncf %146 : vector<8x32xf32> to vector<8x32xbf16>
    %c3_105 = arith.constant 3 : index
    %c0_106 = arith.constant 0 : index
    %c0_107 = arith.constant 0 : index
    %148 = vector.load %arg9[%c3_105, %c0_106, %c0_107] : memref<4x16x32xbf16, #tpu.memory_space<vmem>>, vector<1x16x32xbf16>
    %149 = vector.shape_cast %148 : vector<1x16x32xbf16> to vector<16x32xbf16>
    %cst_108 = arith.constant dense<0.000000e+00> : vector<8x32xf32>
    %150 = tpu.matmul %8, %149, %cst_108 {dimension_numbers = #tpu.dot_dimension_numbers<[1], [0], [0], [1], [0, 0, 1, 1], [], []>} : vector<8x16xbf16>, vector<16x32xbf16>, vector<8x32xf32> -> vector<8x32xf32>
    %151 = arith.truncf %150 : vector<8x32xf32> to vector<8x32xbf16>
    %cst_109 = arith.constant dense<0.000000e+00> : vector<8x8xf32>
    %152 = tpu.matmul %143, %147, %cst_109 {dimension_numbers = #tpu.dot_dimension_numbers<[1], [1], [0], [0], [0, 0, 1, 0], [], []>} : vector<8x32xbf16>, vector<8x32xbf16>, vector<8x8xf32> -> vector<8x8xf32>
    %153 = arith.addf %152, %15 : vector<8x8xf32>
    %c0_110 = arith.constant 0 : index
    %c3_111 = arith.constant 3 : index
    %c0_112 = arith.constant 0 : index
    %c0_113 = arith.constant 0 : index
    %154 = vector.load %arg6[%c0_110, %c3_111, %c0_112, %c0_113] : memref<1x4x8x8xbf16, #tpu.memory_space<vmem>>, vector<1x1x8x8xbf16>
    %155 = vector.shape_cast %154 : vector<1x1x8x8xbf16> to vector<8x8xbf16>
    %156 = arith.extf %155 : vector<8x8xbf16> to vector<8x8xf32>
    %157 = arith.addf %153, %156 : vector<8x8xf32>
    %cst_114 = arith.constant dense<0xFF800000> : vector<8xf32>
    %158 = vector.multi_reduction <maximumf>, %157, %cst_114 [1] : vector<8x8xf32> to vector<8xf32>
    %159 = vector.shape_cast %158 : vector<8xf32> to vector<8x1xf32>
    %160 = vector.broadcast %159 : vector<8x1xf32> to vector<8x8xf32>
    %161 = arith.subf %157, %160 : vector<8x8xf32>
    %162 = math.exp %161 : vector<8x8xf32>
    %cst_115 = arith.constant dense<0.000000e+00> : vector<8xf32>
    %163 = vector.multi_reduction <add>, %162, %cst_115 [1] : vector<8x8xf32> to vector<8xf32>
    %164 = vector.shape_cast %163 : vector<8xf32> to vector<8x1xf32>
    %165 = tpu.reciprocal %164 {approx = true} : vector<8x1xf32> -> vector<8x1xf32>
    %166 = vector.broadcast %165 : vector<8x1xf32> to vector<8x8xf32>
    %167 = arith.mulf %162, %166 : vector<8x8xf32>
    %168 = arith.truncf %167 : vector<8x8xf32> to vector<8x8xbf16>
    %c0_116 = arith.constant 0 : index
    %c3_117 = arith.constant 3 : index
    %c0_118 = arith.constant 0 : index
    %c0_119 = arith.constant 0 : index
    %169 = vector.load %arg15[%c0_116, %c3_117, %c0_118, %c0_119] : memref<1x4x8x8xbf16, #tpu.memory_space<vmem>>, vector<1x1x8x8xbf16>
    %170 = vector.shape_cast %169 : vector<1x1x8x8xbf16> to vector<8x8xbf16>
    %171 = vector.shape_cast %168 : vector<8x8xbf16> to vector<1x1x8x8xbf16>
    tpu.vector_store %arg15[%c0_116, %c3_117, %c0_118, %c0_119], %171 {strides = array<i32>} : memref<1x4x8x8xbf16, #tpu.memory_space<vmem>>, vector<1x1x8x8xbf16>,
    %172 = arith.truncf %167 : vector<8x8xf32> to vector<8x8xbf16>
    %cst_120 = arith.constant dense<0.000000e+00> : vector<8x32xf32>
    %173 = tpu.matmul %172, %151, %cst_120 {dimension_numbers = #tpu.dot_dimension_numbers<[1], [0], [0], [1], [0, 0, 1, 1], [], []>} : vector<8x8xbf16>, vector<8x32xbf16>, vector<8x32xf32> -> vector<8x32xf32>
    %174 = arith.truncf %173 : vector<8x32xf32> to vector<8x32xbf16>
    %c3_121 = arith.constant 3 : index
    %c0_122 = arith.constant 0 : index
    %c0_123 = arith.constant 0 : index
    %175 = vector.load %arg10[%c3_121, %c0_122, %c0_123] : memref<4x32x16xbf16, #tpu.memory_space<vmem>>, vector<1x32x16xbf16>
    %176 = vector.shape_cast %175 : vector<1x32x16xbf16> to vector<32x16xbf16>
    %cst_124 = arith.constant dense<0.000000e+00> : vector<8x16xf32>
    %177 = tpu.matmul %174, %176, %cst_124 {dimension_numbers = #tpu.dot_dimension_numbers<[1], [0], [0], [1], [0, 0, 1, 1], [], []>} : vector<8x32xbf16>, vector<32x16xbf16>, vector<8x16xf32> -> vector<8x16xf32>
    %178 = arith.addf %137, %177 : vector<8x16xf32>
    %c0_125 = arith.constant 0 : index
    %c0_126 = arith.constant 0 : index
    %179 = vector.load %arg11[%c0_125, %c0_126] : memref<1x16xf32, #tpu.memory_space<vmem>>, vector<1x16xf32>
    %180 = vector.broadcast %179 : vector<1x16xf32> to vector<8x16xf32>
    %181 = arith.addf %178, %180 : vector<8x16xf32>
    %cst_127 = arith.constant dense<0.000000e+00> : vector<8xf32>
    %182 = vector.multi_reduction <add>, %181, %cst_127 [1] : vector<8x16xf32> to vector<8xf32>
    %183 = vector.shape_cast %182 : vector<8xf32> to vector<8x1xf32>
    %cst_128 = arith.constant 1.600000e+01 : f32
    %184 = vector.broadcast %cst_128 : f32 to vector<8x1xf32>
    %185 = arith.divf %183, %184 : vector<8x1xf32>
    %186 = vector.broadcast %185 : vector<8x1xf32> to vector<8x16xf32>
    %187 = arith.subf %181, %186 : vector<8x16xf32>
    %188 = arith.mulf %187, %187 : vector<8x16xf32>
    %cst_129 = arith.constant dense<0.000000e+00> : vector<8xf32>
    %189 = vector.multi_reduction <add>, %188, %cst_129 [1] : vector<8x16xf32> to vector<8xf32>
    %190 = vector.shape_cast %189 : vector<8xf32> to vector<8x1xf32>
    %cst_130 = arith.constant 1.600000e+01 : f32
    %191 = vector.broadcast %cst_130 : f32 to vector<8x1xf32>
    %192 = arith.divf %190, %191 : vector<8x1xf32>
    %193 = vector.broadcast %185 : vector<8x1xf32> to vector<8x16xf32>
    %194 = arith.subf %181, %193 : vector<8x16xf32>
    %cst_131 = arith.constant 9.99999974E-6 : f32
    %195 = vector.broadcast %cst_131 : f32 to vector<8x1xf32>
    %196 = arith.addf %192, %195 : vector<8x1xf32>
    %197 = math.rsqrt %196 : vector<8x1xf32>
    %198 = vector.broadcast %197 : vector<8x1xf32> to vector<8x16xf32>
    %199 = arith.mulf %194, %198 : vector<8x16xf32>
    %c0_132 = arith.constant 0 : index
    %c0_133 = arith.constant 0 : index
    %200 = vector.load %arg12[%c0_132, %c0_133] : memref<1x16xf32, #tpu.memory_space<vmem>>, vector<1x16xf32>
    %201 = vector.broadcast %200 : vector<1x16xf32> to vector<8x16xf32>
    %202 = arith.mulf %199, %201 : vector<8x16xf32>
    %c0_134 = arith.constant 0 : index
    %c0_135 = arith.constant 0 : index
    %203 = vector.load %arg13[%c0_134, %c0_135] : memref<1x16xf32, #tpu.memory_space<vmem>>, vector<1x16xf32>
    %204 = vector.broadcast %203 : vector<1x16xf32> to vector<8x16xf32>
    %205 = arith.addf %202, %204 : vector<8x16xf32>
    %c0_136 = arith.constant 0 : index
    %c0_137 = arith.constant 0 : index
    %c0_138 = arith.constant 0 : index
    %206 = vector.load %arg14[%c0_136, %c0_137, %c0_138] : memref<1x8x16xf32, #tpu.memory_space<vmem>>, vector<1x8x16xf32>
    %207 = vector.shape_cast %206 : vector<1x8x16xf32> to vector<8x16xf32>
    %208 = vector.shape_cast %205 : vector<8x16xf32> to vector<1x8x16xf32>
    tpu.vector_store %arg14[%c0_136, %c0_137, %c0_138], %208 {strides = array<i32>} : memref<1x8x16xf32, #tpu.memory_space<vmem>>, vector<1x8x16xf32>,
    return
  }
  func.func @transform_0(%arg0: i32, %arg1: i32) -> (i32, i32, i32) {
    %c0_i32 = arith.constant 0 : i32
    %c0_i32_0 = arith.constant 0 : i32
    return %arg0, %arg1, %c0_i32 : i32, i32, i32
  }
  func.func @transform_1(%arg0: i32, %arg1: i32) -> (i32, i32, i32) {
    %c0_i32 = arith.constant 0 : i32
    %c0_i32_0 = arith.constant 0 : i32
    %c0_i32_1 = arith.constant 0 : i32
    return %arg0, %c0_i32, %c0_i32_0 : i32, i32, i32
  }
  func.func @transform_2(%arg0: i32, %arg1: i32) -> (i32, i32, i32) {
    %c0_i32 = arith.constant 0 : i32
    %c0_i32_0 = arith.constant 0 : i32
    %c0_i32_1 = arith.constant 0 : i32
    return %arg0, %c0_i32, %c0_i32_0 : i32, i32, i32
  }
  func.func @transform_3(%arg0: i32, %arg1: i32) -> (i32, i32, i32) {
    %c0_i32 = arith.constant 0 : i32
    %c0_i32_0 = arith.constant 0 : i32
    return %arg0, %arg1, %c0_i32 : i32, i32, i32
  }
  func.func @transform_4(%arg0: i32, %arg1: i32) -> (i32, i32, i32, i32) {
    %c0_i32 = arith.constant 0 : i32
    %c0_i32_0 = arith.constant 0 : i32
    %c0_i32_1 = arith.constant 0 : i32
    return %arg0, %c0_i32, %arg1, %c0_i32_0 : i32, i32, i32, i32
  }
  func.func @transform_5(%arg0: i32, %arg1: i32) -> (i32, i32, i32) {
    %c0_i32 = arith.constant 0 : i32
    %c0_i32_0 = arith.constant 0 : i32
    %c0_i32_1 = arith.constant 0 : i32
    %c0_i32_2 = arith.constant 0 : i32
    return %c0_i32, %c0_i32_0, %c0_i32_1 : i32, i32, i32
  }
  func.func @transform_6(%arg0: i32, %arg1: i32) -> (i32, i32, i32) {
    %c0_i32 = arith.constant 0 : i32
    %c0_i32_0 = arith.constant 0 : i32
    %c0_i32_1 = arith.constant 0 : i32
    %c0_i32_2 = arith.constant 0 : i32
    return %c0_i32, %c0_i32_0, %c0_i32_1 : i32, i32, i32
  }
  func.func @transform_7(%arg0: i32, %arg1: i32) -> (i32, i32, i32) {
    %c0_i32 = arith.constant 0 : i32
    %c0_i32_0 = arith.constant 0 : i32
    %c0_i32_1 = arith.constant 0 : i32
    %c0_i32_2 = arith.constant 0 : i32
    return %c0_i32, %c0_i32_0, %c0_i32_1 : i32, i32, i32
  }
  func.func @transform_8(%arg0: i32, %arg1: i32) -> (i32, i32, i32) {
    %c0_i32 = arith.constant 0 : i32
    %c0_i32_0 = arith.constant 0 : i32
    %c0_i32_1 = arith.constant 0 : i32
    %c0_i32_2 = arith.constant 0 : i32
    return %c0_i32, %c0_i32_0, %c0_i32_1 : i32, i32, i32
  }
  func.func @transform_9(%arg0: i32, %arg1: i32) -> (i32, i32) {
    %c0_i32 = arith.constant 0 : i32
    %c0_i32_0 = arith.constant 0 : i32
    %c0_i32_1 = arith.constant 0 : i32
    return %c0_i32, %c0_i32_0 : i32, i32
  }
  func.func @transform_10(%arg0: i32, %arg1: i32) -> (i32, i32) {
    %c0_i32 = arith.constant 0 : i32
    %c0_i32_0 = arith.constant 0 : i32
    %c0_i32_1 = arith.constant 0 : i32
    return %c0_i32, %c0_i32_0 : i32, i32
  }
  func.func @transform_11(%arg0: i32, %arg1: i32) -> (i32, i32) {
    %c0_i32 = arith.constant 0 : i32
    %c0_i32_0 = arith.constant 0 : i32
    %c0_i32_1 = arith.constant 0 : i32
    return %c0_i32, %c0_i32_0 : i32, i32
  }
  func.func @transform_12(%arg0: i32, %arg1: i32) -> (i32, i32, i32) {
    %c0_i32 = arith.constant 0 : i32
    %c0_i32_0 = arith.constant 0 : i32
    return %arg0, %arg1, %c0_i32 : i32, i32, i32
  }
  func.func @transform_13(%arg0: i32, %arg1: i32) -> (i32, i32, i32, i32) {
    %c0_i32 = arith.constant 0 : i32
    %c0_i32_0 = arith.constant 0 : i32
    %c0_i32_1 = arith.constant 0 : i32
    return %arg0, %c0_i32, %arg1, %c0_i32_0 : i32, i32, i32, i32
  }
}

</mosaic_0001>

<llo_original>
// kernel: tpu_custom_call.1
$region0: #{tpu_custom_call.1}
  #allocation0 [shape = 'u32[]', space=smem, size = 0x4, offset = 0x4, fixed_abs, tag = 'smem constant byte address 0x4 - core index']
  #allocation1 [shape = 'u32[144,128]{1,0:T(1,128)}', space=vmem, size = 0x12000, scoped, tag = 'internal scratch']
  %s0 = inlined_call_operand.hbm [shape: f32[2,8,16], index: 0, kind: input, shape index: {}]
  %s1 = inlined_call_operand.hbm [shape: f32[2,8,16], index: 1, kind: input, shape index: {}]
  %s2 = inlined_call_operand.hbm [shape: f32[2,8,16], index: 2, kind: input, shape index: {}]
  %s3 = inlined_call_operand.hbm [shape: bf16[2,8,8], index: 3, kind: input, shape index: {}]
  %s4 = inlined_call_operand.hbm [shape: bf16[2,4,8,8], index: 4, kind: input, shape index: {}]
  %s5 = inlined_call_operand.hbm [shape: bf16[4,16,32], index: 5, kind: input, shape index: {}]
  %s6 = inlined_call_operand.hbm [shape: bf16[4,16,32], index: 6, kind: input, shape index: {}]
  %s7 = inlined_call_operand.hbm [shape: bf16[4,16,32], index: 7, kind: input, shape index: {}]
  %s8 = inlined_call_operand.hbm [shape: bf16[4,32,16], index: 8, kind: input, shape index: {}]
  %s9 = inlined_call_operand.hbm [shape: f32[1,16], index: 9, kind: input, shape index: {}]
  %s10 = inlined_call_operand.hbm [shape: f32[1,16], index: 10, kind: input, shape index: {}]
  %s11 = inlined_call_operand.hbm [shape: f32[1,16], index: 11, kind: input, shape index: {}]
  %s12 = inlined_call_operand.hbm [shape: f32[2,8,16], index: 12, kind: output, shape index: {0}]
  %s13 = inlined_call_operand.hbm [shape: bf16[2,4,8,8], index: 13, kind: output, shape index: {1}]
  %14 = xla_tuple %s12, %s13
  %s15 = sld [smem:[#allocation0]]
  $region137: #{tpu_custom_call.1} parent=0
    _
  %s17 = ssub.s32 1, %s15
  %s18 = scalar_select 0, %s17, %s15
  $region1: #{tpu_custom_call.1} parent=0
    #allocation2 [shape = 'u8[8192]{0}', space=vmem, size = 0x2000, scoped, tag = 'input window, operand 0']
    #allocation3 [shape = 's32[2]{0}', space=sflag, size = 0x8, scoped, tag = 'scoped memory for tpu_custom_call.1']
    #allocation4 [shape = 's32[2]{0}', space=sflag, size = 0x8, scoped, tag = 'scoped memory for tpu_custom_call.1']
    #allocation5 [shape = 'u8[8192]{0}', space=vmem, size = 0x2000, scoped, tag = 'input window, operand 1']
    #allocation6 [shape = 's32[2]{0}', space=sflag, size = 0x8, scoped, tag = 'scoped memory for tpu_custom_call.1']
    #allocation7 [shape = 'u8[8192]{0}', space=vmem, size = 0x2000, scoped, tag = 'input window, operand 2']
    #allocation8 [shape = 'u8[4096]{0}', space=vmem, size = 0x1000, scoped, tag = 'input window, operand 3']
    #allocation9 [shape = 's32[2]{0}', space=sflag, size = 0x8, scoped, tag = 'scoped memory for tpu_custom_call.1']
    #allocation10 [shape = 'u8[16384]{0}', space=vmem, size = 0x4000, scoped, tag = 'input window, operand 4']
    #allocation11 [shape = 'u8[16384]{0}', space=vmem, size = 0x4000, scoped, tag = 'input window, operand 5, single buffered']
    #allocation12 [shape = 's32[1]{0}', space=sflag, size = 0x4, scoped, tag = 'scoped memory for tpu_custom_call.1']
    #allocation13 [shape = 'u8[16384]{0}', space=vmem, size = 0x4000, scoped, tag = 'input window, operand 6, single buffered']
    #allocation14 [shape = 'u8[16384]{0}', space=vmem, size = 0x4000, scoped, tag = 'input window, operand 7, single buffered']
    #allocation15 [shape = 's32[1]{0}', space=sflag, size = 0x4, scoped, tag = 'scoped memory for tpu_custom_call.1']
    #allocation16 [shape = 'u8[32768]{0}', space=vmem, size = 0x8000, scoped, tag = 'input window, operand 8, single buffered']
    #allocation17 [shape = 'u8[512]{0}', space=vmem, size = 0x400, scoped, tag = 'input window, operand 9, single buffered']
    #allocation18 [shape = 's32[1]{0}', space=sflag, size = 0x4, scoped, tag = 'scoped memory for tpu_custom_call.1']
    #allocation19 [shape = 'u8[512]{0}', space=vmem, size = 0x400, scoped, tag = 'input window, operand 10, single buffered']
    #allocation20 [shape = 'u8[512]{0}', space=vmem, size = 0x400, scoped, tag = 'input window, operand 11, single buffered']
    #allocation21 [shape = 's32[1]{0}', space=sflag, size = 0x4, scoped, tag = 'scoped memory for tpu_custom_call.1']
    #allocation22 [shape = 'u8[8192]{0}', space=vmem, size = 0x2000, scoped, tag = 'output window, operand 0']
    #allocation23 [shape = 'u8[16384]{0}', space=vmem, size = 0x4000, scoped, tag = 'output window, operand 1']
    #allocation24 [shape = 's32[2]{0}', space=sflag, size = 0x8, scoped, tag = 'scoped memory for tpu_custom_call.1']
    %19 = vsyncpa [#allocation3], 0
    %s20 = scalar_lea.sflag [#allocation3], 1
    %21 = vsyncpa %s20, 0
    %22 = vsyncpa [#allocation6], 0
    %s23 = scalar_lea.sflag [#allocation6], 1
    %24 = vsyncpa %s23, 0
    %25 = vsyncpa [#allocation9], 0
    %s26 = scalar_lea.sflag [#allocation9], 1
    %27 = vsyncpa %s26, 0
    %28 = vsyncpa [#allocation12], 0
    %29 = vsyncpa [#allocation15], 0
    %30 = vsyncpa [#allocation18], 0
    %31 = vsyncpa [#allocation21], 0
    %32 = vsyncpa [#allocation4], 0
    %s33 = scalar_lea.sflag [#allocation4], 1
    %34 = vsyncpa %s33, 0
    %35 = vsyncpa [#allocation24], 0
    %s36 = scalar_lea.sflag [#allocation24], 1
    %37 = vsyncpa %s36, 0
    loop: start=0, step=1, limit=4
    $region2: #{tpu_custom_call.1} parent=1 // loop_pre_header
      _
    $region3: #{tpu_custom_call.1} parent=1 // loop_header
      %s39 = sphi 0, %s43
      %p40 = scmp.ge.s32.totalorder %s39, 4
      %s46 = sphi 0, %s58
      %s47 = sphi 0, %s54
      %s48 = sphi 0, %s46
      %s49 = sphi 0, %s47
      %s50 = sphi 0, %s48
      %s51 = sphi 0, %s49
      %s63 = sphi 0, %s65
      %s66 = sphi 0, %s63
      %s67 = sphi 0, %s66
      %s83 = sphi 0, %s67
      %s89 = sphi 0, %s91
      %s92 = sphi 0, %s89
      %s93 = sphi 0, %s92
      %s109 = sphi 0, %s93
      %s115 = sphi 0, %s117
      %s118 = sphi 0, %s115
      %s119 = sphi 0, %s118
      %s135 = sphi 0, %s119
      %s143 = sphi 0, %s145
      %s146 = sphi 0, %s143
      %s147 = sphi 0, %s146
      %s163 = sphi 0, %s147
      %s171 = sphi 0, %s173
      %s174 = sphi 0, %s171
      %s175 = sphi 0, %s174
      %s191 = sphi 0, %s175
      %s195 = sphi 0, %s195
      %s197 = sphi 0, %s195
      %s198 = sphi 0, %s197
      %s212 = sphi 0, %s198
      %s216 = sphi 0, %s216
      %s218 = sphi 0, %s216
      %s219 = sphi 0, %s218
      %s233 = sphi 0, %s219
      %s237 = sphi 0, %s237
      %s239 = sphi 0, %s237
      %s240 = sphi 0, %s239
      %s254 = sphi 0, %s240
      %s258 = sphi 0, %s258
      %s260 = sphi 0, %s258
      %s261 = sphi 0, %s260
      %s275 = sphi 0, %s261
      %s279 = sphi 0, %s279
      %s281 = sphi 0, %s279
      %s282 = sphi 0, %s281
      %s296 = sphi 0, %s282
      %s300 = sphi 0, %s300
      %s302 = sphi 0, %s300
      %s303 = sphi 0, %s302
      %s317 = sphi 0, %s303
      %s321 = sphi 0, %s321
      %s323 = sphi 0, %s321
      %s324 = sphi 0, %s323
      %s338 = sphi 0, %s324
      %s346 = sphi 0, %s348
      %s349 = sphi 0, %s346
      %s350 = sphi 0, %s349
      %s366 = sphi 0, %s350
      %s374 = sphi 0, %s376
      %s377 = sphi 0, %s374
      %s378 = sphi 0, %s377
      %s394 = sphi 0, %s378
    $region4: #{tpu_custom_call.1} parent=1 // loop_header_branch
      %42 = sbr.rel (%p40) target = $region8
    $region5: #{tpu_custom_call.1} parent=1 // loop_body
      %s44 = ssub.s32 %s39, 1
      %s45 = ssub.s32 %s39, 2
      %s52 = sadd.s32 1, %s47
      %p53 = scmp.ge.s32.totalorder %s52, 1
      %s54 = scalar_select %p53, 0, %s52
      %s55 = sadd.s32 1, %s46
      %s56 = scalar_select %p53, %s55, %s46
      %p57 = scmp.ge.s32.totalorder %s56, 2
      %s58 = scalar_select %p57, 0, %s56
      %s59 = ssub.s32 %s46, %s58
      %s60 = ssub.s32 %s47, %s54
      %s61 = sor.u32 %s59, %s60
      %p62 = scmp.eq.s32.totalorder %s61, 0
      %s64 = sadd.s32 %s63, 1
      %s65 = scalar_select %p62, %s63, %s64
      %p68 = pneg %p62
      %p69 = scmp.eq.s32.totalorder %s39, 1
      %p70 = por %p68, %p69
      %p71 = scmp.ne.s32.totalorder %s63, %s66
      %p72 = scmp.eq.s32.totalorder %s39, 0
      %p73 = por %p71, %p72
      %p74 = scmp.ne.s32.totalorder %s63, %s66
      %p75 = scmp.eq.s32.totalorder %s44, 1
      %p76 = por %p74, %p75
      %p77 = scmp.ne.s32.totalorder %s66, %s67
      %p78 = scmp.eq.s32.totalorder %s44, 0
      %p79 = por %p77, %p78
      %p80 = scmp.ne.s32.totalorder %s66, %s67
      %p81 = scmp.eq.s32.totalorder %s45, 1
      %p82 = por %p80, %p81
      %p84 = scmp.ne.s32.totalorder %s67, %s83
      %p85 = scmp.eq.s32.totalorder %s45, 0
      %p86 = por %p84, %p85
      %s87 = ssub.s32 %s46, %s58
      %p88 = scmp.eq.s32.totalorder %s87, 0
      %s90 = sadd.s32 %s89, 1
      %s91 = scalar_select %p88, %s89, %s90
      %p94 = pneg %p88
      %p95 = scmp.eq.s32.totalorder %s39, 1
      %p96 = por %p94, %p95
      %p97 = scmp.ne.s32.totalorder %s89, %s92
      %p98 = scmp.eq.s32.totalorder %s39, 0
      %p99 = por %p97, %p98
      %p100 = scmp.ne.s32.totalorder %s89, %s92
      %p101 = scmp.eq.s32.totalorder %s44, 1
      %p102 = por %p100, %p101
      %p103 = scmp.ne.s32.totalorder %s92, %s93
      %p104 = scmp.eq.s32.totalorder %s44, 0
      %p105 = por %p103, %p104
      %p106 = scmp.ne.s32.totalorder %s92, %s93
      %p107 = scmp.eq.s32.totalorder %s45, 1
      %p108 = por %p106, %p107
      %p110 = scmp.ne.s32.totalorder %s93, %s109
      %p111 = scmp.eq.s32.totalorder %s45, 0
      %p112 = por %p110, %p111
      %s113 = ssub.s32 %s46, %s58
      %p114 = scmp.eq.s32.totalorder %s113, 0
      %s116 = sadd.s32 %s115, 1
      %s117 = scalar_select %p114, %s115, %s116
      %p120 = pneg %p114
      %p121 = scmp.eq.s32.totalorder %s39, 1
      %p122 = por %p120, %p121
      %p123 = scmp.ne.s32.totalorder %s115, %s118
      %p124 = scmp.eq.s32.totalorder %s39, 0
      %p125 = por %p123, %p124
      %p126 = scmp.ne.s32.totalorder %s115, %s118
      %p127 = scmp.eq.s32.totalorder %s44, 1
      %p128 = por %p126, %p127
      %p129 = scmp.ne.s32.totalorder %s118, %s119
      %p130 = scmp.eq.s32.totalorder %s44, 0
      %p131 = por %p129, %p130
      %p132 = scmp.ne.s32.totalorder %s118, %s119
      %p133 = scmp.eq.s32.totalorder %s45, 1
      %p134 = por %p132, %p133
      %p136 = scmp.ne.s32.totalorder %s119, %s135
      %p137 = scmp.eq.s32.totalorder %s45, 0
      %p138 = por %p136, %p137
      %s139 = ssub.s32 %s46, %s58
      %s140 = ssub.s32 %s47, %s54
      %s141 = sor.u32 %s139, %s140
      %p142 = scmp.eq.s32.totalorder %s141, 0
      %s144 = sadd.s32 %s143, 1
      %s145 = scalar_select %p142, %s143, %s144
      %p148 = pneg %p142
      %p149 = scmp.eq.s32.totalorder %s39, 1
      %p150 = por %p148, %p149
      %p151 = scmp.ne.s32.totalorder %s143, %s146
      %p152 = scmp.eq.s32.totalorder %s39, 0
      %p153 = por %p151, %p152
      %p154 = scmp.ne.s32.totalorder %s143, %s146
      %p155 = scmp.eq.s32.totalorder %s44, 1
      %p156 = por %p154, %p155
      %p157 = scmp.ne.s32.totalorder %s146, %s147
      %p158 = scmp.eq.s32.totalorder %s44, 0
      %p159 = por %p157, %p158
      %p160 = scmp.ne.s32.totalorder %s146, %s147
      %p161 = scmp.eq.s32.totalorder %s45, 1
      %p162 = por %p160, %p161
      %p164 = scmp.ne.s32.totalorder %s147, %s163
      %p165 = scmp.eq.s32.totalorder %s45, 0
      %p166 = por %p164, %p165
      %s167 = ssub.s32 %s46, %s58
      %s168 = ssub.s32 %s47, %s54
      %s169 = sor.u32 %s167, %s168
      %p170 = scmp.eq.s32.totalorder %s169, 0
      %s172 = sadd.s32 %s171, 1
      %s173 = scalar_select %p170, %s171, %s172
      %p176 = pneg %p170
      %p177 = scmp.eq.s32.totalorder %s39, 1
      %p178 = por %p176, %p177
      %p179 = scmp.ne.s32.totalorder %s171, %s174
      %p180 = scmp.eq.s32.totalorder %s39, 0
      %p181 = por %p179, %p180
      %p182 = scmp.ne.s32.totalorder %s171, %s174
      %p183 = scmp.eq.s32.totalorder %s44, 1
      %p184 = por %p182, %p183
      %p185 = scmp.ne.s32.totalorder %s174, %s175
      %p186 = scmp.eq.s32.totalorder %s44, 0
      %p187 = por %p185, %p186
      %p188 = scmp.ne.s32.totalorder %s174, %s175
      %p189 = scmp.eq.s32.totalorder %s45, 1
      %p190 = por %p188, %p189
      %p192 = scmp.ne.s32.totalorder %s175, %s191
      %p193 = scmp.eq.s32.totalorder %s45, 0
      %p194 = por %p192, %p193
      %s196 = sadd.s32 %s195, 1
      %p199 = scmp.eq.s32.totalorder %s39, 1
      %p200 = scmp.ne.s32.totalorder %s195, %s197
      %p201 = scmp.eq.s32.totalorder %s39, 0
      %p202 = por %p200, %p201
      %p203 = scmp.ne.s32.totalorder %s195, %s197
      %p204 = scmp.eq.s32.totalorder %s44, 1
      %p205 = por %p203, %p204
      %p206 = scmp.ne.s32.totalorder %s197, %s198
      %p207 = scmp.eq.s32.totalorder %s44, 0
      %p208 = por %p206, %p207
      %p209 = scmp.ne.s32.totalorder %s197, %s198
      %p210 = scmp.eq.s32.totalorder %s45, 1
      %p211 = por %p209, %p210
      %p213 = scmp.ne.s32.totalorder %s198, %s212
      %p214 = scmp.eq.s32.totalorder %s45, 0
      %p215 = por %p213, %p214
      %s217 = sadd.s32 %s216, 1
      %p220 = scmp.eq.s32.totalorder %s39, 1
      %p221 = scmp.ne.s32.totalorder %s216, %s218
      %p222 = scmp.eq.s32.totalorder %s39, 0
      %p223 = por %p221, %p222
      %p224 = scmp.ne.s32.totalorder %s216, %s218
      %p225 = scmp.eq.s32.totalorder %s44, 1
      %p226 = por %p224, %p225
      %p227 = scmp.ne.s32.totalorder %s218, %s219
      %p228 = scmp.eq.s32.totalorder %s44, 0
      %p229 = por %p227, %p228
      %p230 = scmp.ne.s32.totalorder %s218, %s219
      %p231 = scmp.eq.s32.totalorder %s45, 1
      %p232 = por %p230, %p231
      %p234 = scmp.ne.s32.totalorder %s219, %s233
      %p235 = scmp.eq.s32.totalorder %s45, 0
      %p236 = por %p234, %p235
      %s238 = sadd.s32 %s237, 1
      %p241 = scmp.eq.s32.totalorder %s39, 1
      %p242 = scmp.ne.s32.totalorder %s237, %s239
      %p243 = scmp.eq.s32.totalorder %s39, 0
      %p244 = por %p242, %p243
      %p245 = scmp.ne.s32.totalorder %s237, %s239
      %p246 = scmp.eq.s32.totalorder %s44, 1
      %p247 = por %p245, %p246
      %p248 = scmp.ne.s32.totalorder %s239, %s240
      %p249 = scmp.eq.s32.totalorder %s44, 0
      %p250 = por %p248, %p249
      %p251 = scmp.ne.s32.totalorder %s239, %s240
      %p252 = scmp.eq.s32.totalorder %s45, 1
      %p253 = por %p251, %p252
      %p255 = scmp.ne.s32.totalorder %s240, %s254
      %p256 = scmp.eq.s32.totalorder %s45, 0
      %p257 = por %p255, %p256
      %s259 = sadd.s32 %s258, 1
      %p262 = scmp.eq.s32.totalorder %s39, 1
      %p263 = scmp.ne.s32.totalorder %s258, %s260
      %p264 = scmp.eq.s32.totalorder %s39, 0
      %p265 = por %p263, %p264
      %p266 = scmp.ne.s32.totalorder %s258, %s260
      %p267 = scmp.eq.s32.totalorder %s44, 1
      %p268 = por %p266, %p267
      %p269 = scmp.ne.s32.totalorder %s260, %s261
      %p270 = scmp.eq.s32.totalorder %s44, 0
      %p271 = por %p269, %p270
      %p272 = scmp.ne.s32.totalorder %s260, %s261
      %p273 = scmp.eq.s32.totalorder %s45, 1
      %p274 = por %p272, %p273
      %p276 = scmp.ne.s32.totalorder %s261, %s275
      %p277 = scmp.eq.s32.totalorder %s45, 0
      %p278 = por %p276, %p277
      %s280 = sadd.s32 %s279, 1
      %p283 = scmp.eq.s32.totalorder %s39, 1
      %p284 = scmp.ne.s32.totalorder %s279, %s281
      %p285 = scmp.eq.s32.totalorder %s39, 0
      %p286 = por %p284, %p285
      %p287 = scmp.ne.s32.totalorder %s279, %s281
      %p288 = scmp.eq.s32.totalorder %s44, 1
      %p289 = por %p287, %p288
      %p290 = scmp.ne.s32.totalorder %s281, %s282
      %p291 = scmp.eq.s32.totalorder %s44, 0
      %p292 = por %p290, %p291
      %p293 = scmp.ne.s32.totalorder %s281, %s282
      %p294 = scmp.eq.s32.totalorder %s45, 1
      %p295 = por %p293, %p294
      %p297 = scmp.ne.s32.totalorder %s282, %s296
      %p298 = scmp.eq.s32.totalorder %s45, 0
      %p299 = por %p297, %p298
      %s301 = sadd.s32 %s300, 1
      %p304 = scmp.eq.s32.totalorder %s39, 1
      %p305 = scmp.ne.s32.totalorder %s300, %s302
      %p306 = scmp.eq.s32.totalorder %s39, 0
      %p307 = por %p305, %p306
      %p308 = scmp.ne.s32.totalorder %s300, %s302
      %p309 = scmp.eq.s32.totalorder %s44, 1
      %p310 = por %p308, %p309
      %p311 = scmp.ne.s32.totalorder %s302, %s303
      %p312 = scmp.eq.s32.totalorder %s44, 0
      %p313 = por %p311, %p312
      %p314 = scmp.ne.s32.totalorder %s302, %s303
      %p315 = scmp.eq.s32.totalorder %s45, 1
      %p316 = por %p314, %p315
      %p318 = scmp.ne.s32.totalorder %s303, %s317
      %p319 = scmp.eq.s32.totalorder %s45, 0
      %p320 = por %p318, %p319
      %s322 = sadd.s32 %s321, 1
      %p325 = scmp.eq.s32.totalorder %s39, 1
      %p326 = scmp.ne.s32.totalorder %s321, %s323
      %p327 = scmp.eq.s32.totalorder %s39, 0
      %p328 = por %p326, %p327
      %p329 = scmp.ne.s32.totalorder %s321, %s323
      %p330 = scmp.eq.s32.totalorder %s44, 1
      %p331 = por %p329, %p330
      %p332 = scmp.ne.s32.totalorder %s323, %s324
      %p333 = scmp.eq.s32.totalorder %s44, 0
      %p334 = por %p332, %p333
      %p335 = scmp.ne.s32.totalorder %s323, %s324
      %p336 = scmp.eq.s32.totalorder %s45, 1
      %p337 = por %p335, %p336
      %p339 = scmp.ne.s32.totalorder %s324, %s338
      %p340 = scmp.eq.s32.totalorder %s45, 0
      %p341 = por %p339, %p340
      %s342 = ssub.s32 %s46, %s58
      %s343 = ssub.s32 %s47, %s54
      %s344 = sor.u32 %s342, %s343
      %p345 = scmp.eq.s32.totalorder %s344, 0
      %s347 = sadd.s32 %s346, 1
      %s348 = scalar_select %p345, %s346, %s347
      %p351 = pneg %p345
      %p352 = scmp.eq.s32.totalorder %s39, 1
      %p353 = por %p351, %p352
      %p354 = scmp.ne.s32.totalorder %s346, %s349
      %p355 = scmp.eq.s32.totalorder %s39, 0
      %p356 = por %p354, %p355
      %p357 = scmp.ne.s32.totalorder %s346, %s349
      %p358 = scmp.eq.s32.totalorder %s44, 1
      %p359 = por %p357, %p358
      %p360 = scmp.ne.s32.totalorder %s349, %s350
      %p361 = scmp.eq.s32.totalorder %s44, 0
      %p362 = por %p360, %p361
      %p363 = scmp.ne.s32.totalorder %s349, %s350
      %p364 = scmp.eq.s32.totalorder %s45, 1
      %p365 = por %p363, %p364
      %p367 = scmp.ne.s32.totalorder %s350, %s366
      %p368 = scmp.eq.s32.totalorder %s45, 0
      %p369 = por %p367, %p368
      %s370 = ssub.s32 %s46, %s58
      %s371 = ssub.s32 %s47, %s54
      %s372 = sor.u32 %s370, %s371
      %p373 = scmp.eq.s32.totalorder %s372, 0
      %s375 = sadd.s32 %s374, 1
      %s376 = scalar_select %p373, %s374, %s375
      %p379 = pneg %p373
      %p380 = scmp.eq.s32.totalorder %s39, 1
      %p381 = por %p379, %p380
      %p382 = scmp.ne.s32.totalorder %s374, %s377
      %p383 = scmp.eq.s32.totalorder %s39, 0
      %p384 = por %p382, %p383
      %p385 = scmp.ne.s32.totalorder %s374, %s377
      %p386 = scmp.eq.s32.totalorder %s44, 1
      %p387 = por %p385, %p386
      %p388 = scmp.ne.s32.totalorder %s377, %s378
      %p389 = scmp.eq.s32.totalorder %s44, 0
      %p390 = por %p388, %p389
      %p391 = scmp.ne.s32.totalorder %s377, %s378
      %p392 = scmp.eq.s32.totalorder %s45, 1
      %p393 = por %p391, %p392
      %p395 = scmp.ne.s32.totalorder %s378, %s394
      %p396 = scmp.eq.s32.totalorder %s45, 0
      %p397 = por %p395, %p396
      %p398 = scmp.le.s32.totalorder 1, %s39
      %p399 = scmp.lt.s32.totalorder %s39, 3
      %p400 = pnand %p398, %p399
      %p401 = pneg %p400
      // Predicated region
      $region9: #{tpu_custom_call.1} parent=5 // pred_check
        _
      $region10: #{tpu_custom_call.1} parent=5 // pred_check_branch
        %403 = sbr.rel (%p400) target = $region12
      $region11: #{tpu_custom_call.1} parent=5 // pred_region
        %s404 = ssub.s32 %s39, 1
        // Predicated region
        $region13: #{tpu_custom_call.1} parent=11 // pred_check
          %p405 = pneg %p208
        $region14: #{tpu_custom_call.1} parent=11 // pred_check_branch
          %407 = sbr.rel (%p405) target = $region16
        $region15: #{tpu_custom_call.1} parent=11 // pred_region
          %s409 = ssub.s32 512, 512
          %410 = vsyncadd [#allocation12], %s409
          %s411 = sshll.u32 [#allocation11], 4
          %s412 = int_to_ptr.vmem [resolvable:$true] %s411
          %417 = dma.hbm_to_vmem [thread:$0]  %s5, 512, %s412, [#allocation12], 64, 64, 4
        $region16: #{tpu_custom_call.1} parent=11 // pred_fallthru
          _
        // Predicated region
        $region17: #{tpu_custom_call.1} parent=11 // pred_check
          %p418 = pneg %p229
        $region18: #{tpu_custom_call.1} parent=11 // pred_check_branch
          %420 = sbr.rel (%p418) target = $region20
        $region19: #{tpu_custom_call.1} parent=11 // pred_region
          %s422 = ssub.s32 512, 512
          %423 = vsyncadd [#allocation12], %s422
          %s424 = sshll.u32 [#allocation13], 4
          %s425 = int_to_ptr.vmem [resolvable:$true] %s424
          %430 = dma.hbm_to_vmem [thread:$0]  %s6, 512, %s425, [#allocation12], 64, 64, 4
        $region20: #{tpu_custom_call.1} parent=11 // pred_fallthru
          _
        // Predicated region
        $region21: #{tpu_custom_call.1} parent=11 // pred_check
          %p431 = pneg %p250
        $region22: #{tpu_custom_call.1} parent=11 // pred_check_branch
          %433 = sbr.rel (%p431) target = $region24
        $region23: #{tpu_custom_call.1} parent=11 // pred_region
          %s435 = ssub.s32 512, 512
          %436 = vsyncadd [#allocation15], %s435
          %s437 = sshll.u32 [#allocation14], 4
          %s438 = int_to_ptr.vmem [resolvable:$true] %s437
          %443 = dma.hbm_to_vmem [thread:$0]  %s7, 512, %s438, [#allocation15], 64, 64, 4
        $region24: #{tpu_custom_call.1} parent=11 // pred_fallthru
          _
        // Predicated region
        $region25: #{tpu_custom_call.1} parent=11 // pred_check
          %p444 = pneg %p271
        $region26: #{tpu_custom_call.1} parent=11 // pred_check_branch
          %446 = sbr.rel (%p444) target = $region28
        $region27: #{tpu_custom_call.1} parent=11 // pred_region
          %s448 = ssub.s32 1024, 1024
          %449 = vsyncadd [#allocation15], %s448
          %s450 = sshll.u32 [#allocation16], 4
          %s451 = int_to_ptr.vmem [resolvable:$true] %s450
          %456 = dma.hbm_to_vmem [thread:$0]  %s8, 1024, %s451, [#allocation15], 64, 64, 4
        $region28: #{tpu_custom_call.1} parent=11 // pred_fallthru
          _
        // Predicated region
        $region29: #{tpu_custom_call.1} parent=11 // pred_check
          %p457 = pneg %p292
        $region30: #{tpu_custom_call.1} parent=11 // pred_check_branch
          %459 = sbr.rel (%p457) target = $region32
        $region31: #{tpu_custom_call.1} parent=11 // pred_region
          %s461 = ssub.s32 16, 16
          %462 = vsyncadd [#allocation18], %s461
          %s464 = sshll.u32 [#allocation17], 4
          %s465 = int_to_ptr.vmem [resolvable:$true] %s464
          %467 = dma.hbm_to_vmem [thread:$0]  %s9, 16, %s465, [#allocation18]
        $region32: #{tpu_custom_call.1} parent=11 // pred_fallthru
          _
        // Predicated region
        $region33: #{tpu_custom_call.1} parent=11 // pred_check
          %p468 = pneg %p313
        $region34: #{tpu_custom_call.1} parent=11 // pred_check_branch
          %470 = sbr.rel (%p468) target = $region36
        $region35: #{tpu_custom_call.1} parent=11 // pred_region
          %s472 = ssub.s32 16, 16
          %473 = vsyncadd [#allocation18], %s472
          %s475 = sshll.u32 [#allocation19], 4
          %s476 = int_to_ptr.vmem [resolvable:$true] %s475
          %478 = dma.hbm_to_vmem [thread:$0]  %s10, 16, %s476, [#allocation18]
        $region36: #{tpu_custom_call.1} parent=11 // pred_fallthru
          _
        // Predicated region
        $region37: #{tpu_custom_call.1} parent=11 // pred_check
          %p479 = pneg %p334
        $region38: #{tpu_custom_call.1} parent=11 // pred_check_branch
          %481 = sbr.rel (%p479) target = $region40
        $region39: #{tpu_custom_call.1} parent=11 // pred_region
          %s483 = ssub.s32 16, 16
          %484 = vsyncadd [#allocation21], %s483
          %s486 = sshll.u32 [#allocation20], 4
          %s487 = int_to_ptr.vmem [resolvable:$true] %s486
          %489 = dma.hbm_to_vmem [thread:$0]  %s11, 16, %s487, [#allocation21]
        $region40: #{tpu_custom_call.1} parent=11 // pred_fallthru
          _
      $region12: #{tpu_custom_call.1} parent=5 // pred_fallthru
        _
      %p490 = scmp.lt.s32.totalorder %s39, 2
      // Predicated region
      $region41: #{tpu_custom_call.1} parent=5 // pred_check
        %p491 = pneg %p490
      $region42: #{tpu_custom_call.1} parent=5 // pred_check_branch
        %493 = sbr.rel (%p491) target = $region44
      $region43: #{tpu_custom_call.1} parent=5 // pred_region
        // Predicated region
        $region45: #{tpu_custom_call.1} parent=43 // pred_check
          %p494 = pneg %p73
        $region46: #{tpu_custom_call.1} parent=43 // pred_check_branch
          %496 = sbr.rel (%p494) target = $region48
        $region47: #{tpu_custom_call.1} parent=43 // pred_region
          %s497 = sand.u32 %s63, 1
          %s498 = scalar_lea.sflag [#allocation3], %s497
          %s499 = sand.u32 %s63, 1
          %s500 = smul.addr %s499, 8
          %s501 = scalar_lea.vmem [#allocation2], %s500
          %s503 = ssub.s32 128, 128
          %504 = vsyncadd %s498, %s503
          %s505 = sadd.s32 %s47, %s46
          %s506 = smul.addr %s505, 128
          %s507 = scalar_lea.hbm %s0, %s506
          %s509 = sshll.u32 %s501, 4
          %s510 = int_to_ptr.vmem [resolvable:$true] %s509
          %512 = dma.hbm_to_vmem [thread:$0]  %s507, 128, %s510, %s498
        $region48: #{tpu_custom_call.1} parent=43 // pred_fallthru
          _
        // Predicated region
        $region49: #{tpu_custom_call.1} parent=43 // pred_check
          %p513 = pneg %p99
        $region50: #{tpu_custom_call.1} parent=43 // pred_check_branch
          %515 = sbr.rel (%p513) target = $region52
        $region51: #{tpu_custom_call.1} parent=43 // pred_region
          %s516 = sand.u32 %s39, 1
          %s517 = scalar_lea.sflag [#allocation6], %s516
          %s518 = sand.u32 %s89, 1
          %s519 = smul.addr %s518, 8
          %s520 = scalar_lea.vmem [#allocation5], %s519
          %s522 = ssub.s32 128, 128
          %523 = vsyncadd %s517, %s522
          %s524 = smul.addr %s46, 128
          %s525 = scalar_lea.hbm %s1, %s524
          %s527 = sshll.u32 %s520, 4
          %s528 = int_to_ptr.vmem [resolvable:$true] %s527
          %530 = dma.hbm_to_vmem [thread:$0]  %s525, 128, %s528, %s517
        $region52: #{tpu_custom_call.1} parent=43 // pred_fallthru
          _
        // Predicated region
        $region53: #{tpu_custom_call.1} parent=43 // pred_check
          %p531 = pneg %p125
        $region54: #{tpu_custom_call.1} parent=43 // pred_check_branch
          %533 = sbr.rel (%p531) target = $region56
        $region55: #{tpu_custom_call.1} parent=43 // pred_region
          %s534 = sand.u32 %s39, 1
          %s535 = scalar_lea.sflag [#allocation6], %s534
          %s536 = sand.u32 %s115, 1
          %s537 = smul.addr %s536, 8
          %s538 = scalar_lea.vmem [#allocation7], %s537
          %s540 = ssub.s32 128, 128
          %541 = vsyncadd %s535, %s540
          %s542 = smul.addr %s46, 128
          %s543 = scalar_lea.hbm %s2, %s542
          %s545 = sshll.u32 %s538, 4
          %s546 = int_to_ptr.vmem [resolvable:$true] %s545
          %548 = dma.hbm_to_vmem [thread:$0]  %s543, 128, %s546, %s535
        $region56: #{tpu_custom_call.1} parent=43 // pred_fallthru
          _
        // Predicated region
        $region57: #{tpu_custom_call.1} parent=43 // pred_check
          %p549 = pneg %p153
        $region58: #{tpu_custom_call.1} parent=43 // pred_check_branch
          %551 = sbr.rel (%p549) target = $region60
        $region59: #{tpu_custom_call.1} parent=43 // pred_region
          %s552 = sand.u32 %s39, 1
          %s553 = scalar_lea.sflag [#allocation9], %s552
          %s554 = sand.u32 %s143, 1
          %s555 = smul.addr %s554, 4
          %s556 = scalar_lea.vmem [#allocation8], %s555
          %s558 = ssub.s32 64, 64
          %559 = vsyncadd %s553, %s558
          %s560 = sadd.s32 %s47, %s46
          %s561 = smul.addr %s560, 64
          %s562 = scalar_lea.hbm %s3, %s561
          %s564 = sshll.u32 %s556, 4
          %s565 = int_to_ptr.vmem [resolvable:$true] %s564
          %567 = dma.hbm_to_vmem [thread:$0]  %s562, 64, %s565, %s553
        $region60: #{tpu_custom_call.1} parent=43 // pred_fallthru
          _
        // Predicated region
        $region61: #{tpu_custom_call.1} parent=43 // pred_check
          %p568 = pneg %p181
        $region62: #{tpu_custom_call.1} parent=43 // pred_check_branch
          %570 = sbr.rel (%p568) target = $region64
        $region63: #{tpu_custom_call.1} parent=43 // pred_region
          %s571 = sand.u32 %s39, 1
          %s572 = scalar_lea.sflag [#allocation9], %s571
          %s573 = sand.u32 %s171, 1
          %s574 = smul.addr %s573, 16
          %s575 = scalar_lea.vmem [#allocation10], %s574
          %s577 = ssub.s32 256, 256
          %578 = vsyncadd %s572, %s577
          %s579 = smul.addr %s46, 4
          %s580 = sadd.s32 %s47, %s579
          %s581 = smul.addr %s580, 64
          %s582 = scalar_lea.hbm %s4, %s581
          %s583 = sshll.u32 %s575, 4
          %s584 = int_to_ptr.vmem [resolvable:$true] %s583
          %589 = dma.hbm_to_vmem [thread:$0]  %s582, 256, %s584, %s572, 64, 64, 4
        $region64: #{tpu_custom_call.1} parent=43 // pred_fallthru
          _
      $region44: #{tpu_custom_call.1} parent=5 // pred_fallthru
        _
      %p590 = scmp.le.s32.totalorder 1, %s39
      %p591 = scmp.lt.s32.totalorder %s39, 3
      %p592 = pnand %p590, %p591
      %p593 = pneg %p592
      // Predicated region
      $region65: #{tpu_custom_call.1} parent=5 // pred_check
        _
      $region66: #{tpu_custom_call.1} parent=5 // pred_check_branch
        %595 = sbr.rel (%p592) target = $region68
      $region67: #{tpu_custom_call.1} parent=5 // pred_region
        %s596 = ssub.s32 %s39, 1
        %s597 = sand.u32 %s66, 1
        %s598 = scalar_lea.sflag [#allocation3], %s597
        %s599 = sand.u32 %s66, 1
        %s600 = smul.addr %s599, 8
        %s601 = scalar_lea.vmem [#allocation2], %s600
        // Predicated region
        $region69: #{tpu_custom_call.1} parent=67 // pred_check
          %p602 = pneg %p79
        $region70: #{tpu_custom_call.1} parent=67 // pred_check_branch
          %604 = sbr.rel (%p602) target = $region72
        $region71: #{tpu_custom_call.1} parent=67 // pred_region
          %605 = dma.done %s598, 128
        $region72: #{tpu_custom_call.1} parent=67 // pred_fallthru
          _
        %s606 = sand.u32 %s44, 1
        %s607 = scalar_lea.sflag [#allocation6], %s606
        %s608 = sand.u32 %s92, 1
        %s609 = smul.addr %s608, 8
        %s610 = scalar_lea.vmem [#allocation5], %s609
        // Predicated region
        $region73: #{tpu_custom_call.1} parent=67 // pred_check
          %p611 = pneg %p105
        $region74: #{tpu_custom_call.1} parent=67 // pred_check_branch
          %613 = sbr.rel (%p611) target = $region76
        $region75: #{tpu_custom_call.1} parent=67 // pred_region
          %614 = dma.done %s607, 128
        $region76: #{tpu_custom_call.1} parent=67 // pred_fallthru
          _
        %s615 = sand.u32 %s44, 1
        %s616 = scalar_lea.sflag [#allocation6], %s615
        %s617 = sand.u32 %s118, 1
        %s618 = smul.addr %s617, 8
        %s619 = scalar_lea.vmem [#allocation7], %s618
        // Predicated region
        $region77: #{tpu_custom_call.1} parent=67 // pred_check
          %p620 = pneg %p131
        $region78: #{tpu_custom_call.1} parent=67 // pred_check_branch
          %622 = sbr.rel (%p620) target = $region80
        $region79: #{tpu_custom_call.1} parent=67 // pred_region
          %623 = dma.done %s616, 128
        $region80: #{tpu_custom_call.1} parent=67 // pred_fallthru
          _
        %s624 = sand.u32 %s44, 1
        %s625 = scalar_lea.sflag [#allocation9], %s624
        %s626 = sand.u32 %s146, 1
        %s627 = smul.addr %s626, 4
        %s628 = scalar_lea.vmem [#allocation8], %s627
        // Predicated region
        $region81: #{tpu_custom_call.1} parent=67 // pred_check
          %p629 = pneg %p159
        $region82: #{tpu_custom_call.1} parent=67 // pred_check_branch
          %631 = sbr.rel (%p629) target = $region84
        $region83: #{tpu_custom_call.1} parent=67 // pred_region
          %632 = dma.done %s625, 64
        $region84: #{tpu_custom_call.1} parent=67 // pred_fallthru
          _
        %s633 = sand.u32 %s44, 1
        %s634 = scalar_lea.sflag [#allocation9], %s633
        %s635 = sand.u32 %s174, 1
        %s636 = smul.addr %s635, 16
        %s637 = scalar_lea.vmem [#allocation10], %s636
        // Predicated region
        $region85: #{tpu_custom_call.1} parent=67 // pred_check
          %p638 = pneg %p187
        $region86: #{tpu_custom_call.1} parent=67 // pred_check_branch
          %640 = sbr.rel (%p638) target = $region88
        $region87: #{tpu_custom_call.1} parent=67 // pred_region
          %641 = dma.done %s634, 256
        $region88: #{tpu_custom_call.1} parent=67 // pred_fallthru
          _
        // Predicated region
        $region89: #{tpu_custom_call.1} parent=67 // pred_check
          %p642 = pneg %p208
        $region90: #{tpu_custom_call.1} parent=67 // pred_check_branch
          %644 = sbr.rel (%p642) target = $region92
        $region91: #{tpu_custom_call.1} parent=67 // pred_region
          %645 = dma.done [#allocation12], 512
        $region92: #{tpu_custom_call.1} parent=67 // pred_fallthru
          _
        // Predicated region
        $region93: #{tpu_custom_call.1} parent=67 // pred_check
          %p646 = pneg %p229
        $region94: #{tpu_custom_call.1} parent=67 // pred_check_branch
          %648 = sbr.rel (%p646) target = $region96
        $region95: #{tpu_custom_call.1} parent=67 // pred_region
          %649 = dma.done [#allocation12], 512
        $region96: #{tpu_custom_call.1} parent=67 // pred_fallthru
          _
        // Predicated region
        $region97: #{tpu_custom_call.1} parent=67 // pred_check
          %p650 = pneg %p250
        $region98: #{tpu_custom_call.1} parent=67 // pred_check_branch
          %652 = sbr.rel (%p650) target = $region100
        $region99: #{tpu_custom_call.1} parent=67 // pred_region
          %653 = dma.done [#allocation15], 512
        $region100: #{tpu_custom_call.1} parent=67 // pred_fallthru
          _
        // Predicated region
        $region101: #{tpu_custom_call.1} parent=67 // pred_check
          %p654 = pneg %p271
        $region102: #{tpu_custom_call.1} parent=67 // pred_check_branch
          %656 = sbr.rel (%p654) target = $region104
        $region103: #{tpu_custom_call.1} parent=67 // pred_region
          %657 = dma.done [#allocation15], 1024
        $region104: #{tpu_custom_call.1} parent=67 // pred_fallthru
          _
        // Predicated region
        $region105: #{tpu_custom_call.1} parent=67 // pred_check
          %p658 = pneg %p292
        $region106: #{tpu_custom_call.1} parent=67 // pred_check_branch
          %660 = sbr.rel (%p658) target = $region108
        $region107: #{tpu_custom_call.1} parent=67 // pred_region
          %661 = dma.done [#allocation18], 16
        $region108: #{tpu_custom_call.1} parent=67 // pred_fallthru
          _
        // Predicated region
        $region109: #{tpu_custom_call.1} parent=67 // pred_check
          %p662 = pneg %p313
        $region110: #{tpu_custom_call.1} parent=67 // pred_check_branch
          %664 = sbr.rel (%p662) target = $region112
        $region111: #{tpu_custom_call.1} parent=67 // pred_region
          %665 = dma.done [#allocation18], 16
        $region112: #{tpu_custom_call.1} parent=67 // pred_fallthru
          _
        // Predicated region
        $region113: #{tpu_custom_call.1} parent=67 // pred_check
          %p666 = pneg %p334
        $region114: #{tpu_custom_call.1} parent=67 // pred_check_branch
          %668 = sbr.rel (%p666) target = $region116
        $region115: #{tpu_custom_call.1} parent=67 // pred_region
          %669 = dma.done [#allocation21], 16
        $region116: #{tpu_custom_call.1} parent=67 // pred_fallthru
          _
        %s670 = sand.u32 %s66, 1
        %s671 = scalar_lea.sflag [#allocation3], %s670
        %s672 = sand.u32 %s66, 1
        %s673 = smul.addr %s672, 8
        %s674 = scalar_lea.vmem [#allocation2], %s673
        %p675 = pneg %p79
        %p676 = pneg %p76
        %s677 = sand.u32 %s44, 1
        %s678 = scalar_lea.sflag [#allocation6], %s677
        %s679 = sand.u32 %s92, 1
        %s680 = smul.addr %s679, 8
        %s681 = scalar_lea.vmem [#allocation5], %s680
        %p682 = pneg %p105
        %p683 = pneg %p102
        %s684 = sand.u32 %s44, 1
        %s685 = scalar_lea.sflag [#allocation6], %s684
        %s686 = sand.u32 %s118, 1
        %s687 = smul.addr %s686, 8
        %s688 = scalar_lea.vmem [#allocation7], %s687
        %p689 = pneg %p131
        %p690 = pneg %p128
        %s691 = sand.u32 %s44, 1
        %s692 = scalar_lea.sflag [#allocation9], %s691
        %s693 = sand.u32 %s146, 1
        %s694 = smul.addr %s693, 4
        %s695 = scalar_lea.vmem [#allocation8], %s694
        %p696 = pneg %p159
        %p697 = pneg %p156
        %s698 = sand.u32 %s44, 1
        %s699 = scalar_lea.sflag [#allocation9], %s698
        %s700 = sand.u32 %s174, 1
        %s701 = smul.addr %s700, 16
        %s702 = scalar_lea.vmem [#allocation10], %s701
        %p703 = pneg %p187
        %p704 = pneg %p184
        %p705 = pneg %p208
        %p706 = pneg %p205
        %p707 = pneg %p229
        %p708 = pneg %p226
        %p709 = pneg %p250
        %p710 = pneg %p247
        %p711 = pneg %p271
        %p712 = pneg %p268
        %p713 = pneg %p292
        %p714 = pneg %p289
        %p715 = pneg %p313
        %p716 = pneg %p310
        %p717 = pneg %p334
        %p718 = pneg %p331
        %p719 = pneg %p362
        %p720 = pneg %p359
        %s721 = sand.u32 %s349, 1
        %s722 = scalar_lea.sflag [#allocation4], %s721
        %s723 = sand.u32 %s349, 1
        %s724 = smul.addr %s723, 8
        %s725 = scalar_lea.vmem [#allocation22], %s724
        %p726 = pneg %p390
        %p727 = pneg %p387
        %s728 = sand.u32 %s377, 1
        %s729 = scalar_lea.sflag [#allocation24], %s728
        %s730 = sand.u32 %s377, 1
        %s731 = smul.addr %s730, 16
        %s732 = scalar_lea.vmem [#allocation23], %s731
        %v734 = vld [vmem:[%s601] sm:$0xff]
        %v735 = vpack.c.bf16 %v734, %v734
        %v736 = vld [vmem:[%s610] sm:$0xff]
        %v737 = vpack.c.bf16 %v736, %v736
        %v738 = vld [vmem:[%s619] sm:$0xff]
        %v739 = vpack.c.bf16 %v738, %v738
        %v740 = vld [vmem:[%s628] sm:$0xf]
        %v741 = vunpack.c.l.bf16 %v740
        %v742 = vmul.f32 %v741, 1e+09
        %v743 = vsub.f32 %v742, 1.0
        %v744 = vld [vmem:[#allocation11] sm:$0xf]
        %v745 = vld [vmem:[#allocation11 + $0x4] sm:$0xf]
        %v748 = vunpack.c.l.b16 %v744
        %v749 = vunpack.c.l.b16 %v745
        %v750 = vpack.c.b16 %v749, %v748
        %vm752 = vcmask 130048
        %v754 = vsel %vm752, %v735, 0
        %756 = vmatprep.subr.bf16.mxu0 0
        %757 = vmatpush1.bf16.msra.mxu0 %v750
        %758 = vmatprep.subr.bf16.mxu0 0
        %759 = vmatpush1.bf16.msra.mxu0 0
        %760 = vmatprep.subr.bf16.mxu0 0
        %761 = vmatpush1.bf16.msra.mxu0 0
        %762 = vmatprep.subr.bf16.mxu0 0
        %763 = vmatpush1.bf16.msra.mxu0 0
        %764 = vmatprep.subr.bf16.mxu0 0
        %765 = vmatpush1.bf16.msra.mxu0 0
        %766 = vmatprep.subr.bf16.mxu0 0
        %767 = vmatpush1.bf16.msra.mxu0 0
        %768 = vmatprep.subr.bf16.mxu0 0
        %769 = vmatpush1.bf16.msra.mxu0 0
        %770 = vmatprep.subr.bf16.mxu0 0
        %771 = vmatpush1.bf16.msra.mxu0 0
        %772 = vmatprep.subr.bf16.mxu0 0
        %773 = vmatpush1.bf16.msra.mxu0 0
        %774 = vmatprep.subr.bf16.mxu0 0
        %775 = vmatpush1.bf16.msra.mxu0 0
        %776 = vmatprep.subr.bf16.mxu0 0
        %777 = vmatpush1.bf16.msra.mxu0 0
        %778 = vmatprep.subr.bf16.mxu0 0
        %779 = vmatpush1.bf16.msra.mxu0 0
        %780 = vmatprep.subr.bf16.mxu0 0
        %781 = vmatpush1.bf16.msra.mxu0 0
        %782 = vmatprep.subr.bf16.mxu0 0
        %783 = vmatpush1.bf16.msra.mxu0 0
        %784 = vmatprep.subr.bf16.mxu0 0
        %785 = vmatpush1.bf16.msra.mxu0 0
        %786 = vmatprep.subr.bf16.mxu0 0
        %787 = vmatpush1.bf16.msra.mxu0 0
        %788 = vmatprep.mubr.bf16.mxu0 0
        %789 = vmatmul.mubr.bf16.gmra.mrb[0].mxu0 %v754
        %v790 = vpop.f32.mrb[0].mxu0
        %v791 = vadd.f32 0.0, %v790
        %v792 = vpop.f32.mrb[0].mxu0
        %v793 = vpop.f32.mrb[0].mxu0
        %v794 = vpop.f32.mrb[0].mxu0
        %795 = vdwg.mxu0
        %v796 = vmul.f32 %v791, 0.5
        %v797 = vpack.c.bf16 %v796, %v796
        %v798 = vld [vmem:[#allocation13] sm:$0xf]
        %v799 = vld [vmem:[#allocation13 + $0x4] sm:$0xf]
        %v802 = vunpack.c.l.b16 %v798
        %v803 = vunpack.c.l.b16 %v799
        %v804 = vpack.c.b16 %v803, %v802
        %v807 = vsel %vm752, %v737, 0
        %809 = vmatprep.subr.bf16.mxu0 0
        %810 = vmatpush1.bf16.msra.mxu0 %v804
        %811 = vmatprep.subr.bf16.mxu0 0
        %812 = vmatpush1.bf16.msra.mxu0 0
        %813 = vmatprep.subr.bf16.mxu0 0
        %814 = vmatpush1.bf16.msra.mxu0 0
        %815 = vmatprep.subr.bf16.mxu0 0
        %816 = vmatpush1.bf16.msra.mxu0 0
        %817 = vmatprep.subr.bf16.mxu0 0
        %818 = vmatpush1.bf16.msra.mxu0 0
        %819 = vmatprep.subr.bf16.mxu0 0
        %820 = vmatpush1.bf16.msra.mxu0 0
        %821 = vmatprep.subr.bf16.mxu0 0
        %822 = vmatpush1.bf16.msra.mxu0 0
        %823 = vmatprep.subr.bf16.mxu0 0
        %824 = vmatpush1.bf16.msra.mxu0 0
        %825 = vmatprep.subr.bf16.mxu0 0
        %826 = vmatpush1.bf16.msra.mxu0 0
        %827 = vmatprep.subr.bf16.mxu0 0
        %828 = vmatpush1.bf16.msra.mxu0 0
        %829 = vmatprep.subr.bf16.mxu0 0
        %830 = vmatpush1.bf16.msra.mxu0 0
        %831 = vmatprep.subr.bf16.mxu0 0
        %832 = vmatpush1.bf16.msra.mxu0 0
        %833 = vmatprep.subr.bf16.mxu0 0
        %834 = vmatpush1.bf16.msra.mxu0 0
        %835 = vmatprep.subr.bf16.mxu0 0
        %836 = vmatpush1.bf16.msra.mxu0 0
        %837 = vmatprep.subr.bf16.mxu0 0
        %838 = vmatpush1.bf16.msra.mxu0 0
        %839 = vmatprep.subr.bf16.mxu0 0
        %840 = vmatpush1.bf16.msra.mxu0 0
        %841 = vmatprep.mubr.bf16.mxu0 0
        %842 = vmatmul.mubr.bf16.gmra.mrb[0].mxu0 %v807
        %v843 = vpop.f32.mrb[0].mxu0
        %v844 = vadd.f32 0.0, %v843
        %v845 = vpop.f32.mrb[0].mxu0
        %v846 = vpop.f32.mrb[0].mxu0
        %v847 = vpop.f32.mrb[0].mxu0
        %848 = vdwg.mxu0
        %v849 = vpack.c.bf16 %v844, %v844
        %v850 = vld [vmem:[#allocation14] sm:$0xf]
        %v851 = vld [vmem:[#allocation14 + $0x4] sm:$0xf]
        %v854 = vunpack.c.l.b16 %v850
        %v855 = vunpack.c.l.b16 %v851
        %v856 = vpack.c.b16 %v855, %v854
        %v859 = vsel %vm752, %v739, 0
        %861 = vmatprep.subr.bf16.mxu0 0
        %862 = vmatpush1.bf16.msra.mxu0 %v856
        %863 = vmatprep.subr.bf16.mxu0 0
        %864 = vmatpush1.bf16.msra.mxu0 0
        %865 = vmatprep.subr.bf16.mxu0 0
        %866 = vmatpush1.bf16.msra.mxu0 0
        %867 = vmatprep.subr.bf16.mxu0 0
        %868 = vmatpush1.bf16.msra.mxu0 0
        %869 = vmatprep.subr.bf16.mxu0 0
        %870 = vmatpush1.bf16.msra.mxu0 0
        %871 = vmatprep.subr.bf16.mxu0 0
        %872 = vmatpush1.bf16.msra.mxu0 0
        %873 = vmatprep.subr.bf16.mxu0 0
        %874 = vmatpush1.bf16.msra.mxu0 0
        %875 = vmatprep.subr.bf16.mxu0 0
        %876 = vmatpush1.bf16.msra.mxu0 0
        %877 = vmatprep.subr.bf16.mxu0 0
        %878 = vmatpush1.bf16.msra.mxu0 0
        %879 = vmatprep.subr.bf16.mxu0 0
        %880 = vmatpush1.bf16.msra.mxu0 0
        %881 = vmatprep.subr.bf16.mxu0 0
        %882 = vmatpush1.bf16.msra.mxu0 0
        %883 = vmatprep.subr.bf16.mxu0 0
        %884 = vmatpush1.bf16.msra.mxu0 0
        %885 = vmatprep.subr.bf16.mxu0 0
        %886 = vmatpush1.bf16.msra.mxu0 0
        %887 = vmatprep.subr.bf16.mxu0 0
        %888 = vmatpush1.bf16.msra.mxu0 0
        %889 = vmatprep.subr.bf16.mxu0 0
        %890 = vmatpush1.bf16.msra.mxu0 0
        %891 = vmatprep.subr.bf16.mxu0 0
        %892 = vmatpush1.bf16.msra.mxu0 0
        %893 = vmatprep.mubr.bf16.mxu0 0
        %894 = vmatmul.mubr.bf16.gmra.mrb[0].mxu0 %v859
        %v895 = vpop.f32.mrb[0].mxu0
        %v896 = vadd.f32 0.0, %v895
        %v897 = vpop.f32.mrb[0].mxu0
        %v898 = vpop.f32.mrb[0].mxu0
        %v899 = vpop.f32.mrb[0].mxu0
        %900 = vdwg.mxu0
        %v901 = vpack.c.bf16 %v896, %v896
        %vm902 = vcmask 261120
        %v904 = vsel %vm902, %v797, 0
        %v907 = vsel %vm902, %v849, 0
        %909 = vmatprep.subr.bf16.mxu0 0
        %910 = vmatpush1.bf16.xpose.msra.mxu0 %v907
        %911 = vmatprep.subr.bf16.mxu0 0
        %912 = vmatpush1.bf16.xpose.msra.mxu0 0
        %913 = vmatprep.subr.bf16.mxu0 0
        %914 = vmatpush1.bf16.xpose.msra.mxu0 0
        %915 = vmatprep.subr.bf16.mxu0 0
        %916 = vmatpush1.bf16.xpose.msra.mxu0 0
        %917 = vmatprep.subr.bf16.mxu0 0
        %918 = vmatpush1.bf16.xpose.msra.mxu0 0
        %919 = vmatprep.subr.bf16.mxu0 0
        %920 = vmatpush1.bf16.xpose.msra.mxu0 0
        %921 = vmatprep.subr.bf16.mxu0 0
        %922 = vmatpush1.bf16.xpose.msra.mxu0 0
        %923 = vmatprep.subr.bf16.mxu0 0
        %924 = vmatpush1.bf16.xpose.msra.mxu0 0
        %925 = vmatprep.subr.bf16.mxu0 0
        %926 = vmatpush1.bf16.xpose.msra.mxu0 0
        %927 = vmatprep.subr.bf16.mxu0 0
        %928 = vmatpush1.bf16.xpose.msra.mxu0 0
        %929 = vmatprep.subr.bf16.mxu0 0
        %930 = vmatpush1.bf16.xpose.msra.mxu0 0
        %931 = vmatprep.subr.bf16.mxu0 0
        %932 = vmatpush1.bf16.xpose.msra.mxu0 0
        %933 = vmatprep.subr.bf16.mxu0 0
        %934 = vmatpush1.bf16.xpose.msra.mxu0 0
        %935 = vmatprep.subr.bf16.mxu0 0
        %936 = vmatpush1.bf16.xpose.msra.mxu0 0
        %937 = vmatprep.subr.bf16.mxu0 0
        %938 = vmatpush1.bf16.xpose.msra.mxu0 0
        %939 = vmatprep.subr.bf16.mxu0 0
        %940 = vmatpush1.bf16.xpose.msra.mxu0 0
        %941 = vmatprep.mubr.bf16.mxu0 0
        %942 = vmatmul.mubr.bf16.gmra.mrb[0].mxu0 %v904
        %v943 = vpop.f32.mrb[0].mxu0
        %v944 = vadd.f32 %v743, %v943
        %v945 = vpop.f32.mrb[0].mxu0
        %v946 = vpop.f32.mrb[0].mxu0
        %v947 = vpop.f32.mrb[0].mxu0
        %948 = vdwg.mxu0
        %v949 = vld [vmem:[%s637] sm:$0xf]
        %v950 = vunpack.c.l.bf16 %v949
        %v951 = vadd.f32 %v944, %v950
        %vm952 = vcmask 64512
        %v953 = vsel %vm952, %v951, -inf
        %954 = vmax.xlane.f32.xlu0 %v953
        %v955 = vpop.xlane.xlu0 %954
        %v956 = vsub.f32 %v951, %v955
        %v957 = vmul.f32 %v956, 1.442695
        %v958 = vpow.pop %v957
        %v959 = vsel %vm952, %v958, 0.0
        %960 = vadd.xlane.f32.xlu0 %v959
        %v961 = vpop.xlane.xlu0 %960
        %v962 = vrcp.pop %v961
        %v963 = vmul.f32 %v958, %v962
        %v964 = vpack.c.bf16 %v963, %v963
        %vm965 = vcmask 60416
        %966 = vst.msk [vmem:[%s732] sm:$0xf] %vm965, %v964
        %v968 = vsel %vm952, %v964, 0
        %vm970 = vcmask 1043456
        %v972 = vsel %vm970, %v901, 0
        %974 = vmatprep.subr.bf16.mxu0 0
        %975 = vmatpush1.bf16.msra.mxu0 %v972
        %976 = vmatprep.subr.bf16.mxu0 0
        %977 = vmatpush1.bf16.msra.mxu0 0
        %978 = vmatprep.subr.bf16.mxu0 0
        %979 = vmatpush1.bf16.msra.mxu0 0
        %980 = vmatprep.subr.bf16.mxu0 0
        %981 = vmatpush1.bf16.msra.mxu0 0
        %982 = vmatprep.subr.bf16.mxu0 0
        %983 = vmatpush1.bf16.msra.mxu0 0
        %984 = vmatprep.subr.bf16.mxu0 0
        %985 = vmatpush1.bf16.msra.mxu0 0
        %986 = vmatprep.subr.bf16.mxu0 0
        %987 = vmatpush1.bf16.msra.mxu0 0
        %988 = vmatprep.subr.bf16.mxu0 0
        %989 = vmatpush1.bf16.msra.mxu0 0
        %990 = vmatprep.subr.bf16.mxu0 0
        %991 = vmatpush1.bf16.msra.mxu0 0
        %992 = vmatprep.subr.bf16.mxu0 0
        %993 = vmatpush1.bf16.msra.mxu0 0
        %994 = vmatprep.subr.bf16.mxu0 0
        %995 = vmatpush1.bf16.msra.mxu0 0
        %996 = vmatprep.subr.bf16.mxu0 0
        %997 = vmatpush1.bf16.msra.mxu0 0
        %998 = vmatprep.subr.bf16.mxu0 0
        %999 = vmatpush1.bf16.msra.mxu0 0
        %1000 = vmatprep.subr.bf16.mxu0 0
        %1001 = vmatpush1.bf16.msra.mxu0 0
        %1002 = vmatprep.subr.bf16.mxu0 0
        %1003 = vmatpush1.bf16.msra.mxu0 0
        %1004 = vmatprep.subr.bf16.mxu0 0
        %1005 = vmatpush1.bf16.msra.mxu0 0
        %1006 = vmatprep.mubr.bf16.mxu0 0
        %1007 = vmatmul.mubr.bf16.gmra.mrb[0].mxu0 %v968
        %v1008 = vpop.f32.mrb[0].mxu0
        %v1009 = vadd.f32 0.0, %v1008
        %v1010 = vpop.f32.mrb[0].mxu0
        %v1011 = vpop.f32.mrb[0].mxu0
        %v1012 = vpop.f32.mrb[0].mxu0
        %1013 = vdwg.mxu0
        %v1014 = vpack.c.bf16 %v1009, %v1009
        %v1015 = vld [vmem:[#allocation16] sm:$0xf]
        %v1016 = vld [vmem:[#allocation16 + $0x4] sm:$0xf]
        %v1017 = vld [vmem:[#allocation16 + $0x8] sm:$0xf]
        %v1018 = vld [vmem:[#allocation16 + $0xc] sm:$0xf]
        %s1019 = scalar_lea.vmem [#allocation11], 8
        %v1020 = vld [vmem:[%s1019] sm:$0xf]
        %v1021 = vld [vmem:[%s1019 + $0x4] sm:$0xf]
        %v1024 = vunpack.c.l.b16 %v1020
        %v1025 = vunpack.c.l.b16 %v1021
        %v1026 = vpack.c.b16 %v1025, %v1024
        %1028 = vmatprep.subr.bf16.mxu0 0
        %1029 = vmatpush1.bf16.msra.mxu0 %v1026
        %1030 = vmatprep.subr.bf16.mxu0 0
        %1031 = vmatpush1.bf16.msra.mxu0 0
        %1032 = vmatprep.subr.bf16.mxu0 0
        %1033 = vmatpush1.bf16.msra.mxu0 0
        %1034 = vmatprep.subr.bf16.mxu0 0
        %1035 = vmatpush1.bf16.msra.mxu0 0
        %1036 = vmatprep.subr.bf16.mxu0 0
        %1037 = vmatpush1.bf16.msra.mxu0 0
        %1038 = vmatprep.subr.bf16.mxu0 0
        %1039 = vmatpush1.bf16.msra.mxu0 0
        %1040 = vmatprep.subr.bf16.mxu0 0
        %1041 = vmatpush1.bf16.msra.mxu0 0
        %1042 = vmatprep.subr.bf16.mxu0 0
        %1043 = vmatpush1.bf16.msra.mxu0 0
        %1044 = vmatprep.subr.bf16.mxu0 0
        %1045 = vmatpush1.bf16.msra.mxu0 0
        %1046 = vmatprep.subr.bf16.mxu0 0
        %1047 = vmatpush1.bf16.msra.mxu0 0
        %1048 = vmatprep.subr.bf16.mxu0 0
        %1049 = vmatpush1.bf16.msra.mxu0 0
        %1050 = vmatprep.subr.bf16.mxu0 0
        %1051 = vmatpush1.bf16.msra.mxu0 0
        %1052 = vmatprep.subr.bf16.mxu0 0
        %1053 = vmatpush1.bf16.msra.mxu0 0
        %1054 = vmatprep.subr.bf16.mxu0 0
        %1055 = vmatpush1.bf16.msra.mxu0 0
        %1056 = vmatprep.subr.bf16.mxu0 0
        %1057 = vmatpush1.bf16.msra.mxu0 0
        %1058 = vmatprep.subr.bf16.mxu0 0
        %1059 = vmatpush1.bf16.msra.mxu0 0
        %1060 = vmatprep.mubr.bf16.mxu0 0
        %1061 = vmatmul.mubr.bf16.gmra.mrb[0].mxu0 %v754
        %v1062 = vpop.f32.mrb[0].mxu0
        %v1063 = vadd.f32 0.0, %v1062
        %v1064 = vpop.f32.mrb[0].mxu0
        %v1065 = vpop.f32.mrb[0].mxu0
        %v1066 = vpop.f32.mrb[0].mxu0
        %1067 = vdwg.mxu0
        %v1068 = vmul.f32 %v1063, 0.5
        %v1069 = vpack.c.bf16 %v1068, %v1068
        %s1070 = scalar_lea.vmem [#allocation13], 8
        %v1071 = vld [vmem:[%s1070] sm:$0xf]
        %v1072 = vld [vmem:[%s1070 + $0x4] sm:$0xf]
        %v1075 = vunpack.c.l.b16 %v1071
        %v1076 = vunpack.c.l.b16 %v1072
        %v1077 = vpack.c.b16 %v1076, %v1075
        %1079 = vmatprep.subr.bf16.mxu0 0
        %1080 = vmatpush1.bf16.msra.mxu0 %v1077
        %1081 = vmatprep.subr.bf16.mxu0 0
        %1082 = vmatpush1.bf16.msra.mxu0 0
        %1083 = vmatprep.subr.bf16.mxu0 0
        %1084 = vmatpush1.bf16.msra.mxu0 0
        %1085 = vmatprep.subr.bf16.mxu0 0
        %1086 = vmatpush1.bf16.msra.mxu0 0
        %1087 = vmatprep.subr.bf16.mxu0 0
        %1088 = vmatpush1.bf16.msra.mxu0 0
        %1089 = vmatprep.subr.bf16.mxu0 0
        %1090 = vmatpush1.bf16.msra.mxu0 0
        %1091 = vmatprep.subr.bf16.mxu0 0
        %1092 = vmatpush1.bf16.msra.mxu0 0
        %1093 = vmatprep.subr.bf16.mxu0 0
        %1094 = vmatpush1.bf16.msra.mxu0 0
        %1095 = vmatprep.subr.bf16.mxu0 0
        %1096 = vmatpush1.bf16.msra.mxu0 0
        %1097 = vmatprep.subr.bf16.mxu0 0
        %1098 = vmatpush1.bf16.msra.mxu0 0
        %1099 = vmatprep.subr.bf16.mxu0 0
        %1100 = vmatpush1.bf16.msra.mxu0 0
        %1101 = vmatprep.subr.bf16.mxu0 0
        %1102 = vmatpush1.bf16.msra.mxu0 0
        %1103 = vmatprep.subr.bf16.mxu0 0
        %1104 = vmatpush1.bf16.msra.mxu0 0
        %1105 = vmatprep.subr.bf16.mxu0 0
        %1106 = vmatpush1.bf16.msra.mxu0 0
        %1107 = vmatprep.subr.bf16.mxu0 0
        %1108 = vmatpush1.bf16.msra.mxu0 0
        %1109 = vmatprep.subr.bf16.mxu0 0
        %1110 = vmatpush1.bf16.msra.mxu0 0
        %1111 = vmatprep.mubr.bf16.mxu0 0
        %1112 = vmatmul.mubr.bf16.gmra.mrb[0].mxu0 %v807
        %v1113 = vpop.f32.mrb[0].mxu0
        %v1114 = vadd.f32 0.0, %v1113
        %v1115 = vpop.f32.mrb[0].mxu0
        %v1116 = vpop.f32.mrb[0].mxu0
        %v1117 = vpop.f32.mrb[0].mxu0
        %1118 = vdwg.mxu0
        %v1119 = vpack.c.bf16 %v1114, %v1114
        %s1120 = scalar_lea.vmem [#allocation14], 8
        %v1121 = vld [vmem:[%s1120] sm:$0xf]
        %v1122 = vld [vmem:[%s1120 + $0x4] sm:$0xf]
        %v1125 = vunpack.c.l.b16 %v1121
        %v1126 = vunpack.c.l.b16 %v1122
        %v1127 = vpack.c.b16 %v1126, %v1125
        %1129 = vmatprep.subr.bf16.mxu0 0
        %1130 = vmatpush1.bf16.msra.mxu0 %v1127
        %1131 = vmatprep.subr.bf16.mxu0 0
        %1132 = vmatpush1.bf16.msra.mxu0 0
        %1133 = vmatprep.subr.bf16.mxu0 0
        %1134 = vmatpush1.bf16.msra.mxu0 0
        %1135 = vmatprep.subr.bf16.mxu0 0
        %1136 = vmatpush1.bf16.msra.mxu0 0
        %1137 = vmatprep.subr.bf16.mxu0 0
        %1138 = vmatpush1.bf16.msra.mxu0 0
        %1139 = vmatprep.subr.bf16.mxu0 0
        %1140 = vmatpush1.bf16.msra.mxu0 0
        %1141 = vmatprep.subr.bf16.mxu0 0
        %1142 = vmatpush1.bf16.msra.mxu0 0
        %1143 = vmatprep.subr.bf16.mxu0 0
        %1144 = vmatpush1.bf16.msra.mxu0 0
        %1145 = vmatprep.subr.bf16.mxu0 0
        %1146 = vmatpush1.bf16.msra.mxu0 0
        %1147 = vmatprep.subr.bf16.mxu0 0
        %1148 = vmatpush1.bf16.msra.mxu0 0
        %1149 = vmatprep.subr.bf16.mxu0 0
        %1150 = vmatpush1.bf16.msra.mxu0 0
        %1151 = vmatprep.subr.bf16.mxu0 0
        %1152 = vmatpush1.bf16.msra.mxu0 0
        %1153 = vmatprep.subr.bf16.mxu0 0
        %1154 = vmatpush1.bf16.msra.mxu0 0
        %1155 = vmatprep.subr.bf16.mxu0 0
        %1156 = vmatpush1.bf16.msra.mxu0 0
        %1157 = vmatprep.subr.bf16.mxu0 0
        %1158 = vmatpush1.bf16.msra.mxu0 0
        %1159 = vmatprep.subr.bf16.mxu0 0
        %1160 = vmatpush1.bf16.msra.mxu0 0
        %1161 = vmatprep.mubr.bf16.mxu0 0
        %1162 = vmatmul.mubr.bf16.gmra.mrb[0].mxu0 %v859
        %v1163 = vpop.f32.mrb[0].mxu0
        %v1164 = vadd.f32 0.0, %v1163
        %v1165 = vpop.f32.mrb[0].mxu0
        %v1166 = vpop.f32.mrb[0].mxu0
        %v1167 = vpop.f32.mrb[0].mxu0
        %1168 = vdwg.mxu0
        %v1169 = vpack.c.bf16 %v1164, %v1164
        %v1171 = vsel %vm902, %v1069, 0
        %v1174 = vsel %vm902, %v1119, 0
        %1176 = vmatprep.subr.bf16.mxu0 0
        %1177 = vmatpush1.bf16.xpose.msra.mxu0 %v1174
        %1178 = vmatprep.subr.bf16.mxu0 0
        %1179 = vmatpush1.bf16.xpose.msra.mxu0 0
        %1180 = vmatprep.subr.bf16.mxu0 0
        %1181 = vmatpush1.bf16.xpose.msra.mxu0 0
        %1182 = vmatprep.subr.bf16.mxu0 0
        %1183 = vmatpush1.bf16.xpose.msra.mxu0 0
        %1184 = vmatprep.subr.bf16.mxu0 0
        %1185 = vmatpush1.bf16.xpose.msra.mxu0 0
        %1186 = vmatprep.subr.bf16.mxu0 0
        %1187 = vmatpush1.bf16.xpose.msra.mxu0 0
        %1188 = vmatprep.subr.bf16.mxu0 0
        %1189 = vmatpush1.bf16.xpose.msra.mxu0 0
        %1190 = vmatprep.subr.bf16.mxu0 0
        %1191 = vmatpush1.bf16.xpose.msra.mxu0 0
        %1192 = vmatprep.subr.bf16.mxu0 0
        %1193 = vmatpush1.bf16.xpose.msra.mxu0 0
        %1194 = vmatprep.subr.bf16.mxu0 0
        %1195 = vmatpush1.bf16.xpose.msra.mxu0 0
        %1196 = vmatprep.subr.bf16.mxu0 0
        %1197 = vmatpush1.bf16.xpose.msra.mxu0 0
        %1198 = vmatprep.subr.bf16.mxu0 0
        %1199 = vmatpush1.bf16.xpose.msra.mxu0 0
        %1200 = vmatprep.subr.bf16.mxu0 0
        %1201 = vmatpush1.bf16.xpose.msra.mxu0 0
        %1202 = vmatprep.subr.bf16.mxu0 0
        %1203 = vmatpush1.bf16.xpose.msra.mxu0 0
        %1204 = vmatprep.subr.bf16.mxu0 0
        %1205 = vmatpush1.bf16.xpose.msra.mxu0 0
        %1206 = vmatprep.subr.bf16.mxu0 0
        %1207 = vmatpush1.bf16.xpose.msra.mxu0 0
        %1208 = vmatprep.mubr.bf16.mxu0 0
        %1209 = vmatmul.mubr.bf16.gmra.mrb[0].mxu0 %v1171
        %v1210 = vpop.f32.mrb[0].mxu0
        %v1211 = vadd.f32 %v743, %v1210
        %v1212 = vpop.f32.mrb[0].mxu0
        %v1213 = vpop.f32.mrb[0].mxu0
        %v1214 = vpop.f32.mrb[0].mxu0
        %1215 = vdwg.mxu0
        %s1216 = scalar_lea.vmem %s637, 4 [#allocation10]
        %v1217 = vld [vmem:[%s1216] sm:$0xf]
        %v1218 = vunpack.c.l.bf16 %v1217
        %v1219 = vadd.f32 %v1211, %v1218
        %v1220 = vsel %vm952, %v1219, -inf
        %1221 = vmax.xlane.f32.xlu0 %v1220
        %v1222 = vpop.xlane.xlu0 %1221
        %v1223 = vsub.f32 %v1219, %v1222
        %v1224 = vmul.f32 %v1223, 1.442695
        %v1225 = vpow.pop %v1224
        %v1226 = vsel %vm952, %v1225, 0.0
        %1227 = vadd.xlane.f32.xlu0 %v1226
        %v1228 = vpop.xlane.xlu0 %1227
        %v1229 = vrcp.pop %v1228
        %v1230 = vmul.f32 %v1225, %v1229
        %v1231 = vpack.c.bf16 %v1230, %v1230
        %s1232 = scalar_lea.vmem %s732, 4 [#allocation23]
        %1233 = vst.msk [vmem:[%s1232] sm:$0xf] %vm965, %v1231
        %v1235 = vsel %vm952, %v1231, 0
        %v1238 = vsel %vm970, %v1169, 0
        %1240 = vmatprep.subr.bf16.mxu0 0
        %1241 = vmatpush1.bf16.msra.mxu0 %v1238
        %1242 = vmatprep.subr.bf16.mxu0 0
        %1243 = vmatpush1.bf16.msra.mxu0 0
        %1244 = vmatprep.subr.bf16.mxu0 0
        %1245 = vmatpush1.bf16.msra.mxu0 0
        %1246 = vmatprep.subr.bf16.mxu0 0
        %1247 = vmatpush1.bf16.msra.mxu0 0
        %1248 = vmatprep.subr.bf16.mxu0 0
        %1249 = vmatpush1.bf16.msra.mxu0 0
        %1250 = vmatprep.subr.bf16.mxu0 0
        %1251 = vmatpush1.bf16.msra.mxu0 0
        %1252 = vmatprep.subr.bf16.mxu0 0
        %1253 = vmatpush1.bf16.msra.mxu0 0
        %1254 = vmatprep.subr.bf16.mxu0 0
        %1255 = vmatpush1.bf16.msra.mxu0 0
        %1256 = vmatprep.subr.bf16.mxu0 0
        %1257 = vmatpush1.bf16.msra.mxu0 0
        %1258 = vmatprep.subr.bf16.mxu0 0
        %1259 = vmatpush1.bf16.msra.mxu0 0
        %1260 = vmatprep.subr.bf16.mxu0 0
        %1261 = vmatpush1.bf16.msra.mxu0 0
        %1262 = vmatprep.subr.bf16.mxu0 0
        %1263 = vmatpush1.bf16.msra.mxu0 0
        %1264 = vmatprep.subr.bf16.mxu0 0
        %1265 = vmatpush1.bf16.msra.mxu0 0
        %1266 = vmatprep.subr.bf16.mxu0 0
        %1267 = vmatpush1.bf16.msra.mxu0 0
        %1268 = vmatprep.subr.bf16.mxu0 0
        %1269 = vmatpush1.bf16.msra.mxu0 0
        %1270 = vmatprep.subr.bf16.mxu0 0
        %1271 = vmatpush1.bf16.msra.mxu0 0
        %1272 = vmatprep.mubr.bf16.mxu0 0
        %1273 = vmatmul.mubr.bf16.gmra.mrb[0].mxu0 %v1235
        %v1274 = vpop.f32.mrb[0].mxu0
        %v1275 = vadd.f32 0.0, %v1274
        %v1276 = vpop.f32.mrb[0].mxu0
        %v1277 = vpop.f32.mrb[0].mxu0
        %v1278 = vpop.f32.mrb[0].mxu0
        %1279 = vdwg.mxu0
        %v1280 = vpack.c.bf16 %v1275, %v1275
        %s1281 = scalar_lea.vmem [#allocation16], 16
        %v1282 = vld [vmem:[%s1281] sm:$0xf]
        %v1283 = vld [vmem:[%s1281 + $0x4] sm:$0xf]
        %v1284 = vld [vmem:[%s1281 + $0x8] sm:$0xf]
        %v1285 = vld [vmem:[%s1281 + $0xc] sm:$0xf]
        %v1290 = vunpack.c.l.b16 %v1282
        %v1291 = vunpack.c.l.b16 %v1283
        %v1292 = vunpack.c.l.b16 %v1284
        %v1293 = vunpack.c.l.b16 %v1285
        %v1294 = vpack.c.b16 %v1291, %v1290
        %v1295 = vpack.c.b16 %v1293, %v1292
        %v1299 = vsel %vm902, %v1280, 0
        %1301 = vmatprep.subr.bf16.mxu0 0
        %1302 = vmatpush1.bf16.msra.mxu0 %v1294
        %1303 = vmatprep.subr.bf16.mxu0 0
        %1304 = vmatpush1.bf16.msra.mxu0 %v1295
        %1305 = vmatprep.subr.bf16.mxu0 0
        %1306 = vmatpush1.bf16.msra.mxu0 0
        %1307 = vmatprep.subr.bf16.mxu0 0
        %1308 = vmatpush1.bf16.msra.mxu0 0
        %1309 = vmatprep.subr.bf16.mxu0 0
        %1310 = vmatpush1.bf16.msra.mxu0 0
        %1311 = vmatprep.subr.bf16.mxu0 0
        %1312 = vmatpush1.bf16.msra.mxu0 0
        %1313 = vmatprep.subr.bf16.mxu0 0
        %1314 = vmatpush1.bf16.msra.mxu0 0
        %1315 = vmatprep.subr.bf16.mxu0 0
        %1316 = vmatpush1.bf16.msra.mxu0 0
        %1317 = vmatprep.subr.bf16.mxu0 0
        %1318 = vmatpush1.bf16.msra.mxu0 0
        %1319 = vmatprep.subr.bf16.mxu0 0
        %1320 = vmatpush1.bf16.msra.mxu0 0
        %1321 = vmatprep.subr.bf16.mxu0 0
        %1322 = vmatpush1.bf16.msra.mxu0 0
        %1323 = vmatprep.subr.bf16.mxu0 0
        %1324 = vmatpush1.bf16.msra.mxu0 0
        %1325 = vmatprep.subr.bf16.mxu0 0
        %1326 = vmatpush1.bf16.msra.mxu0 0
        %1327 = vmatprep.subr.bf16.mxu0 0
        %1328 = vmatpush1.bf16.msra.mxu0 0
        %1329 = vmatprep.subr.bf16.mxu0 0
        %1330 = vmatpush1.bf16.msra.mxu0 0
        %1331 = vmatprep.subr.bf16.mxu0 0
        %1332 = vmatpush1.bf16.msra.mxu0 0
        %1333 = vmatprep.mubr.bf16.mxu0 0
        %1334 = vmatmul.mubr.bf16.gmra.mrb[0].mxu0 %v1299
        %v1335 = vpop.f32.mrb[0].mxu0
        %v1336 = vadd.f32 0.0, %v1335
        %v1337 = vpop.f32.mrb[0].mxu0
        %v1338 = vpop.f32.mrb[0].mxu0
        %v1339 = vpop.f32.mrb[0].mxu0
        %1340 = vdwg.mxu0
        %v1345 = vunpack.c.l.b16 %v1015
        %v1346 = vunpack.c.l.b16 %v1016
        %v1347 = vunpack.c.l.b16 %v1017
        %v1348 = vunpack.c.l.b16 %v1018
        %v1349 = vpack.c.b16 %v1346, %v1345
        %v1350 = vpack.c.b16 %v1348, %v1347
        %v1354 = vsel %vm902, %v1014, 0
        %1356 = vmatprep.subr.bf16.mxu0 0
        %1357 = vmatpush1.bf16.msra.mxu0 %v1349
        %1358 = vmatprep.subr.bf16.mxu0 0
        %1359 = vmatpush1.bf16.msra.mxu0 %v1350
        %1360 = vmatprep.subr.bf16.mxu0 0
        %1361 = vmatpush1.bf16.msra.mxu0 0
        %1362 = vmatprep.subr.bf16.mxu0 0
        %1363 = vmatpush1.bf16.msra.mxu0 0
        %1364 = vmatprep.subr.bf16.mxu0 0
        %1365 = vmatpush1.bf16.msra.mxu0 0
        %1366 = vmatprep.subr.bf16.mxu0 0
        %1367 = vmatpush1.bf16.msra.mxu0 0
        %1368 = vmatprep.subr.bf16.mxu0 0
        %1369 = vmatpush1.bf16.msra.mxu0 0
        %1370 = vmatprep.subr.bf16.mxu0 0
        %1371 = vmatpush1.bf16.msra.mxu0 0
        %1372 = vmatprep.subr.bf16.mxu0 0
        %1373 = vmatpush1.bf16.msra.mxu0 0
        %1374 = vmatprep.subr.bf16.mxu0 0
        %1375 = vmatpush1.bf16.msra.mxu0 0
        %1376 = vmatprep.subr.bf16.mxu0 0
        %1377 = vmatpush1.bf16.msra.mxu0 0
        %1378 = vmatprep.subr.bf16.mxu0 0
        %1379 = vmatpush1.bf16.msra.mxu0 0
        %1380 = vmatprep.subr.bf16.mxu0 0
        %1381 = vmatpush1.bf16.msra.mxu0 0
        %1382 = vmatprep.subr.bf16.mxu0 0
        %1383 = vmatpush1.bf16.msra.mxu0 0
        %1384 = vmatprep.subr.bf16.mxu0 0
        %1385 = vmatpush1.bf16.msra.mxu0 0
        %1386 = vmatprep.subr.bf16.mxu0 0
        %1387 = vmatpush1.bf16.msra.mxu0 0
        %1388 = vmatprep.mubr.bf16.mxu0 0
        %1389 = vmatmul.mubr.bf16.gmra.mrb[0].mxu0 %v1354
        %v1390 = vpop.f32.mrb[0].mxu0
        %v1391 = vadd.f32 %v1336, %v1390
        %v1392 = vpop.f32.mrb[0].mxu0
        %v1393 = vpop.f32.mrb[0].mxu0
        %v1394 = vpop.f32.mrb[0].mxu0
        %1395 = vdwg.mxu0
        %s1396 = scalar_lea.vmem [#allocation11], 16
        %v1397 = vld [vmem:[%s1396] sm:$0xf]
        %v1398 = vld [vmem:[%s1396 + $0x4] sm:$0xf]
        %v1401 = vunpack.c.l.b16 %v1397
        %v1402 = vunpack.c.l.b16 %v1398
        %v1403 = vpack.c.b16 %v1402, %v1401
        %1405 = vmatprep.subr.bf16.mxu0 0
        %1406 = vmatpush1.bf16.msra.mxu0 %v1403
        %1407 = vmatprep.subr.bf16.mxu0 0
        %1408 = vmatpush1.bf16.msra.mxu0 0
        %1409 = vmatprep.subr.bf16.mxu0 0
        %1410 = vmatpush1.bf16.msra.mxu0 0
        %1411 = vmatprep.subr.bf16.mxu0 0
        %1412 = vmatpush1.bf16.msra.mxu0 0
        %1413 = vmatprep.subr.bf16.mxu0 0
        %1414 = vmatpush1.bf16.msra.mxu0 0
        %1415 = vmatprep.subr.bf16.mxu0 0
        %1416 = vmatpush1.bf16.msra.mxu0 0
        %1417 = vmatprep.subr.bf16.mxu0 0
        %1418 = vmatpush1.bf16.msra.mxu0 0
        %1419 = vmatprep.subr.bf16.mxu0 0
        %1420 = vmatpush1.bf16.msra.mxu0 0
        %1421 = vmatprep.subr.bf16.mxu0 0
        %1422 = vmatpush1.bf16.msra.mxu0 0
        %1423 = vmatprep.subr.bf16.mxu0 0
        %1424 = vmatpush1.bf16.msra.mxu0 0
        %1425 = vmatprep.subr.bf16.mxu0 0
        %1426 = vmatpush1.bf16.msra.mxu0 0
        %1427 = vmatprep.subr.bf16.mxu0 0
        %1428 = vmatpush1.bf16.msra.mxu0 0
        %1429 = vmatprep.subr.bf16.mxu0 0
        %1430 = vmatpush1.bf16.msra.mxu0 0
        %1431 = vmatprep.subr.bf16.mxu0 0
        %1432 = vmatpush1.bf16.msra.mxu0 0
        %1433 = vmatprep.subr.bf16.mxu0 0
        %1434 = vmatpush1.bf16.msra.mxu0 0
        %1435 = vmatprep.subr.bf16.mxu0 0
        %1436 = vmatpush1.bf16.msra.mxu0 0
        %1437 = vmatprep.mubr.bf16.mxu0 0
        %1438 = vmatmul.mubr.bf16.gmra.mrb[0].mxu0 %v754
        %v1439 = vpop.f32.mrb[0].mxu0
        %v1440 = vadd.f32 0.0, %v1439
        %v1441 = vpop.f32.mrb[0].mxu0
        %v1442 = vpop.f32.mrb[0].mxu0
        %v1443 = vpop.f32.mrb[0].mxu0
        %1444 = vdwg.mxu0
        %v1445 = vmul.f32 %v1440, 0.5
        %v1446 = vpack.c.bf16 %v1445, %v1445
        %s1447 = scalar_lea.vmem [#allocation13], 16
        %v1448 = vld [vmem:[%s1447] sm:$0xf]
        %v1449 = vld [vmem:[%s1447 + $0x4] sm:$0xf]
        %v1452 = vunpack.c.l.b16 %v1448
        %v1453 = vunpack.c.l.b16 %v1449
        %v1454 = vpack.c.b16 %v1453, %v1452
        %1456 = vmatprep.subr.bf16.mxu0 0
        %1457 = vmatpush1.bf16.msra.mxu0 %v1454
        %1458 = vmatprep.subr.bf16.mxu0 0
        %1459 = vmatpush1.bf16.msra.mxu0 0
        %1460 = vmatprep.subr.bf16.mxu0 0
        %1461 = vmatpush1.bf16.msra.mxu0 0
        %1462 = vmatprep.subr.bf16.mxu0 0
        %1463 = vmatpush1.bf16.msra.mxu0 0
        %1464 = vmatprep.subr.bf16.mxu0 0
        %1465 = vmatpush1.bf16.msra.mxu0 0
        %1466 = vmatprep.subr.bf16.mxu0 0
        %1467 = vmatpush1.bf16.msra.mxu0 0
        %1468 = vmatprep.subr.bf16.mxu0 0
        %1469 = vmatpush1.bf16.msra.mxu0 0
        %1470 = vmatprep.subr.bf16.mxu0 0
        %1471 = vmatpush1.bf16.msra.mxu0 0
        %1472 = vmatprep.subr.bf16.mxu0 0
        %1473 = vmatpush1.bf16.msra.mxu0 0
        %1474 = vmatprep.subr.bf16.mxu0 0
        %1475 = vmatpush1.bf16.msra.mxu0 0
        %1476 = vmatprep.subr.bf16.mxu0 0
        %1477 = vmatpush1.bf16.msra.mxu0 0
        %1478 = vmatprep.subr.bf16.mxu0 0
        %1479 = vmatpush1.bf16.msra.mxu0 0
        %1480 = vmatprep.subr.bf16.mxu0 0
        %1481 = vmatpush1.bf16.msra.mxu0 0
        %1482 = vmatprep.subr.bf16.mxu0 0
        %1483 = vmatpush1.bf16.msra.mxu0 0
        %1484 = vmatprep.subr.bf16.mxu0 0
        %1485 = vmatpush1.bf16.msra.mxu0 0
        %1486 = vmatprep.subr.bf16.mxu0 0
        %1487 = vmatpush1.bf16.msra.mxu0 0
        %1488 = vmatprep.mubr.bf16.mxu0 0
        %1489 = vmatmul.mubr.bf16.gmra.mrb[0].mxu0 %v807
        %v1490 = vpop.f32.mrb[0].mxu0
        %v1491 = vadd.f32 0.0, %v1490
        %v1492 = vpop.f32.mrb[0].mxu0
        %v1493 = vpop.f32.mrb[0].mxu0
        %v1494 = vpop.f32.mrb[0].mxu0
        %1495 = vdwg.mxu0
        %v1496 = vpack.c.bf16 %v1491, %v1491
        %s1497 = scalar_lea.vmem [#allocation14], 16
        %v1498 = vld [vmem:[%s1497] sm:$0xf]
        %v1499 = vld [vmem:[%s1497 + $0x4] sm:$0xf]
        %v1502 = vunpack.c.l.b16 %v1498
        %v1503 = vunpack.c.l.b16 %v1499
        %v1504 = vpack.c.b16 %v1503, %v1502
        %1506 = vmatprep.subr.bf16.mxu0 0
        %1507 = vmatpush1.bf16.msra.mxu0 %v1504
        %1508 = vmatprep.subr.bf16.mxu0 0
        %1509 = vmatpush1.bf16.msra.mxu0 0
        %1510 = vmatprep.subr.bf16.mxu0 0
        %1511 = vmatpush1.bf16.msra.mxu0 0
        %1512 = vmatprep.subr.bf16.mxu0 0
        %1513 = vmatpush1.bf16.msra.mxu0 0
        %1514 = vmatprep.subr.bf16.mxu0 0
        %1515 = vmatpush1.bf16.msra.mxu0 0
        %1516 = vmatprep.subr.bf16.mxu0 0
        %1517 = vmatpush1.bf16.msra.mxu0 0
        %1518 = vmatprep.subr.bf16.mxu0 0
        %1519 = vmatpush1.bf16.msra.mxu0 0
        %1520 = vmatprep.subr.bf16.mxu0 0
        %1521 = vmatpush1.bf16.msra.mxu0 0
        %1522 = vmatprep.subr.bf16.mxu0 0
        %1523 = vmatpush1.bf16.msra.mxu0 0
        %1524 = vmatprep.subr.bf16.mxu0 0
        %1525 = vmatpush1.bf16.msra.mxu0 0
        %1526 = vmatprep.subr.bf16.mxu0 0
        %1527 = vmatpush1.bf16.msra.mxu0 0
        %1528 = vmatprep.subr.bf16.mxu0 0
        %1529 = vmatpush1.bf16.msra.mxu0 0
        %1530 = vmatprep.subr.bf16.mxu0 0
        %1531 = vmatpush1.bf16.msra.mxu0 0
        %1532 = vmatprep.subr.bf16.mxu0 0
        %1533 = vmatpush1.bf16.msra.mxu0 0
        %1534 = vmatprep.subr.bf16.mxu0 0
        %1535 = vmatpush1.bf16.msra.mxu0 0
        %1536 = vmatprep.subr.bf16.mxu0 0
        %1537 = vmatpush1.bf16.msra.mxu0 0
        %1538 = vmatprep.mubr.bf16.mxu0 0
        %1539 = vmatmul.mubr.bf16.gmra.mrb[0].mxu0 %v859
        %v1540 = vpop.f32.mrb[0].mxu0
        %v1541 = vadd.f32 0.0, %v1540
        %v1542 = vpop.f32.mrb[0].mxu0
        %v1543 = vpop.f32.mrb[0].mxu0
        %v1544 = vpop.f32.mrb[0].mxu0
        %1545 = vdwg.mxu0
        %v1546 = vpack.c.bf16 %v1541, %v1541
        %v1548 = vsel %vm902, %v1446, 0
        %v1551 = vsel %vm902, %v1496, 0
        %1553 = vmatprep.subr.bf16.mxu0 0
        %1554 = vmatpush1.bf16.xpose.msra.mxu0 %v1551
        %1555 = vmatprep.subr.bf16.mxu0 0
        %1556 = vmatpush1.bf16.xpose.msra.mxu0 0
        %1557 = vmatprep.subr.bf16.mxu0 0
        %1558 = vmatpush1.bf16.xpose.msra.mxu0 0
        %1559 = vmatprep.subr.bf16.mxu0 0
        %1560 = vmatpush1.bf16.xpose.msra.mxu0 0
        %1561 = vmatprep.subr.bf16.mxu0 0
        %1562 = vmatpush1.bf16.xpose.msra.mxu0 0
        %1563 = vmatprep.subr.bf16.mxu0 0
        %1564 = vmatpush1.bf16.xpose.msra.mxu0 0
        %1565 = vmatprep.subr.bf16.mxu0 0
        %1566 = vmatpush1.bf16.xpose.msra.mxu0 0
        %1567 = vmatprep.subr.bf16.mxu0 0
        %1568 = vmatpush1.bf16.xpose.msra.mxu0 0
        %1569 = vmatprep.subr.bf16.mxu0 0
        %1570 = vmatpush1.bf16.xpose.msra.mxu0 0
        %1571 = vmatprep.subr.bf16.mxu0 0
        %1572 = vmatpush1.bf16.xpose.msra.mxu0 0
        %1573 = vmatprep.subr.bf16.mxu0 0
        %1574 = vmatpush1.bf16.xpose.msra.mxu0 0
        %1575 = vmatprep.subr.bf16.mxu0 0
        %1576 = vmatpush1.bf16.xpose.msra.mxu0 0
        %1577 = vmatprep.subr.bf16.mxu0 0
        %1578 = vmatpush1.bf16.xpose.msra.mxu0 0
        %1579 = vmatprep.subr.bf16.mxu0 0
        %1580 = vmatpush1.bf16.xpose.msra.mxu0 0
        %1581 = vmatprep.subr.bf16.mxu0 0
        %1582 = vmatpush1.bf16.xpose.msra.mxu0 0
        %1583 = vmatprep.subr.bf16.mxu0 0
        %1584 = vmatpush1.bf16.xpose.msra.mxu0 0
        %1585 = vmatprep.mubr.bf16.mxu0 0
        %1586 = vmatmul.mubr.bf16.gmra.mrb[0].mxu0 %v1548
        %v1587 = vpop.f32.mrb[0].mxu0
        %v1588 = vadd.f32 %v743, %v1587
        %v1589 = vpop.f32.mrb[0].mxu0
        %v1590 = vpop.f32.mrb[0].mxu0
        %v1591 = vpop.f32.mrb[0].mxu0
        %1592 = vdwg.mxu0
        %s1593 = scalar_lea.vmem %s637, 8 [#allocation10]
        %v1594 = vld [vmem:[%s1593] sm:$0xf]
        %v1595 = vunpack.c.l.bf16 %v1594
        %v1596 = vadd.f32 %v1588, %v1595
        %v1597 = vsel %vm952, %v1596, -inf
        %1598 = vmax.xlane.f32.xlu0 %v1597
        %v1599 = vpop.xlane.xlu0 %1598
        %v1600 = vsub.f32 %v1596, %v1599
        %v1601 = vmul.f32 %v1600, 1.442695
        %v1602 = vpow.pop %v1601
        %v1603 = vsel %vm952, %v1602, 0.0
        %1604 = vadd.xlane.f32.xlu0 %v1603
        %v1605 = vpop.xlane.xlu0 %1604
        %v1606 = vrcp.pop %v1605
        %v1607 = vmul.f32 %v1602, %v1606
        %v1608 = vpack.c.bf16 %v1607, %v1607
        %s1609 = scalar_lea.vmem %s732, 8 [#allocation23]
        %1610 = vst.msk [vmem:[%s1609] sm:$0xf] %vm965, %v1608
        %v1612 = vsel %vm952, %v1608, 0
        %v1615 = vsel %vm970, %v1546, 0
        %1617 = vmatprep.subr.bf16.mxu0 0
        %1618 = vmatpush1.bf16.msra.mxu0 %v1615
        %1619 = vmatprep.subr.bf16.mxu0 0
        %1620 = vmatpush1.bf16.msra.mxu0 0
        %1621 = vmatprep.subr.bf16.mxu0 0
        %1622 = vmatpush1.bf16.msra.mxu0 0
        %1623 = vmatprep.subr.bf16.mxu0 0
        %1624 = vmatpush1.bf16.msra.mxu0 0
        %1625 = vmatprep.subr.bf16.mxu0 0
        %1626 = vmatpush1.bf16.msra.mxu0 0
        %1627 = vmatprep.subr.bf16.mxu0 0
        %1628 = vmatpush1.bf16.msra.mxu0 0
        %1629 = vmatprep.subr.bf16.mxu0 0
        %1630 = vmatpush1.bf16.msra.mxu0 0
        %1631 = vmatprep.subr.bf16.mxu0 0
        %1632 = vmatpush1.bf16.msra.mxu0 0
        %1633 = vmatprep.subr.bf16.mxu0 0
        %1634 = vmatpush1.bf16.msra.mxu0 0
        %1635 = vmatprep.subr.bf16.mxu0 0
        %1636 = vmatpush1.bf16.msra.mxu0 0
        %1637 = vmatprep.subr.bf16.mxu0 0
        %1638 = vmatpush1.bf16.msra.mxu0 0
        %1639 = vmatprep.subr.bf16.mxu0 0
        %1640 = vmatpush1.bf16.msra.mxu0 0
        %1641 = vmatprep.subr.bf16.mxu0 0
        %1642 = vmatpush1.bf16.msra.mxu0 0
        %1643 = vmatprep.subr.bf16.mxu0 0
        %1644 = vmatpush1.bf16.msra.mxu0 0
        %1645 = vmatprep.subr.bf16.mxu0 0
        %1646 = vmatpush1.bf16.msra.mxu0 0
        %1647 = vmatprep.subr.bf16.mxu0 0
        %1648 = vmatpush1.bf16.msra.mxu0 0
        %1649 = vmatprep.mubr.bf16.mxu0 0
        %1650 = vmatmul.mubr.bf16.gmra.mrb[0].mxu0 %v1612
        %v1651 = vpop.f32.mrb[0].mxu0
        %v1652 = vadd.f32 0.0, %v1651
        %v1653 = vpop.f32.mrb[0].mxu0
        %v1654 = vpop.f32.mrb[0].mxu0
        %v1655 = vpop.f32.mrb[0].mxu0
        %1656 = vdwg.mxu0
        %v1657 = vpack.c.bf16 %v1652, %v1652
        %s1658 = scalar_lea.vmem [#allocation16], 32
        %v1659 = vld [vmem:[%s1658] sm:$0xf]
        %v1660 = vld [vmem:[%s1658 + $0x4] sm:$0xf]
        %v1661 = vld [vmem:[%s1658 + $0x8] sm:$0xf]
        %v1662 = vld [vmem:[%s1658 + $0xc] sm:$0xf]
        %v1667 = vunpack.c.l.b16 %v1659
        %v1668 = vunpack.c.l.b16 %v1660
        %v1669 = vunpack.c.l.b16 %v1661
        %v1670 = vunpack.c.l.b16 %v1662
        %v1671 = vpack.c.b16 %v1668, %v1667
        %v1672 = vpack.c.b16 %v1670, %v1669
        %v1676 = vsel %vm902, %v1657, 0
        %1678 = vmatprep.subr.bf16.mxu0 0
        %1679 = vmatpush1.bf16.msra.mxu0 %v1671
        %1680 = vmatprep.subr.bf16.mxu0 0
        %1681 = vmatpush1.bf16.msra.mxu0 %v1672
        %1682 = vmatprep.subr.bf16.mxu0 0
        %1683 = vmatpush1.bf16.msra.mxu0 0
        %1684 = vmatprep.subr.bf16.mxu0 0
        %1685 = vmatpush1.bf16.msra.mxu0 0
        %1686 = vmatprep.subr.bf16.mxu0 0
        %1687 = vmatpush1.bf16.msra.mxu0 0
        %1688 = vmatprep.subr.bf16.mxu0 0
        %1689 = vmatpush1.bf16.msra.mxu0 0
        %1690 = vmatprep.subr.bf16.mxu0 0
        %1691 = vmatpush1.bf16.msra.mxu0 0
        %1692 = vmatprep.subr.bf16.mxu0 0
        %1693 = vmatpush1.bf16.msra.mxu0 0
        %1694 = vmatprep.subr.bf16.mxu0 0
        %1695 = vmatpush1.bf16.msra.mxu0 0
        %1696 = vmatprep.subr.bf16.mxu0 0
        %1697 = vmatpush1.bf16.msra.mxu0 0
        %1698 = vmatprep.subr.bf16.mxu0 0
        %1699 = vmatpush1.bf16.msra.mxu0 0
        %1700 = vmatprep.subr.bf16.mxu0 0
        %1701 = vmatpush1.bf16.msra.mxu0 0
        %1702 = vmatprep.subr.bf16.mxu0 0
        %1703 = vmatpush1.bf16.msra.mxu0 0
        %1704 = vmatprep.subr.bf16.mxu0 0
        %1705 = vmatpush1.bf16.msra.mxu0 0
        %1706 = vmatprep.subr.bf16.mxu0 0
        %1707 = vmatpush1.bf16.msra.mxu0 0
        %1708 = vmatprep.subr.bf16.mxu0 0
        %1709 = vmatpush1.bf16.msra.mxu0 0
        %1710 = vmatprep.mubr.bf16.mxu0 0
        %1711 = vmatmul.mubr.bf16.gmra.mrb[0].mxu0 %v1676
        %v1712 = vpop.f32.mrb[0].mxu0
        %v1713 = vadd.f32 0.0, %v1712
        %v1714 = vpop.f32.mrb[0].mxu0
        %v1715 = vpop.f32.mrb[0].mxu0
        %v1716 = vpop.f32.mrb[0].mxu0
        %1717 = vdwg.mxu0
        %v1718 = vadd.f32 %v1391, %v1713
        %s1719 = scalar_lea.vmem [#allocation11], 24
        %v1720 = vld [vmem:[%s1719] sm:$0xf]
        %v1721 = vld [vmem:[%s1719 + $0x4] sm:$0xf]
        %v1724 = vunpack.c.l.b16 %v1720
        %v1725 = vunpack.c.l.b16 %v1721
        %v1726 = vpack.c.b16 %v1725, %v1724
        %1728 = vmatprep.subr.bf16.mxu0 0
        %1729 = vmatpush1.bf16.msra.mxu0 %v1726
        %1730 = vmatprep.subr.bf16.mxu0 0
        %1731 = vmatpush1.bf16.msra.mxu0 0
        %1732 = vmatprep.subr.bf16.mxu0 0
        %1733 = vmatpush1.bf16.msra.mxu0 0
        %1734 = vmatprep.subr.bf16.mxu0 0
        %1735 = vmatpush1.bf16.msra.mxu0 0
        %1736 = vmatprep.subr.bf16.mxu0 0
        %1737 = vmatpush1.bf16.msra.mxu0 0
        %1738 = vmatprep.subr.bf16.mxu0 0
        %1739 = vmatpush1.bf16.msra.mxu0 0
        %1740 = vmatprep.subr.bf16.mxu0 0
        %1741 = vmatpush1.bf16.msra.mxu0 0
        %1742 = vmatprep.subr.bf16.mxu0 0
        %1743 = vmatpush1.bf16.msra.mxu0 0
        %1744 = vmatprep.subr.bf16.mxu0 0
        %1745 = vmatpush1.bf16.msra.mxu0 0
        %1746 = vmatprep.subr.bf16.mxu0 0
        %1747 = vmatpush1.bf16.msra.mxu0 0
        %1748 = vmatprep.subr.bf16.mxu0 0
        %1749 = vmatpush1.bf16.msra.mxu0 0
        %1750 = vmatprep.subr.bf16.mxu0 0
        %1751 = vmatpush1.bf16.msra.mxu0 0
        %1752 = vmatprep.subr.bf16.mxu0 0
        %1753 = vmatpush1.bf16.msra.mxu0 0
        %1754 = vmatprep.subr.bf16.mxu0 0
        %1755 = vmatpush1.bf16.msra.mxu0 0
        %1756 = vmatprep.subr.bf16.mxu0 0
        %1757 = vmatpush1.bf16.msra.mxu0 0
        %1758 = vmatprep.subr.bf16.mxu0 0
        %1759 = vmatpush1.bf16.msra.mxu0 0
        %1760 = vmatprep.mubr.bf16.mxu0 0
        %1761 = vmatmul.mubr.bf16.gmra.mrb[0].mxu0 %v754
        %v1762 = vpop.f32.mrb[0].mxu0
        %v1763 = vadd.f32 0.0, %v1762
        %v1764 = vpop.f32.mrb[0].mxu0
        %v1765 = vpop.f32.mrb[0].mxu0
        %v1766 = vpop.f32.mrb[0].mxu0
        %1767 = vdwg.mxu0
        %v1768 = vmul.f32 %v1763, 0.5
        %v1769 = vpack.c.bf16 %v1768, %v1768
        %s1770 = scalar_lea.vmem [#allocation13], 24
        %v1771 = vld [vmem:[%s1770] sm:$0xf]
        %v1772 = vld [vmem:[%s1770 + $0x4] sm:$0xf]
        %v1775 = vunpack.c.l.b16 %v1771
        %v1776 = vunpack.c.l.b16 %v1772
        %v1777 = vpack.c.b16 %v1776, %v1775
        %1779 = vmatprep.subr.bf16.mxu0 0
        %1780 = vmatpush1.bf16.msra.mxu0 %v1777
        %1781 = vmatprep.subr.bf16.mxu0 0
        %1782 = vmatpush1.bf16.msra.mxu0 0
        %1783 = vmatprep.subr.bf16.mxu0 0
        %1784 = vmatpush1.bf16.msra.mxu0 0
        %1785 = vmatprep.subr.bf16.mxu0 0
        %1786 = vmatpush1.bf16.msra.mxu0 0
        %1787 = vmatprep.subr.bf16.mxu0 0
        %1788 = vmatpush1.bf16.msra.mxu0 0
        %1789 = vmatprep.subr.bf16.mxu0 0
        %1790 = vmatpush1.bf16.msra.mxu0 0
        %1791 = vmatprep.subr.bf16.mxu0 0
        %1792 = vmatpush1.bf16.msra.mxu0 0
        %1793 = vmatprep.subr.bf16.mxu0 0
        %1794 = vmatpush1.bf16.msra.mxu0 0
        %1795 = vmatprep.subr.bf16.mxu0 0
        %1796 = vmatpush1.bf16.msra.mxu0 0
        %1797 = vmatprep.subr.bf16.mxu0 0
        %1798 = vmatpush1.bf16.msra.mxu0 0
        %1799 = vmatprep.subr.bf16.mxu0 0
        %1800 = vmatpush1.bf16.msra.mxu0 0
        %1801 = vmatprep.subr.bf16.mxu0 0
        %1802 = vmatpush1.bf16.msra.mxu0 0
        %1803 = vmatprep.subr.bf16.mxu0 0
        %1804 = vmatpush1.bf16.msra.mxu0 0
        %1805 = vmatprep.subr.bf16.mxu0 0
        %1806 = vmatpush1.bf16.msra.mxu0 0
        %1807 = vmatprep.subr.bf16.mxu0 0
        %1808 = vmatpush1.bf16.msra.mxu0 0
        %1809 = vmatprep.subr.bf16.mxu0 0
        %1810 = vmatpush1.bf16.msra.mxu0 0
        %1811 = vmatprep.mubr.bf16.mxu0 0
        %1812 = vmatmul.mubr.bf16.gmra.mrb[0].mxu0 %v807
        %v1813 = vpop.f32.mrb[0].mxu0
        %v1814 = vadd.f32 0.0, %v1813
        %v1815 = vpop.f32.mrb[0].mxu0
        %v1816 = vpop.f32.mrb[0].mxu0
        %v1817 = vpop.f32.mrb[0].mxu0
        %1818 = vdwg.mxu0
        %v1819 = vpack.c.bf16 %v1814, %v1814
        %s1820 = scalar_lea.vmem [#allocation14], 24
        %v1821 = vld [vmem:[%s1820] sm:$0xf]
        %v1822 = vld [vmem:[%s1820 + $0x4] sm:$0xf]
        %v1825 = vunpack.c.l.b16 %v1821
        %v1826 = vunpack.c.l.b16 %v1822
        %v1827 = vpack.c.b16 %v1826, %v1825
        %1829 = vmatprep.subr.bf16.mxu0 0
        %1830 = vmatpush1.bf16.msra.mxu0 %v1827
        %1831 = vmatprep.subr.bf16.mxu0 0
        %1832 = vmatpush1.bf16.msra.mxu0 0
        %1833 = vmatprep.subr.bf16.mxu0 0
        %1834 = vmatpush1.bf16.msra.mxu0 0
        %1835 = vmatprep.subr.bf16.mxu0 0
        %1836 = vmatpush1.bf16.msra.mxu0 0
        %1837 = vmatprep.subr.bf16.mxu0 0
        %1838 = vmatpush1.bf16.msra.mxu0 0
        %1839 = vmatprep.subr.bf16.mxu0 0
        %1840 = vmatpush1.bf16.msra.mxu0 0
        %1841 = vmatprep.subr.bf16.mxu0 0
        %1842 = vmatpush1.bf16.msra.mxu0 0
        %1843 = vmatprep.subr.bf16.mxu0 0
        %1844 = vmatpush1.bf16.msra.mxu0 0
        %1845 = vmatprep.subr.bf16.mxu0 0
        %1846 = vmatpush1.bf16.msra.mxu0 0
        %1847 = vmatprep.subr.bf16.mxu0 0
        %1848 = vmatpush1.bf16.msra.mxu0 0
        %1849 = vmatprep.subr.bf16.mxu0 0
        %1850 = vmatpush1.bf16.msra.mxu0 0
        %1851 = vmatprep.subr.bf16.mxu0 0
        %1852 = vmatpush1.bf16.msra.mxu0 0
        %1853 = vmatprep.subr.bf16.mxu0 0
        %1854 = vmatpush1.bf16.msra.mxu0 0
        %1855 = vmatprep.subr.bf16.mxu0 0
        %1856 = vmatpush1.bf16.msra.mxu0 0
        %1857 = vmatprep.subr.bf16.mxu0 0
        %1858 = vmatpush1.bf16.msra.mxu0 0
        %1859 = vmatprep.subr.bf16.mxu0 0
        %1860 = vmatpush1.bf16.msra.mxu0 0
        %1861 = vmatprep.mubr.bf16.mxu0 0
        %1862 = vmatmul.mubr.bf16.gmra.mrb[0].mxu0 %v859
        %v1863 = vpop.f32.mrb[0].mxu0
        %v1864 = vadd.f32 0.0, %v1863
        %v1865 = vpop.f32.mrb[0].mxu0
        %v1866 = vpop.f32.mrb[0].mxu0
        %v1867 = vpop.f32.mrb[0].mxu0
        %1868 = vdwg.mxu0
        %v1869 = vpack.c.bf16 %v1864, %v1864
        %v1871 = vsel %vm902, %v1769, 0
        %v1874 = vsel %vm902, %v1819, 0
        %1876 = vmatprep.subr.bf16.mxu0 0
        %1877 = vmatpush1.bf16.xpose.msra.mxu0 %v1874
        %1878 = vmatprep.subr.bf16.mxu0 0
        %1879 = vmatpush1.bf16.xpose.msra.mxu0 0
        %1880 = vmatprep.subr.bf16.mxu0 0
        %1881 = vmatpush1.bf16.xpose.msra.mxu0 0
        %1882 = vmatprep.subr.bf16.mxu0 0
        %1883 = vmatpush1.bf16.xpose.msra.mxu0 0
        %1884 = vmatprep.subr.bf16.mxu0 0
        %1885 = vmatpush1.bf16.xpose.msra.mxu0 0
        %1886 = vmatprep.subr.bf16.mxu0 0
        %1887 = vmatpush1.bf16.xpose.msra.mxu0 0
        %1888 = vmatprep.subr.bf16.mxu0 0
        %1889 = vmatpush1.bf16.xpose.msra.mxu0 0
        %1890 = vmatprep.subr.bf16.mxu0 0
        %1891 = vmatpush1.bf16.xpose.msra.mxu0 0
        %1892 = vmatprep.subr.bf16.mxu0 0
        %1893 = vmatpush1.bf16.xpose.msra.mxu0 0
        %1894 = vmatprep.subr.bf16.mxu0 0
        %1895 = vmatpush1.bf16.xpose.msra.mxu0 0
        %1896 = vmatprep.subr.bf16.mxu0 0
        %1897 = vmatpush1.bf16.xpose.msra.mxu0 0
        %1898 = vmatprep.subr.bf16.mxu0 0
        %1899 = vmatpush1.bf16.xpose.msra.mxu0 0
        %1900 = vmatprep.subr.bf16.mxu0 0
        %1901 = vmatpush1.bf16.xpose.msra.mxu0 0
        %1902 = vmatprep.subr.bf16.mxu0 0
        %1903 = vmatpush1.bf16.xpose.msra.mxu0 0
        %1904 = vmatprep.subr.bf16.mxu0 0
        %1905 = vmatpush1.bf16.xpose.msra.mxu0 0
        %1906 = vmatprep.subr.bf16.mxu0 0
        %1907 = vmatpush1.bf16.xpose.msra.mxu0 0
        %1908 = vmatprep.mubr.bf16.mxu0 0
        %1909 = vmatmul.mubr.bf16.gmra.mrb[0].mxu0 %v1871
        %v1910 = vpop.f32.mrb[0].mxu0
        %v1911 = vadd.f32 %v743, %v1910
        %v1912 = vpop.f32.mrb[0].mxu0
        %v1913 = vpop.f32.mrb[0].mxu0
        %v1914 = vpop.f32.mrb[0].mxu0
        %1915 = vdwg.mxu0
        %s1916 = scalar_lea.vmem %s637, 12 [#allocation10]
        %v1917 = vld [vmem:[%s1916] sm:$0xf]
        %v1918 = vunpack.c.l.bf16 %v1917
        %v1919 = vadd.f32 %v1911, %v1918
        %v1920 = vsel %vm952, %v1919, -inf
        %1921 = vmax.xlane.f32.xlu0 %v1920
        %v1922 = vpop.xlane.xlu0 %1921
        %v1923 = vsub.f32 %v1919, %v1922
        %v1924 = vmul.f32 %v1923, 1.442695
        %v1925 = vpow.pop %v1924
        %v1926 = vsel %vm952, %v1925, 0.0
        %1927 = vadd.xlane.f32.xlu0 %v1926
        %v1928 = vpop.xlane.xlu0 %1927
        %v1929 = vrcp.pop %v1928
        %v1930 = vmul.f32 %v1925, %v1929
        %v1931 = vpack.c.bf16 %v1930, %v1930
        %s1932 = scalar_lea.vmem %s732, 12 [#allocation23]
        %1933 = vst.msk [vmem:[%s1932] sm:$0xf] %vm965, %v1931
        %v1935 = vsel %vm952, %v1931, 0
        %v1938 = vsel %vm970, %v1869, 0
        %1940 = vmatprep.subr.bf16.mxu0 0
        %1941 = vmatpush1.bf16.msra.mxu0 %v1938
        %1942 = vmatprep.subr.bf16.mxu0 0
        %1943 = vmatpush1.bf16.msra.mxu0 0
        %1944 = vmatprep.subr.bf16.mxu0 0
        %1945 = vmatpush1.bf16.msra.mxu0 0
        %1946 = vmatprep.subr.bf16.mxu0 0
        %1947 = vmatpush1.bf16.msra.mxu0 0
        %1948 = vmatprep.subr.bf16.mxu0 0
        %1949 = vmatpush1.bf16.msra.mxu0 0
        %1950 = vmatprep.subr.bf16.mxu0 0
        %1951 = vmatpush1.bf16.msra.mxu0 0
        %1952 = vmatprep.subr.bf16.mxu0 0
        %1953 = vmatpush1.bf16.msra.mxu0 0
        %1954 = vmatprep.subr.bf16.mxu0 0
        %1955 = vmatpush1.bf16.msra.mxu0 0
        %1956 = vmatprep.subr.bf16.mxu0 0
        %1957 = vmatpush1.bf16.msra.mxu0 0
        %1958 = vmatprep.subr.bf16.mxu0 0
        %1959 = vmatpush1.bf16.msra.mxu0 0
        %1960 = vmatprep.subr.bf16.mxu0 0
        %1961 = vmatpush1.bf16.msra.mxu0 0
        %1962 = vmatprep.subr.bf16.mxu0 0
        %1963 = vmatpush1.bf16.msra.mxu0 0
        %1964 = vmatprep.subr.bf16.mxu0 0
        %1965 = vmatpush1.bf16.msra.mxu0 0
        %1966 = vmatprep.subr.bf16.mxu0 0
        %1967 = vmatpush1.bf16.msra.mxu0 0
        %1968 = vmatprep.subr.bf16.mxu0 0
        %1969 = vmatpush1.bf16.msra.mxu0 0
        %1970 = vmatprep.subr.bf16.mxu0 0
        %1971 = vmatpush1.bf16.msra.mxu0 0
        %1972 = vmatprep.mubr.bf16.mxu0 0
        %1973 = vmatmul.mubr.bf16.gmra.mrb[0].mxu0 %v1935
        %v1974 = vpop.f32.mrb[0].mxu0
        %v1975 = vadd.f32 0.0, %v1974
        %v1976 = vpop.f32.mrb[0].mxu0
        %v1977 = vpop.f32.mrb[0].mxu0
        %v1978 = vpop.f32.mrb[0].mxu0
        %1979 = vdwg.mxu0
        %v1980 = vpack.c.bf16 %v1975, %v1975
        %s1981 = scalar_lea.vmem [#allocation16], 48
        %v1982 = vld [vmem:[%s1981] sm:$0xf]
        %v1983 = vld [vmem:[%s1981 + $0x4] sm:$0xf]
        %v1984 = vld [vmem:[%s1981 + $0x8] sm:$0xf]
        %v1985 = vld [vmem:[%s1981 + $0xc] sm:$0xf]
        %v1990 = vunpack.c.l.b16 %v1982
        %v1991 = vunpack.c.l.b16 %v1983
        %v1992 = vunpack.c.l.b16 %v1984
        %v1993 = vunpack.c.l.b16 %v1985
        %v1994 = vpack.c.b16 %v1991, %v1990
        %v1995 = vpack.c.b16 %v1993, %v1992
        %v1999 = vsel %vm902, %v1980, 0
        %2001 = vmatprep.subr.bf16.mxu0 0
        %2002 = vmatpush1.bf16.msra.mxu0 %v1994
        %2003 = vmatprep.subr.bf16.mxu0 0
        %2004 = vmatpush1.bf16.msra.mxu0 %v1995
        %2005 = vmatprep.subr.bf16.mxu0 0
        %2006 = vmatpush1.bf16.msra.mxu0 0
        %2007 = vmatprep.subr.bf16.mxu0 0
        %2008 = vmatpush1.bf16.msra.mxu0 0
        %2009 = vmatprep.subr.bf16.mxu0 0
        %2010 = vmatpush1.bf16.msra.mxu0 0
        %2011 = vmatprep.subr.bf16.mxu0 0
        %2012 = vmatpush1.bf16.msra.mxu0 0
        %2013 = vmatprep.subr.bf16.mxu0 0
        %2014 = vmatpush1.bf16.msra.mxu0 0
        %2015 = vmatprep.subr.bf16.mxu0 0
        %2016 = vmatpush1.bf16.msra.mxu0 0
        %2017 = vmatprep.subr.bf16.mxu0 0
        %2018 = vmatpush1.bf16.msra.mxu0 0
        %2019 = vmatprep.subr.bf16.mxu0 0
        %2020 = vmatpush1.bf16.msra.mxu0 0
        %2021 = vmatprep.subr.bf16.mxu0 0
        %2022 = vmatpush1.bf16.msra.mxu0 0
        %2023 = vmatprep.subr.bf16.mxu0 0
        %2024 = vmatpush1.bf16.msra.mxu0 0
        %2025 = vmatprep.subr.bf16.mxu0 0
        %2026 = vmatpush1.bf16.msra.mxu0 0
        %2027 = vmatprep.subr.bf16.mxu0 0
        %2028 = vmatpush1.bf16.msra.mxu0 0
        %2029 = vmatprep.subr.bf16.mxu0 0
        %2030 = vmatpush1.bf16.msra.mxu0 0
        %2031 = vmatprep.subr.bf16.mxu0 0
        %2032 = vmatpush1.bf16.msra.mxu0 0
        %2033 = vmatprep.mubr.bf16.mxu0 0
        %2034 = vmatmul.mubr.bf16.gmra.mrb[0].mxu0 %v1999
        %v2035 = vpop.f32.mrb[0].mxu0
        %v2036 = vadd.f32 0.0, %v2035
        %v2037 = vpop.f32.mrb[0].mxu0
        %v2038 = vpop.f32.mrb[0].mxu0
        %v2039 = vpop.f32.mrb[0].mxu0
        %2040 = vdwg.mxu0
        %v2041 = vadd.f32 %v1718, %v2036
        %v2042 = vld [vmem:[#allocation17] sm:$0x1]
        %v2044 = vlaneseq
        %v2045 = vshrl.u32 %v2044, 7
        %v2046 = vsub.s32 0, %v2045
        %v2047 = vrot.slane %v2042, %v2046
        %v2049 = vadd.f32 %v2041, %v2047
        %v2050 = vsel %vm752, %v2049, 0.0
        %2051 = vadd.xlane.f32.xlu0 %v2050
        %v2052 = vpop.xlane.xlu0 %2051
        %v2053 = vrcp.pop 16.0
        %v2054 = vmul.f32 %v2052, %v2053
        %v2055 = vsub.f32 %v2049, %v2054
        %v2056 = vmul.f32 %v2055, %v2055
        %v2057 = vsel %vm752, %v2056, 0.0
        %2058 = vadd.xlane.f32.xlu0 %v2057
        %v2059 = vpop.xlane.xlu0 %2058
        %v2060 = vmul.f32 %v2059, %v2053
        %v2061 = vadd.f32 %v2060, 1e-05
        %v2062 = vrsqrt.pop %v2061
        %v2063 = vmul.f32 %v2055, %v2062
        %v2064 = vld [vmem:[#allocation19] sm:$0x1]
        %v2066 = vlaneseq
        %v2067 = vshrl.u32 %v2066, 7
        %v2068 = vsub.s32 0, %v2067
        %v2069 = vrot.slane %v2064, %v2068
        %v2071 = vmul.f32 %v2063, %v2069
        %v2072 = vld [vmem:[#allocation20] sm:$0x1]
        %v2074 = vlaneseq
        %v2075 = vshrl.u32 %v2074, 7
        %v2076 = vsub.s32 0, %v2075
        %v2077 = vrot.slane %v2072, %v2076
        %v2079 = vadd.f32 %v2071, %v2077
        %2080 = vst.msk [vmem:[%s725] sm:$0xff] %vm752, %v2079
        %s2081 = sand.u32 %s349, 1
        %s2082 = scalar_lea.sflag [#allocation4], %s2081
        %s2083 = sand.u32 %s349, 1
        %s2084 = smul.addr %s2083, 8
        %s2085 = scalar_lea.vmem [#allocation22], %s2084
        %s2086 = sand.u32 %s377, 1
        %s2087 = scalar_lea.sflag [#allocation24], %s2086
        %s2088 = sand.u32 %s377, 1
        %s2089 = smul.addr %s2088, 16
        %s2090 = scalar_lea.vmem [#allocation23], %s2089
        // Predicated region
        $region117: #{tpu_custom_call.1} parent=67 // pred_check
          %p2091 = pneg %p359
        $region118: #{tpu_custom_call.1} parent=67 // pred_check_branch
          %2093 = sbr.rel (%p2091) target = $region120
        $region119: #{tpu_custom_call.1} parent=67 // pred_region
          %s2095 = ssub.s32 128, 128
          %2096 = vsyncadd %s2082, %s2095
          %s2097 = sadd.s32 %s49, %s48
          %s2098 = smul.addr %s2097, 128
          %s2099 = scalar_lea.hbm %s12, %s2098
          %s2101 = sshll.u32 %s2085, 4
          %s2102 = int_to_ptr.vmem [resolvable:$true] %s2101
          %2104 = dma.vmem_to_hbm [thread:$0]  %s2102, 128, %s2099, %s2082
        $region120: #{tpu_custom_call.1} parent=67 // pred_fallthru
          _
        // Predicated region
        $region121: #{tpu_custom_call.1} parent=67 // pred_check
          %p2105 = pneg %p387
        $region122: #{tpu_custom_call.1} parent=67 // pred_check_branch
          %2107 = sbr.rel (%p2105) target = $region124
        $region123: #{tpu_custom_call.1} parent=67 // pred_region
          %s2109 = ssub.s32 256, 256
          %2110 = vsyncadd %s2087, %s2109
          %s2111 = smul.addr %s48, 4
          %s2112 = sadd.s32 %s49, %s2111
          %s2113 = smul.addr %s2112, 64
          %s2114 = scalar_lea.hbm %s13, %s2113
          %s2115 = sshll.u32 %s2090, 4
          %s2116 = int_to_ptr.vmem [resolvable:$true] %s2115
          %2121 = dma.vmem_to_hbm [thread:$0]  %s2116, 256, %s2114, %s2087, 64, 64, 4
        $region124: #{tpu_custom_call.1} parent=67 // pred_fallthru
          _
      $region68: #{tpu_custom_call.1} parent=5 // pred_fallthru
        _
      %p2122 = scmp.le.s32.totalorder 2, %s39
      // Predicated region
      $region125: #{tpu_custom_call.1} parent=5 // pred_check
        %p2123 = pneg %p2122
      $region126: #{tpu_custom_call.1} parent=5 // pred_check_branch
        %2125 = sbr.rel (%p2123) target = $region128
      $region127: #{tpu_custom_call.1} parent=5 // pred_region
        %s2126 = ssub.s32 %s39, 2
        // Predicated region
        $region129: #{tpu_custom_call.1} parent=127 // pred_check
          %p2127 = pneg %p365
        $region130: #{tpu_custom_call.1} parent=127 // pred_check_branch
          %2129 = sbr.rel (%p2127) target = $region132
        $region131: #{tpu_custom_call.1} parent=127 // pred_region
          %s2130 = sand.u32 %s350, 1
          %s2131 = scalar_lea.sflag [#allocation4], %s2130
          %s2132 = sand.u32 %s350, 1
          %s2133 = smul.addr %s2132, 8
          %s2134 = scalar_lea.vmem [#allocation22], %s2133
          %2135 = dma.done %s2131, 128
        $region132: #{tpu_custom_call.1} parent=127 // pred_fallthru
          _
        // Predicated region
        $region133: #{tpu_custom_call.1} parent=127 // pred_check
          %p2136 = pneg %p393
        $region134: #{tpu_custom_call.1} parent=127 // pred_check_branch
          %2138 = sbr.rel (%p2136) target = $region136
        $region135: #{tpu_custom_call.1} parent=127 // pred_region
          %s2139 = sand.u32 %s378, 1
          %s2140 = scalar_lea.sflag [#allocation24], %s2139
          %s2141 = sand.u32 %s378, 1
          %s2142 = smul.addr %s2141, 16
          %s2143 = scalar_lea.vmem [#allocation23], %s2142
          %2144 = dma.done %s2140, 256
        $region136: #{tpu_custom_call.1} parent=127 // pred_fallthru
          _
      $region128: #{tpu_custom_call.1} parent=5 // pred_fallthru
        _
    $region6: #{tpu_custom_call.1} parent=1 // loop_footer
      %s43 = sadd.s32 1, %s39
    $region7: #{tpu_custom_call.1} parent=1 // loop_footer_branch
      %38 = sbr.rel target = $region3
    $region8: #{tpu_custom_call.1} parent=1 // loop_exit
      _
    %2145 = vsyncpa [#allocation3], 1
    %s2146 = scalar_lea.sflag [#allocation3], 1
    %2147 = vsyncpa %s2146, 1
    %2148 = vsyncpa [#allocation6], 1
    %s2149 = scalar_lea.sflag [#allocation6], 1
    %2150 = vsyncpa %s2149, 1
    %2151 = vsyncpa [#allocation9], 1
    %s2152 = scalar_lea.sflag [#allocation9], 1
    %2153 = vsyncpa %s2152, 1
    %2154 = vsyncpa [#allocation12], 1
    %2155 = vsyncpa [#allocation15], 1
    %2156 = vsyncpa [#allocation18], 1
    %2157 = vsyncpa [#allocation21], 1
    %2158 = vsyncpa [#allocation4], 1
    %s2159 = scalar_lea.sflag [#allocation4], 1
    %2160 = vsyncpa %s2159, 1
    %2161 = vsyncpa [#allocation24], 1
    %s2162 = scalar_lea.sflag [#allocation24], 1
    %2163 = vsyncpa %s2162, 1

</llo_original>
